<compile_context>
chip_gen: v7x
topology: tpu7x:2x2x1
jax: 0.10.0
libtpu: 0.0.40
codegen_flags: <defaults>
</compile_context>

<pallas_src>
import functools

import jax
import jax.numpy as jnp
from jax import lax
from jax.experimental import pallas as pl
from jax.experimental.pallas import tpu as pltpu


_LANE = 128


def _round_up(x, m):
    return ((x + m - 1) // m) * m


def _pad_last(a, target):
    pad = target - a.shape[-1]
    if pad:
        cfg = [(0, 0)] * (a.ndim - 1) + [(0, pad)]
        a = jnp.pad(a, cfg)
    return a


def _vmem_limit_bytes():
    # Chip-aware scoped-VMEM limit: ~56 MiB on v7x (64 MiB/TC), ~100 MiB on
    # v5e/v6e (128 MiB).  Falls back to 56 MiB if the query is unavailable
    # (e.g. interpret mode).
    try:
        cap = int(pltpu.get_tpu_info().vmem_capacity_bytes)
    except Exception:
        cap = 64 * 1024 * 1024
    return min(cap * 7 // 8, 100 * 1024 * 1024)


# ----------------------------------------------------------------------------
# Kernel A: 1x1 conv (BN scale folded into weight) + shift + ReLU  (GEMM)
# ----------------------------------------------------------------------------
def _conv1x1_kernel(x_ref, w_ref, b_ref, o_ref):
    acc = jnp.dot(x_ref[...], w_ref[...], preferred_element_type=jnp.float32)
    o_ref[...] = jnp.maximum(acc + b_ref[...], 0.0).astype(o_ref.dtype)


def conv1x1_bn_relu(x2d, w2d, shift, *, out_dtype=jnp.bfloat16):
    """x2d:(M,K) bf16 (K native / unpadded), w2d:(K,N) bf16, shift:(N,) f32."""
    m, k = x2d.shape
    n = w2d.shape[1]
    # Memory-bound GEMM: large row tiles amortize per-step overhead; keep at
    # least two grid steps when possible so both TensorCores get work.
    tm = 1024
    while tm > 128 and m <= tm:
        tm //= 2
    mp = _round_up(m, tm)
    if mp != m:
        x2d = jnp.pad(x2d, ((0, mp - m), (0, 0)))
    out = pl.pallas_call(
        _conv1x1_kernel,
        out_shape=jax.ShapeDtypeStruct((mp, n), out_dtype),
        grid=(mp // tm,),
        in_specs=[
            pl.BlockSpec((tm, k), lambda i: (i, 0)),
            pl.BlockSpec((k, n), lambda i: (0, 0)),
            pl.BlockSpec((1, n), lambda i: (0, 0)),
        ],
        out_specs=pl.BlockSpec((tm, n), lambda i: (i, 0)),
        compiler_params=pltpu.CompilerParams(
            dimension_semantics=("parallel",),
            vmem_limit_bytes=_vmem_limit_bytes(),
        ),
    )(x2d, w2d, shift.reshape(1, -1))
    return out[:m] if mp != m else out


# ----------------------------------------------------------------------------
# Kernel B: conv2(3x3)+BN+ReLU -> conv3(1x1)+BN+ReLU -> +shortcut -> ReLU
# ----------------------------------------------------------------------------
def _fused_tail_kernel(src_ref, w2_ref, b2_ref, w3_ref, b3_ref,
                       xs_ref, wx_ref, bx_ref, o_ref, *scratch,
                       stride, h, w, wo, tb, cout_stripe, deep_k):
    s = stride
    cm = w3_ref.shape[0]
    cout_p = w3_ref.shape[1]
    rb = pl.program_id(1)

    if s == 1:
        # Build the zero-halo (padding=1) copy of this image's y1 once per
        # image, in VMEM (no HBM pad pass).  The row-block axis is "arbitrary"
        # so rb == 0 always runs first for each image on its core.
        pad_scr = scratch[0]

        @pl.when(rb == 0)
        def _build_halo():
            pad_scr[...] = jnp.zeros(pad_scr.shape, pad_scr.dtype)
            pad_scr[0, 1:1 + h, 1:1 + w, :] = src_ref[...]

        src = pad_scr
    else:
        src = src_ref

    halo = 2 // s
    tbh = tb + halo
    row_lo = rb * tb

    # conv2 (3x3, stride s): taps grouped by column offset.  Each distinct
    # (phase, col-offset) window is loaded once; kh offsets are cheap slices
    # along the non-tiled row dim of the already-loaded window.
    win_cache = {}

    def window(p, c0):
        key = (p, c0)
        if key not in win_cache:
            win_cache[key] = src[p, pl.ds(row_lo, tbh), c0:c0 + wo, :]
        return win_cache[key]

    acc = None
    for kw in range(3):
        c0 = kw // s
        parts = []
        for kh in range(3):
            p = (kh % s) * s + (kw % s)
            r0 = kh // s
            parts.append(window(p, c0)[r0:r0 + tb])           # (tb, wo, cm)
        if deep_k:
            # One K = 3*cm dot per column group: deeper MXU feed (v6e/v7x) and
            # 2 instead of 8 full-size f32 accumulate adds.
            big = jnp.concatenate(parts, axis=-1).reshape(tb * wo, 3 * cm)
            part = jnp.dot(big, w2_ref[kw], preferred_element_type=jnp.float32)
            acc = part if acc is None else acc + part
        else:
            # v5e: MXU is 128 deep, K = cm already fills it; skip the concat.
            for kh in range(3):
                part = jnp.dot(parts[kh].reshape(tb * wo, cm),
                               w2_ref[kw, kh * cm:(kh + 1) * cm, :],
                               preferred_element_type=jnp.float32)
                acc = part if acc is None else acc + part

    y2 = jnp.maximum(acc + b2_ref[...], 0.0).astype(jnp.bfloat16)  # (tb*wo, cm)
    xs2d = xs_ref[...].reshape(tb * wo, xs_ref.shape[-1])

    # conv3 (1x1) + BN + ReLU, shortcut conv_x (1x1) + BN, residual, ReLU.
    # Striped over cout so only a (tb*wo, cout_stripe) f32 live-set exists.
    for j in range(cout_p // cout_stripe):
        lo = j * cout_stripe
        hi = lo + cout_stripe
        y3 = jnp.dot(y2, w3_ref[:, lo:hi],
                     preferred_element_type=jnp.float32) + b3_ref[:, lo:hi]
        y3 = jnp.maximum(y3, 0.0)                 # lay_3 ReLU (before residual)
        sc = jnp.dot(xs2d, wx_ref[:, lo:hi],
                     preferred_element_type=jnp.float32) + bx_ref[:, lo:hi]
        out = jnp.maximum(y3 + sc, 0.0)
        o_ref[:, :, lo:hi] = out.reshape(tb, wo, hi - lo).astype(o_ref.dtype)


def _pick_cout_stripe(cout_p):
    for st in (512, 256, 128):
        if cout_p % st == 0:
            return st
    return cout_p


def _pick_row_block(ho, wo):
    # Whole image per step when it is small; otherwise blocks of <= 8 output
    # rows to bound the f32 epilogue live-set (v7x: 64 MiB VMEM per core).
    if ho * wo <= 128:
        return ho
    for tb in range(8, 0, -1):
        if ho % tb == 0:
            return tb
    return 1


def fused_conv2_conv3_shortcut(src, w2p, t2, w3f, t3, xs, wxf, tx, *,
                               stride, h, w, ho, wo, out_dtype, deep_k):
    s = stride
    n, _, _, cin = xs.shape
    cm = w3f.shape[0]
    cout_p = w3f.shape[1]
    tb = _pick_row_block(ho, wo)
    nrb = ho // tb

    if s == 1:
        # src is raw y1 (n, h, w, cm); the zero halo is built in-kernel.
        src_spec = pl.BlockSpec((None, h, w, cm), lambda b, r: (b, 0, 0, 0))
        scratch = [pltpu.VMEM((1, h + 2, w + 2, cm), src.dtype)]
        dims = ("parallel", "arbitrary")   # halo scratch reused across rb
    else:
        # src is the stride-phase-decomposed, zero-padded y1.
        ss, _, hph, wph, _ = src.shape
        src_spec = pl.BlockSpec((ss, None, hph, wph, cm),
                                lambda b, r: (0, b, 0, 0, 0))
        scratch = []
        dims = ("parallel", "parallel")

    kernel = functools.partial(
        _fused_tail_kernel, stride=s, h=h, w=w, wo=wo, tb=tb,
        cout_stripe=_pick_cout_stripe(cout_p), deep_k=deep_k)

    return pl.pallas_call(
        kernel,
        out_shape=jax.ShapeDtypeStruct((n, ho, wo, cout_p), out_dtype),
        grid=(n, nrb),
        in_specs=[
            src_spec,
            pl.BlockSpec((3, 3 * cm, cm), lambda b, r: (0, 0, 0)),
            pl.BlockSpec((1, cm), lambda b, r: (0, 0)),
            pl.BlockSpec((cm, cout_p), lambda b, r: (0, 0)),
            pl.BlockSpec((1, cout_p), lambda b, r: (0, 0)),
            pl.BlockSpec((None, tb, wo, cin), lambda b, r: (b, r, 0, 0)),
            pl.BlockSpec((cin, cout_p), lambda b, r: (0, 0)),
            pl.BlockSpec((1, cout_p), lambda b, r: (0, 0)),
        ],
        out_specs=pl.BlockSpec((None, tb, wo, cout_p),
                               lambda b, r: (b, r, 0, 0)),
        scratch_shapes=scratch,
        compiler_params=pltpu.CompilerParams(
            dimension_semantics=dims,
            vmem_limit_bytes=_vmem_limit_bytes(),
        ),
    )(src, w2p, t2.reshape(1, -1), w3f, t3.reshape(1, -1),
      xs, wxf, tx.reshape(1, -1))


# ----------------------------------------------------------------------------
# Glue: BN folding, parameter setup, forward
# ----------------------------------------------------------------------------
def _make_bn(c):
    return dict(
        gamma=jnp.ones((c,), jnp.float32),
        beta=jnp.zeros((c,), jnp.float32),
        mean=jnp.zeros((c,), jnp.float32),
        var=jnp.ones((c,), jnp.float32),
    )


def init_params(key, in_channel, out_channel):
    factor = 2
    cmid = out_channel
    cout = out_channel * factor
    ks = jax.random.split(key, 8)
    return {
        # PyTorch conv weight layout (Cout, Cin, kh, kw)
        "w1": jax.random.normal(ks[0], (cmid, in_channel, 1, 1), jnp.float32) * 0.1,
        "b1": jax.random.normal(ks[1], (cmid,), jnp.float32) * 0.1,
        "w2": jax.random.normal(ks[2], (cmid, cmid, 3, 3), jnp.float32) * 0.1,
        "b2": jax.random.normal(ks[3], (cmid,), jnp.float32) * 0.1,
        "w3": jax.random.normal(ks[4], (cout, cmid, 1, 1), jnp.float32) * 0.1,
        "b3": jax.random.normal(ks[5], (cout,), jnp.float32) * 0.1,
        "wx": jax.random.normal(ks[6], (cout, in_channel, 1, 1), jnp.float32) * 0.1,
        "bx": jax.random.normal(ks[7], (cout,), jnp.float32) * 0.1,
        "bn1": _make_bn(cmid),
        "bn2": _make_bn(cmid),
        "bn3": _make_bn(cout),
        "bnx": _make_bn(cout),
    }


def bottleneck_forward_nhwc(x, params, stride, *, out_dtype=jnp.bfloat16,
                            deep_k=True):
    """Bottleneck on NHWC input.  When stacking blocks, keep activations in
    NHWC/bf16 between blocks and call this entry point directly; the NCHW
    transposes should only happen at network boundaries."""
    n, h, w, cin = x.shape
    s = int(stride)
    eps = 1e-5

    cmid = params["w1"].shape[0]
    cout = params["w3"].shape[0]
    cmid_p = _round_up(cmid, _LANE)
    cout_p = _round_up(cout, _LANE)

    # ---- fold eval-mode BN into the conv weights + per-channel shift ----
    def fold(w2d, bias, bn):
        scale = bn["gamma"] / jnp.sqrt(bn["var"] + eps)
        return w2d * scale, bn["beta"] + (bias - bn["mean"]) * scale

    w1f, t1 = fold(params["w1"][:, :, 0, 0].T, params["b1"], params["bn1"])
    w3f, t3 = fold(params["w3"][:, :, 0, 0].T, params["b3"], params["bn3"])
    wxf, tx = fold(params["wx"][:, :, 0, 0].T, params["bx"], params["bnx"])
    scale2 = params["bn2"]["gamma"] / jnp.sqrt(params["bn2"]["var"] + eps)
    t2 = params["bn2"]["beta"] + (params["b2"] - params["bn2"]["mean"]) * scale2

    # conv2 weights packed per column tap: w2p[kw][kh*cmid_p + ci, co]
    w2f = params["w2"] * scale2[:, None, None, None]          # (co, ci, kh, kw)
    w2f = jnp.transpose(w2f, (3, 2, 1, 0))                    # (kw, kh, ci, co)
    w2f = jnp.pad(w2f, ((0, 0), (0, 0),
                        (0, cmid_p - cmid), (0, cmid_p - cmid)))
    w2p = w2f.reshape(3, 3 * cmid_p, cmid_p).astype(jnp.bfloat16)

    # Lane-dense (128-multiple) OUTPUT channels; contraction dims stay native.
    w1f = jnp.pad(w1f, ((0, 0), (0, cmid_p - cmid))).astype(jnp.bfloat16)
    w3f = jnp.pad(w3f, ((0, cmid_p - cmid), (0, cout_p - cout))).astype(jnp.bfloat16)
    wxf = jnp.pad(wxf, ((0, 0), (0, cout_p - cout))).astype(jnp.bfloat16)
    t1 = _pad_last(t1, cmid_p).astype(jnp.float32)
    t2 = _pad_last(t2, cmid_p).astype(jnp.float32)
    t3 = _pad_last(t3, cout_p).astype(jnp.float32)
    tx = _pad_last(tx, cout_p).astype(jnp.float32)

    xb = x.astype(jnp.bfloat16)

    # ---- lay_1: 1x1 conv + BN + ReLU (row-tiled Pallas GEMM) ----
    y1 = conv1x1_bn_relu(xb.reshape(n * h * w, cin), w1f, t1)
    y1 = y1.reshape(n, h, w, cmid_p)

    ho = (h - 1) // s + 1
    wo = (w - 1) // s + 1

    if s == 1:
        src = y1          # zero halo handled inside kernel B (no HBM pad pass)
    else:
        # stride-phase decomposition so every 3x3 tap is a contiguous window
        # of one phase inside the kernel (no strided in-kernel reads).
        hp = _round_up(h + 2, s)
        wp = _round_up(w + 2, s)
        y1p = jnp.pad(y1, ((0, 0), (1, hp - h - 1), (1, wp - w - 1), (0, 0)))
        hph, wph = hp // s, wp // s
        src = (y1p.reshape(n, hph, s, wph, s, cmid_p)
               .transpose(2, 4, 0, 1, 3, 5)
               .reshape(s * s, n, hph, wph, cmid_p))

    # shortcut input: 1x1 stride-s conv == strided spatial subsample
    xs = xb if s == 1 else xb[:, ::s, ::s, :]                 # (n, ho, wo, cin)

    out = fused_conv2_conv3_shortcut(
        src, w2p, t2, w3f, t3, xs, wxf, tx,
        stride=s, h=h, w=w, ho=ho, wo=wo, out_dtype=out_dtype, deep_k=deep_k)

    return out[..., :cout] if cout_p != cout else out


def bottleneck_forward(x_nchw, params, stride, *, out_dtype=jnp.float32,
                       deep_k=True):
    """Bottleneck forward, NCHW in / NCHW out (matches the PyTorch module)."""
    x = jnp.transpose(x_nchw, (0, 2, 3, 1))
    out = bottleneck_forward_nhwc(x, params, stride,
                                  out_dtype=out_dtype, deep_k=deep_k)
    return jnp.transpose(out, (0, 3, 1, 2))


# ----------------------------------------------------------------------------
# Pure-JAX reference (eval-mode BN) for correctness check
# ----------------------------------------------------------------------------
def _ref_forward(x_nchw, params, stride, eps=1e-5):
    def conv(x, wgt, b, st, pad):
        y = lax.conv_general_dilated(
            x, wgt, window_strides=(st, st),
            padding=[(pad, pad), (pad, pad)],
            dimension_numbers=("NCHW", "OIHW", "NCHW"))
        return y + b.reshape(1, -1, 1, 1)

    def bn(x, p):
        scale = p["gamma"] / jnp.sqrt(p["var"] + eps)
        return ((x - p["mean"].reshape(1, -1, 1, 1)) * scale.reshape(1, -1, 1, 1)
                + p["beta"].reshape(1, -1, 1, 1))

    relu = lambda v: jnp.maximum(v, 0.0)
    x_add = bn(conv(x_nchw, params["wx"], params["bx"], stride, 0), params["bnx"])
    y = relu(bn(conv(x_nchw, params["w1"], params["b1"], 1, 0), params["bn1"]))
    y = relu(bn(conv(y, params["w2"], params["b2"], stride, 1), params["bn2"]))
    y = relu(bn(conv(y, params["w3"], params["b3"], 1, 0), params["bn3"]))
    return relu(y + x_add)


if __name__ == "__main__":
    key = jax.random.PRNGKey(0)
    kx, kp = jax.random.split(key)

    in_channel, out_channel = 4, 8
    x = jax.random.normal(kx, (2, in_channel, 16, 16), jnp.float32)
    params = init_params(kp, in_channel, out_channel)

    fwd = jax.jit(bottleneck_forward, static_argnums=(2,),
                  static_argnames=("out_dtype", "deep_k"))

    # stride 2: strided/phase-decomposed conv2 path, f32 output
    out2 = jax.block_until_ready(fwd(x, params, 2))
    assert out2.shape == (2, out_channel * 2, 8, 8), out2.shape
    ref2 = _ref_forward(x, params, 2)
    err2 = float(jnp.max(jnp.abs(out2 - ref2)))
    assert err2 < 5e-2, f"stride-2 max abs error vs reference: {err2}"

    # stride 1: in-kernel zero-halo path, multiple output-row blocks, bf16 out
    out1 = jax.block_until_ready(fwd(x, params, 1, out_dtype=jnp.bfloat16))
    assert out1.shape == (2, out_channel * 2, 16, 16), out1.shape
    ref1 = _ref_forward(x, params, 1)
    err1 = float(jnp.max(jnp.abs(out1.astype(jnp.float32) - ref1)))
    assert err1 < 5e-2, f"stride-1 max abs error vs reference: {err1}"

    print("KERNEL_OK")
</pallas_src>

<mosaic_0001>
module attributes {stable_mosaic.version = 11 : i64} {
  func.func @_conv1x1_kernel(%arg0: i32, %arg1: memref<256x4xbf16, #tpu.memory_space<vmem>>, %arg2: memref<4x128xbf16, #tpu.memory_space<vmem>>, %arg3: memref<1x128xf32, #tpu.memory_space<vmem>>, %arg4: memref<256x128xbf16, #tpu.memory_space<vmem>>) attributes {dimension_semantics = [#tpu.dimension_semantics<parallel>], iteration_bounds = array<i64: 2>, scalar_prefetch = 0 : i64, scratch_operands = 0 : i64, tpu.core_type = #tpu.core_type<tc>, window_params = [{transform_indices = @transform_0, window_bounds = array<i64: 256, 4>}, {pipeline_mode = #tpu.pipeline_mode<synchronous>, transform_indices = @transform_1, window_bounds = array<i64: 4, 128>}, {pipeline_mode = #tpu.pipeline_mode<synchronous>, transform_indices = @transform_2, window_bounds = array<i64: 1, 128>}, {transform_indices = @transform_3, window_bounds = array<i64: 256, 128>}]} {
    %c0 = arith.constant 0 : index
    %c0_0 = arith.constant 0 : index
    %0 = vector.load %arg1[%c0, %c0_0] : memref<256x4xbf16, #tpu.memory_space<vmem>>, vector<256x4xbf16>
    %c0_1 = arith.constant 0 : index
    %c0_2 = arith.constant 0 : index
    %1 = vector.load %arg2[%c0_1, %c0_2] : memref<4x128xbf16, #tpu.memory_space<vmem>>, vector<4x128xbf16>
    %cst = arith.constant dense<0.000000e+00> : vector<256x128xf32>
    %2 = tpu.matmul %0, %1, %cst {dimension_numbers = #tpu.dot_dimension_numbers<[1], [0], [0], [1], [0, 0, 1, 1], [], []>} : vector<256x4xbf16>, vector<4x128xbf16>, vector<256x128xf32> -> vector<256x128xf32>
    %c0_3 = arith.constant 0 : index
    %c0_4 = arith.constant 0 : index
    %3 = vector.load %arg3[%c0_3, %c0_4] : memref<1x128xf32, #tpu.memory_space<vmem>>, vector<1x128xf32>
    %4 = vector.broadcast %3 : vector<1x128xf32> to vector<256x128xf32>
    %5 = arith.addf %2, %4 : vector<256x128xf32>
    %cst_5 = arith.constant 0.000000e+00 : f32
    %6 = vector.broadcast %cst_5 : f32 to vector<256x128xf32>
    %7 = arith.maximumf %5, %6 : vector<256x128xf32>
    %8 = arith.truncf %7 : vector<256x128xf32> to vector<256x128xbf16>
    %c0_6 = arith.constant 0 : index
    %c0_7 = arith.constant 0 : index
    %9 = vector.load %arg4[%c0_6, %c0_7] : memref<256x128xbf16, #tpu.memory_space<vmem>>, vector<256x128xbf16>
    tpu.vector_store %arg4[%c0_6, %c0_7], %8 {strides = array<i32>} : memref<256x128xbf16, #tpu.memory_space<vmem>>, vector<256x128xbf16>,
    return
  }
  func.func @transform_0(%arg0: i32) -> (i32, i32) {
    %c0_i32 = arith.constant 0 : i32
    %c0_i32_0 = arith.constant 0 : i32
    return %arg0, %c0_i32 : i32, i32
  }
  func.func @transform_1(%arg0: i32) -> (i32, i32) {
    %c0_i32 = arith.constant 0 : i32
    %c0_i32_0 = arith.constant 0 : i32
    %c0_i32_1 = arith.constant 0 : i32
    return %c0_i32, %c0_i32_0 : i32, i32
  }
  func.func @transform_2(%arg0: i32) -> (i32, i32) {
    %c0_i32 = arith.constant 0 : i32
    %c0_i32_0 = arith.constant 0 : i32
    %c0_i32_1 = arith.constant 0 : i32
    return %c0_i32, %c0_i32_0 : i32, i32
  }
  func.func @transform_3(%arg0: i32) -> (i32, i32) {
    %c0_i32 = arith.constant 0 : i32
    %c0_i32_0 = arith.constant 0 : i32
    return %arg0, %c0_i32 : i32, i32
  }
}

module attributes {stable_mosaic.version = 11 : i64} {
  func.func @_fused_tail_kernel(%arg0: i32, %arg1: i32, %arg2: memref<4x1x9x9x128xbf16, #tpu.memory_space<vmem>>, %arg3: memref<3x384x128xbf16, #tpu.memory_space<vmem>>, %arg4: memref<1x128xf32, #tpu.memory_space<vmem>>, %arg5: memref<128x128xbf16, #tpu.memory_space<vmem>>, %arg6: memref<1x128xf32, #tpu.memory_space<vmem>>, %arg7: memref<1x8x8x4xbf16, #tpu.memory_space<vmem>>, %arg8: memref<4x128xbf16, #tpu.memory_space<vmem>>, %arg9: memref<1x128xf32, #tpu.memory_space<vmem>>, %arg10: memref<1x8x8x128xf32, #tpu.memory_space<vmem>>) attributes {dimension_semantics = [#tpu.dimension_semantics<parallel>, #tpu.dimension_semantics<parallel>], iteration_bounds = array<i64: 2, 1>, scalar_prefetch = 0 : i64, scratch_operands = 0 : i64, tpu.core_type = #tpu.core_type<tc>, window_params = [{transform_indices = @transform_0, window_bounds = array<i64: 4, 1, 9, 9, 128>}, {pipeline_mode = #tpu.pipeline_mode<synchronous>, transform_indices = @transform_1, window_bounds = array<i64: 3, 384, 128>}, {pipeline_mode = #tpu.pipeline_mode<synchronous>, transform_indices = @transform_2, window_bounds = array<i64: 1, 128>}, {pipeline_mode = #tpu.pipeline_mode<synchronous>, transform_indices = @transform_3, window_bounds = array<i64: 128, 128>}, {pipeline_mode = #tpu.pipeline_mode<synchronous>, transform_indices = @transform_4, window_bounds = array<i64: 1, 128>}, {transform_indices = @transform_5, window_bounds = array<i64: 1, 8, 8, 4>}, {pipeline_mode = #tpu.pipeline_mode<synchronous>, transform_indices = @transform_6, window_bounds = array<i64: 4, 128>}, {pipeline_mode = #tpu.pipeline_mode<synchronous>, transform_indices = @transform_7, window_bounds = array<i64: 1, 128>}, {transform_indices = @transform_8, window_bounds = array<i64: 1, 8, 8, 128>}]} {
    %c8_i32 = arith.constant 8 : i32
    %0 = arith.muli %arg1, %c8_i32 : i32
    %c0 = arith.constant 0 : index
    %c0_0 = arith.constant 0 : index
    %1 = arith.index_cast %0 : i32 to index
    %c0_1 = arith.constant 0 : index
    %c0_2 = arith.constant 0 : index
    %2 = vector.load %arg2[%c0, %c0_0, %1, %c0_1, %c0_2] : memref<4x1x9x9x128xbf16, #tpu.memory_space<vmem>>, vector<1x1x9x8x128xbf16>
    %3 = vector.shape_cast %2 : vector<1x1x9x8x128xbf16> to vector<9x8x128xbf16>
    %4 = vector.extract_strided_slice %3 {offsets = [0, 0, 0], sizes = [8, 8, 128], strides = [1, 1, 1]} : vector<9x8x128xbf16> to vector<8x8x128xbf16>
    %c2 = arith.constant 2 : index
    %c0_3 = arith.constant 0 : index
    %5 = arith.index_cast %0 : i32 to index
    %c0_4 = arith.constant 0 : index
    %c0_5 = arith.constant 0 : index
    %6 = vector.load %arg2[%c2, %c0_3, %5, %c0_4, %c0_5] : memref<4x1x9x9x128xbf16, #tpu.memory_space<vmem>>, vector<1x1x9x8x128xbf16>
    %7 = vector.shape_cast %6 : vector<1x1x9x8x128xbf16> to vector<9x8x128xbf16>
    %8 = vector.extract_strided_slice %7 {offsets = [0, 0, 0], sizes = [8, 8, 128], strides = [1, 1, 1]} : vector<9x8x128xbf16> to vector<8x8x128xbf16>
    %9 = vector.extract_strided_slice %3 {offsets = [1, 0, 0], sizes = [8, 8, 128], strides = [1, 1, 1]} : vector<9x8x128xbf16> to vector<8x8x128xbf16>
    %10 = tpu.concatenate %4, %8, %9 in 2 : vector<8x8x128xbf16>, vector<8x8x128xbf16>, vector<8x8x128xbf16> -> vector<8x8x384xbf16>
    %11 = vector.shape_cast %10 : vector<8x8x384xbf16> to vector<64x384xbf16>
    %c0_6 = arith.constant 0 : index
    %c0_7 = arith.constant 0 : index
    %c0_8 = arith.constant 0 : index
    %12 = vector.load %arg3[%c0_6, %c0_7, %c0_8] : memref<3x384x128xbf16, #tpu.memory_space<vmem>>, vector<1x384x128xbf16>
    %13 = vector.shape_cast %12 : vector<1x384x128xbf16> to vector<384x128xbf16>
    %cst = arith.constant dense<0.000000e+00> : vector<64x128xf32>
    %14 = tpu.matmul %11, %13, %cst {dimension_numbers = #tpu.dot_dimension_numbers<[1], [0], [0], [1], [0, 0, 1, 1], [], []>} : vector<64x384xbf16>, vector<384x128xbf16>, vector<64x128xf32> -> vector<64x128xf32>
    %c1 = arith.constant 1 : index
    %c0_9 = arith.constant 0 : index
    %15 = arith.index_cast %0 : i32 to index
    %c0_10 = arith.constant 0 : index
    %c0_11 = arith.constant 0 : index
    %16 = vector.load %arg2[%c1, %c0_9, %15, %c0_10, %c0_11] : memref<4x1x9x9x128xbf16, #tpu.memory_space<vmem>>, vector<1x1x9x8x128xbf16>
    %17 = vector.shape_cast %16 : vector<1x1x9x8x128xbf16> to vector<9x8x128xbf16>
    %18 = vector.extract_strided_slice %17 {offsets = [0, 0, 0], sizes = [8, 8, 128], strides = [1, 1, 1]} : vector<9x8x128xbf16> to vector<8x8x128xbf16>
    %c3 = arith.constant 3 : index
    %c0_12 = arith.constant 0 : index
    %19 = arith.index_cast %0 : i32 to index
    %c0_13 = arith.constant 0 : index
    %c0_14 = arith.constant 0 : index
    %20 = vector.load %arg2[%c3, %c0_12, %19, %c0_13, %c0_14] : memref<4x1x9x9x128xbf16, #tpu.memory_space<vmem>>, vector<1x1x9x8x128xbf16>
    %21 = vector.shape_cast %20 : vector<1x1x9x8x128xbf16> to vector<9x8x128xbf16>
    %22 = vector.extract_strided_slice %21 {offsets = [0, 0, 0], sizes = [8, 8, 128], strides = [1, 1, 1]} : vector<9x8x128xbf16> to vector<8x8x128xbf16>
    %23 = vector.extract_strided_slice %17 {offsets = [1, 0, 0], sizes = [8, 8, 128], strides = [1, 1, 1]} : vector<9x8x128xbf16> to vector<8x8x128xbf16>
    %24 = tpu.concatenate %18, %22, %23 in 2 : vector<8x8x128xbf16>, vector<8x8x128xbf16>, vector<8x8x128xbf16> -> vector<8x8x384xbf16>
    %25 = vector.shape_cast %24 : vector<8x8x384xbf16> to vector<64x384xbf16>
    %c1_15 = arith.constant 1 : index
    %c0_16 = arith.constant 0 : index
    %c0_17 = arith.constant 0 : index
    %26 = vector.load %arg3[%c1_15, %c0_16, %c0_17] : memref<3x384x128xbf16, #tpu.memory_space<vmem>>, vector<1x384x128xbf16>
    %27 = vector.shape_cast %26 : vector<1x384x128xbf16> to vector<384x128xbf16>
    %cst_18 = arith.constant dense<0.000000e+00> : vector<64x128xf32>
    %28 = tpu.matmul %25, %27, %cst_18 {dimension_numbers = #tpu.dot_dimension_numbers<[1], [0], [0], [1], [0, 0, 1, 1], [], []>} : vector<64x384xbf16>, vector<384x128xbf16>, vector<64x128xf32> -> vector<64x128xf32>
    %29 = arith.addf %14, %28 : vector<64x128xf32>
    %c0_19 = arith.constant 0 : index
    %c0_20 = arith.constant 0 : index
    %30 = arith.index_cast %0 : i32 to index
    %c1_21 = arith.constant 1 : index
    %c0_22 = arith.constant 0 : index
    %31 = vector.load %arg2[%c0_19, %c0_20, %30, %c1_21, %c0_22] : memref<4x1x9x9x128xbf16, #tpu.memory_space<vmem>>, vector<1x1x9x8x128xbf16>
    %32 = vector.shape_cast %31 : vector<1x1x9x8x128xbf16> to vector<9x8x128xbf16>
    %33 = vector.extract_strided_slice %32 {offsets = [0, 0, 0], sizes = [8, 8, 128], strides = [1, 1, 1]} : vector<9x8x128xbf16> to vector<8x8x128xbf16>
    %c2_23 = arith.constant 2 : index
    %c0_24 = arith.constant 0 : index
    %34 = arith.index_cast %0 : i32 to index
    %c1_25 = arith.constant 1 : index
    %c0_26 = arith.constant 0 : index
    %35 = vector.load %arg2[%c2_23, %c0_24, %34, %c1_25, %c0_26] : memref<4x1x9x9x128xbf16, #tpu.memory_space<vmem>>, vector<1x1x9x8x128xbf16>
    %36 = vector.shape_cast %35 : vector<1x1x9x8x128xbf16> to vector<9x8x128xbf16>
    %37 = vector.extract_strided_slice %36 {offsets = [0, 0, 0], sizes = [8, 8, 128], strides = [1, 1, 1]} : vector<9x8x128xbf16> to vector<8x8x128xbf16>
    %38 = vector.extract_strided_slice %32 {offsets = [1, 0, 0], sizes = [8, 8, 128], strides = [1, 1, 1]} : vector<9x8x128xbf16> to vector<8x8x128xbf16>
    %39 = tpu.concatenate %33, %37, %38 in 2 : vector<8x8x128xbf16>, vector<8x8x128xbf16>, vector<8x8x128xbf16> -> vector<8x8x384xbf16>
    %40 = vector.shape_cast %39 : vector<8x8x384xbf16> to vector<64x384xbf16>
    %c2_27 = arith.constant 2 : index
    %c0_28 = arith.constant 0 : index
    %c0_29 = arith.constant 0 : index
    %41 = vector.load %arg3[%c2_27, %c0_28, %c0_29] : memref<3x384x128xbf16, #tpu.memory_space<vmem>>, vector<1x384x128xbf16>
    %42 = vector.shape_cast %41 : vector<1x384x128xbf16> to vector<384x128xbf16>
    %cst_30 = arith.constant dense<0.000000e+00> : vector<64x128xf32>
    %43 = tpu.matmul %40, %42, %cst_30 {dimension_numbers = #tpu.dot_dimension_numbers<[1], [0], [0], [1], [0, 0, 1, 1], [], []>} : vector<64x384xbf16>, vector<384x128xbf16>, vector<64x128xf32> -> vector<64x128xf32>
    %44 = arith.addf %29, %43 : vector<64x128xf32>
    %c0_31 = arith.constant 0 : index
    %c0_32 = arith.constant 0 : index
    %45 = vector.load %arg4[%c0_31, %c0_32] : memref<1x128xf32, #tpu.memory_space<vmem>>, vector<1x128xf32>
    %46 = vector.broadcast %45 : vector<1x128xf32> to vector<64x128xf32>
    %47 = arith.addf %44, %46 : vector<64x128xf32>
    %cst_33 = arith.constant 0.000000e+00 : f32
    %48 = vector.broadcast %cst_33 : f32 to vector<64x128xf32>
    %49 = arith.maximumf %47, %48 : vector<64x128xf32>
    %50 = arith.truncf %49 : vector<64x128xf32> to vector<64x128xbf16>
    %c0_34 = arith.constant 0 : index
    %c0_35 = arith.constant 0 : index
    %c0_36 = arith.constant 0 : index
    %c0_37 = arith.constant 0 : index
    %51 = vector.load %arg7[%c0_34, %c0_35, %c0_36, %c0_37] : memref<1x8x8x4xbf16, #tpu.memory_space<vmem>>, vector<1x8x8x4xbf16>
    %52 = vector.shape_cast %51 : vector<1x8x8x4xbf16> to vector<8x8x4xbf16>
    %53 = vector.shape_cast %52 : vector<8x8x4xbf16> to vector<64x4xbf16>
    %c0_38 = arith.constant 0 : index
    %c0_39 = arith.constant 0 : index
    %54 = vector.load %arg5[%c0_38, %c0_39] : memref<128x128xbf16, #tpu.memory_space<vmem>>, vector<128x128xbf16>
    %cst_40 = arith.constant dense<0.000000e+00> : vector<64x128xf32>
    %55 = tpu.matmul %50, %54, %cst_40 {dimension_numbers = #tpu.dot_dimension_numbers<[1], [0], [0], [1], [0, 0, 1, 1], [], []>} : vector<64x128xbf16>, vector<128x128xbf16>, vector<64x128xf32> -> vector<64x128xf32>
    %c0_41 = arith.constant 0 : index
    %c0_42 = arith.constant 0 : index
    %56 = vector.load %arg6[%c0_41, %c0_42] : memref<1x128xf32, #tpu.memory_space<vmem>>, vector<1x128xf32>
    %57 = vector.broadcast %56 : vector<1x128xf32> to vector<64x128xf32>
    %58 = arith.addf %55, %57 : vector<64x128xf32>
    %cst_43 = arith.constant 0.000000e+00 : f32
    %59 = vector.broadcast %cst_43 : f32 to vector<64x128xf32>
    %60 = arith.maximumf %58, %59 : vector<64x128xf32>
    %c0_44 = arith.constant 0 : index
    %c0_45 = arith.constant 0 : index
    %61 = vector.load %arg8[%c0_44, %c0_45] : memref<4x128xbf16, #tpu.memory_space<vmem>>, vector<4x128xbf16>
    %cst_46 = arith.constant dense<0.000000e+00> : vector<64x128xf32>
    %62 = tpu.matmul %53, %61, %cst_46 {dimension_numbers = #tpu.dot_dimension_numbers<[1], [0], [0], [1], [0, 0, 1, 1], [], []>} : vector<64x4xbf16>, vector<4x128xbf16>, vector<64x128xf32> -> vector<64x128xf32>
    %c0_47 = arith.constant 0 : index
    %c0_48 = arith.constant 0 : index
    %63 = vector.load %arg9[%c0_47, %c0_48] : memref<1x128xf32, #tpu.memory_space<vmem>>, vector<1x128xf32>
    %64 = vector.broadcast %63 : vector<1x128xf32> to vector<64x128xf32>
    %65 = arith.addf %62, %64 : vector<64x128xf32>
    %66 = arith.addf %60, %65 : vector<64x128xf32>
    %cst_49 = arith.constant 0.000000e+00 : f32
    %67 = vector.broadcast %cst_49 : f32 to vector<64x128xf32>
    %68 = arith.maximumf %66, %67 : vector<64x128xf32>
    %69 = vector.shape_cast %68 : vector<64x128xf32> to vector<8x8x128xf32>
    %c0_50 = arith.constant 0 : index
    %c0_51 = arith.constant 0 : index
    %c0_52 = arith.constant 0 : index
    %c0_53 = arith.constant 0 : index
    %70 = vector.load %arg10[%c0_50, %c0_51, %c0_52, %c0_53] : memref<1x8x8x128xf32, #tpu.memory_space<vmem>>, vector<1x8x8x128xf32>
    %71 = vector.shape_cast %70 : vector<1x8x8x128xf32> to vector<8x8x128xf32>
    %72 = vector.shape_cast %69 : vector<8x8x128xf32> to vector<1x8x8x128xf32>
    tpu.vector_store %arg10[%c0_50, %c0_51, %c0_52, %c0_53], %72 {strides = array<i32>} : memref<1x8x8x128xf32, #tpu.memory_space<vmem>>, vector<1x8x8x128xf32>,
    return
  }
  func.func @transform_0(%arg0: i32, %arg1: i32) -> (i32, i32, i32, i32, i32) {
    %c0_i32 = arith.constant 0 : i32
    %c0_i32_0 = arith.constant 0 : i32
    %c0_i32_1 = arith.constant 0 : i32
    %c0_i32_2 = arith.constant 0 : i32
    %c0_i32_3 = arith.constant 0 : i32
    return %c0_i32, %arg0, %c0_i32_0, %c0_i32_1, %c0_i32_2 : i32, i32, i32, i32, i32
  }
  func.func @transform_1(%arg0: i32, %arg1: i32) -> (i32, i32, i32) {
    %c0_i32 = arith.constant 0 : i32
    %c0_i32_0 = arith.constant 0 : i32
    %c0_i32_1 = arith.constant 0 : i32
    %c0_i32_2 = arith.constant 0 : i32
    return %c0_i32, %c0_i32_0, %c0_i32_1 : i32, i32, i32
  }
  func.func @transform_2(%arg0: i32, %arg1: i32) -> (i32, i32) {
    %c0_i32 = arith.constant 0 : i32
    %c0_i32_0 = arith.constant 0 : i32
    %c0_i32_1 = arith.constant 0 : i32
    return %c0_i32, %c0_i32_0 : i32, i32
  }
  func.func @transform_3(%arg0: i32, %arg1: i32) -> (i32, i32) {
    %c0_i32 = arith.constant 0 : i32
    %c0_i32_0 = arith.constant 0 : i32
    %c0_i32_1 = arith.constant 0 : i32
    return %c0_i32, %c0_i32_0 : i32, i32
  }
  func.func @transform_4(%arg0: i32, %arg1: i32) -> (i32, i32) {
    %c0_i32 = arith.constant 0 : i32
    %c0_i32_0 = arith.constant 0 : i32
    %c0_i32_1 = arith.constant 0 : i32
    return %c0_i32, %c0_i32_0 : i32, i32
  }
  func.func @transform_5(%arg0: i32, %arg1: i32) -> (i32, i32, i32, i32) {
    %c0_i32 = arith.constant 0 : i32
    %c0_i32_0 = arith.constant 0 : i32
    %c0_i32_1 = arith.constant 0 : i32
    return %arg0, %arg1, %c0_i32, %c0_i32_0 : i32, i32, i32, i32
  }
  func.func @transform_6(%arg0: i32, %arg1: i32) -> (i32, i32) {
    %c0_i32 = arith.constant 0 : i32
    %c0_i32_0 = arith.constant 0 : i32
    %c0_i32_1 = arith.constant 0 : i32
    return %c0_i32, %c0_i32_0 : i32, i32
  }
  func.func @transform_7(%arg0: i32, %arg1: i32) -> (i32, i32) {
    %c0_i32 = arith.constant 0 : i32
    %c0_i32_0 = arith.constant 0 : i32
    %c0_i32_1 = arith.constant 0 : i32
    return %c0_i32, %c0_i32_0 : i32, i32
  }
  func.func @transform_8(%arg0: i32, %arg1: i32) -> (i32, i32, i32, i32) {
    %c0_i32 = arith.constant 0 : i32
    %c0_i32_0 = arith.constant 0 : i32
    %c0_i32_1 = arith.constant 0 : i32
    return %arg0, %arg1, %c0_i32, %c0_i32_0 : i32, i32, i32, i32
  }
}

</mosaic_0001>

<llo_original>
// kernel: bottleneck_forward.2
$region0: #{bottleneck_forward.2}
  #allocation0 [shape = 'u32[]', space=smem, size = 0x4, offset = 0x4, fixed_abs, tag = 'smem constant byte address 0x4 - core index']
  #allocation1 [shape = 'u32[144,128]{1,0:T(1,128)}', space=vmem, size = 0x12000, scoped, tag = 'internal scratch']
  %s0 = inlined_call_operand.vmem [shape: bf16[512,4], index: 0, kind: input, shape index: {}]
  %s1 = inlined_call_operand.vmem [shape: bf16[4,128], index: 1, kind: input, shape index: {}]
  %s2 = inlined_call_operand.vmem [shape: f32[1,128], index: 2, kind: input, shape index: {}]
  %s3 = inlined_call_operand.vmem [shape: bf16[512,128], index: 3, kind: output, shape index: {}]
  %s4 = sld [smem:[#allocation0]]
  $region45: #{bottleneck_forward.2} parent=0
    _
  %s6 = ssub.s32 1, %s4
  %s7 = scalar_select 0, %s6, %s4
  loop: start=0, step=1, limit=4
  $region2: #{bottleneck_forward.2} parent=0 // loop_pre_header
    _
  $region3: #{bottleneck_forward.2} parent=0 // loop_header
    %s9 = sphi 0, %s13
    %p10 = scmp.ge.s32.totalorder %s9, 4
    %s19 = sphi 0, %s21
    %s22 = sphi 0, %s19
    %s23 = sphi 0, %s22
    %s39 = sphi 0, %s23
    %s43 = sphi 0, %s43
    %s45 = sphi 0, %s43
    %s46 = sphi 0, %s45
    %s60 = sphi 0, %s46
    %s64 = sphi 0, %s64
    %s66 = sphi 0, %s64
    %s67 = sphi 0, %s66
    %s81 = sphi 0, %s67
    %s87 = sphi 0, %s89
    %s90 = sphi 0, %s87
    %s91 = sphi 0, %s90
    %s107 = sphi 0, %s91
  $region4: #{bottleneck_forward.2} parent=0 // loop_header_branch
    %12 = sbr.rel (%p10) target = $region8
  $region5: #{bottleneck_forward.2} parent=0 // loop_body
    %s14 = ssub.s32 %s9, 1
    %s15 = ssub.s32 %s9, 2
    %s16 = sadd.s32 %s9, 1
    %s17 = ssub.s32 %s9, %s16
    %p18 = scmp.eq.s32.totalorder %s17, 0
    %s20 = sadd.s32 %s19, 1
    %s21 = scalar_select %p18, %s19, %s20
    %p24 = pneg %p18
    %p25 = scmp.eq.s32.totalorder %s9, 1
    %p26 = por %p24, %p25
    %p27 = scmp.ne.s32.totalorder %s19, %s22
    %p28 = scmp.eq.s32.totalorder %s9, 0
    %p29 = por %p27, %p28
    %p30 = scmp.ne.s32.totalorder %s19, %s22
    %p31 = scmp.eq.s32.totalorder %s14, 1
    %p32 = por %p30, %p31
    %p33 = scmp.ne.s32.totalorder %s22, %s23
    %p34 = scmp.eq.s32.totalorder %s14, 0
    %p35 = por %p33, %p34
    %p36 = scmp.ne.s32.totalorder %s22, %s23
    %p37 = scmp.eq.s32.totalorder %s15, 1
    %p38 = por %p36, %p37
    %p40 = scmp.ne.s32.totalorder %s23, %s39
    %p41 = scmp.eq.s32.totalorder %s15, 0
    %p42 = por %p40, %p41
    %s44 = sadd.s32 %s43, 1
    %p47 = scmp.eq.s32.totalorder %s9, 1
    %p48 = scmp.ne.s32.totalorder %s43, %s45
    %p49 = scmp.eq.s32.totalorder %s9, 0
    %p50 = por %p48, %p49
    %p51 = scmp.ne.s32.totalorder %s43, %s45
    %p52 = scmp.eq.s32.totalorder %s14, 1
    %p53 = por %p51, %p52
    %p54 = scmp.ne.s32.totalorder %s45, %s46
    %p55 = scmp.eq.s32.totalorder %s14, 0
    %p56 = por %p54, %p55
    %p57 = scmp.ne.s32.totalorder %s45, %s46
    %p58 = scmp.eq.s32.totalorder %s15, 1
    %p59 = por %p57, %p58
    %p61 = scmp.ne.s32.totalorder %s46, %s60
    %p62 = scmp.eq.s32.totalorder %s15, 0
    %p63 = por %p61, %p62
    %s65 = sadd.s32 %s64, 1
    %p68 = scmp.eq.s32.totalorder %s9, 1
    %p69 = scmp.ne.s32.totalorder %s64, %s66
    %p70 = scmp.eq.s32.totalorder %s9, 0
    %p71 = por %p69, %p70
    %p72 = scmp.ne.s32.totalorder %s64, %s66
    %p73 = scmp.eq.s32.totalorder %s14, 1
    %p74 = por %p72, %p73
    %p75 = scmp.ne.s32.totalorder %s66, %s67
    %p76 = scmp.eq.s32.totalorder %s14, 0
    %p77 = por %p75, %p76
    %p78 = scmp.ne.s32.totalorder %s66, %s67
    %p79 = scmp.eq.s32.totalorder %s15, 1
    %p80 = por %p78, %p79
    %p82 = scmp.ne.s32.totalorder %s67, %s81
    %p83 = scmp.eq.s32.totalorder %s15, 0
    %p84 = por %p82, %p83
    %s85 = ssub.s32 %s9, %s16
    %p86 = scmp.eq.s32.totalorder %s85, 0
    %s88 = sadd.s32 %s87, 1
    %s89 = scalar_select %p86, %s87, %s88
    %p92 = pneg %p86
    %p93 = scmp.eq.s32.totalorder %s9, 1
    %p94 = por %p92, %p93
    %p95 = scmp.ne.s32.totalorder %s87, %s90
    %p96 = scmp.eq.s32.totalorder %s9, 0
    %p97 = por %p95, %p96
    %p98 = scmp.ne.s32.totalorder %s87, %s90
    %p99 = scmp.eq.s32.totalorder %s14, 1
    %p100 = por %p98, %p99
    %p101 = scmp.ne.s32.totalorder %s90, %s91
    %p102 = scmp.eq.s32.totalorder %s14, 0
    %p103 = por %p101, %p102
    %p104 = scmp.ne.s32.totalorder %s90, %s91
    %p105 = scmp.eq.s32.totalorder %s15, 1
    %p106 = por %p104, %p105
    %p108 = scmp.ne.s32.totalorder %s91, %s107
    %p109 = scmp.eq.s32.totalorder %s15, 0
    %p110 = por %p108, %p109
    %p111 = scmp.le.s32.totalorder 1, %s9
    %p112 = scmp.lt.s32.totalorder %s9, 3
    %p113 = pnand %p111, %p112
    %p114 = pneg %p113
    // Predicated region
    $region9: #{bottleneck_forward.2} parent=5 // pred_check
      _
    $region10: #{bottleneck_forward.2} parent=5 // pred_check_branch
      %116 = sbr.rel (%p113) target = $region12
    $region11: #{bottleneck_forward.2} parent=5 // pred_region
      %s117 = ssub.s32 %s9, 1
      // Predicated region
      $region13: #{bottleneck_forward.2} parent=11 // pred_check
        %p118 = pneg %p56
      $region14: #{bottleneck_forward.2} parent=11 // pred_check_branch
        %120 = sbr.rel (%p118) target = $region16
      $region15: #{bottleneck_forward.2} parent=11 // pred_region
        _
      $region16: #{bottleneck_forward.2} parent=11 // pred_fallthru
        _
      // Predicated region
      $region17: #{bottleneck_forward.2} parent=11 // pred_check
        %p121 = pneg %p77
      $region18: #{bottleneck_forward.2} parent=11 // pred_check_branch
        %123 = sbr.rel (%p121) target = $region20
      $region19: #{bottleneck_forward.2} parent=11 // pred_region
        _
      $region20: #{bottleneck_forward.2} parent=11 // pred_fallthru
        _
    $region12: #{bottleneck_forward.2} parent=5 // pred_fallthru
      _
    %p124 = scmp.lt.s32.totalorder %s9, 2
    // Predicated region
    $region21: #{bottleneck_forward.2} parent=5 // pred_check
      %p125 = pneg %p124
    $region22: #{bottleneck_forward.2} parent=5 // pred_check_branch
      %127 = sbr.rel (%p125) target = $region24
    $region23: #{bottleneck_forward.2} parent=5 // pred_region
      // Predicated region
      $region25: #{bottleneck_forward.2} parent=23 // pred_check
        %p128 = pneg %p29
      $region26: #{bottleneck_forward.2} parent=23 // pred_check_branch
        %130 = sbr.rel (%p128) target = $region28
      $region27: #{bottleneck_forward.2} parent=23 // pred_region
        %s131 = smul.u32 32, %s9
        %p132 = scmp.lt.s32.totalorder %s131, 63
        %s133 = scalar_select %p132, %s131, 63
        %s134 = smul.addr %s133, 4
        %s135 = scalar_lea.vmem %s0, %s134
        %s136 = smul.u32 32, %s9
      $region28: #{bottleneck_forward.2} parent=23 // pred_fallthru
        _
    $region24: #{bottleneck_forward.2} parent=5 // pred_fallthru
      _
    %p137 = scmp.le.s32.totalorder 1, %s9
    %p138 = scmp.lt.s32.totalorder %s9, 3
    %p139 = pnand %p137, %p138
    %p140 = pneg %p139
    // Predicated region
    $region29: #{bottleneck_forward.2} parent=5 // pred_check
      _
    $region30: #{bottleneck_forward.2} parent=5 // pred_check_branch
      %142 = sbr.rel (%p139) target = $region32
    $region31: #{bottleneck_forward.2} parent=5 // pred_region
      %s143 = ssub.s32 %s9, 1
      %s144 = smul.u32 32, %s14
      %p145 = scmp.lt.s32.totalorder %s144, 63
      %s146 = scalar_select %p145, %s144, 63
      %s147 = smul.addr %s146, 4
      %s148 = scalar_lea.vmem %s0, %s147
      %p149 = pneg %p35
      %p150 = pneg %p32
      %p151 = pneg %p56
      %p152 = pneg %p53
      %p153 = pneg %p77
      %p154 = pneg %p74
      %p155 = pneg %p103
      %p156 = pneg %p100
      %s157 = smul.u32 32, %s14
      %p158 = scmp.lt.s32.totalorder %s157, 63
      %s159 = scalar_select %p158, %s157, 63
      %s160 = smul.addr %s159, 4
      %s161 = scalar_lea.vmem %s3, %s160
      %s162 = smul.u32 32, %s14
      %p163 = scmp.lt.s32.totalorder %s162, 63
      %s164 = scalar_select %p163, %s162, 63
      %s165 = smul.addr %s164, 4
      %s166 = scalar_lea.vmem %s0, %s165
      %s167 = smul.u32 32, %s14
      %s168 = smul.u32 32, %s14
      %p169 = scmp.lt.s32.totalorder %s168, 63
      %s170 = scalar_select %p169, %s168, 63
      %s171 = smul.addr %s170, 4
      %s172 = scalar_lea.vmem %s3, %s171
      %s173 = smul.u32 32, %s14
      %v175 = vld [vmem:[%s166] sm:$0xf]
      %v176 = vld [vmem:[%s166 + $0x4] sm:$0xf]
      %v177 = vld [vmem:[%s166 + $0x8] sm:$0xf]
      %v178 = vld [vmem:[%s166 + $0xc] sm:$0xf]
      %v179 = vld [vmem:[%s166 + $0x10] sm:$0xf]
      %v180 = vld [vmem:[%s166 + $0x14] sm:$0xf]
      %v181 = vld [vmem:[%s166 + $0x18] sm:$0xf]
      %v182 = vld [vmem:[%s166 + $0x1c] sm:$0xf]
      %v183 = vld [vmem:[%s166 + $0x20] sm:$0xf]
      %v184 = vld [vmem:[%s166 + $0x24] sm:$0xf]
      %v185 = vld [vmem:[%s166 + $0x28] sm:$0xf]
      %v186 = vld [vmem:[%s166 + $0x2c] sm:$0xf]
      %v187 = vld [vmem:[%s166 + $0x30] sm:$0xf]
      %v188 = vld [vmem:[%s166 + $0x34] sm:$0xf]
      %v189 = vld [vmem:[%s166 + $0x38] sm:$0xf]
      %v190 = vld [vmem:[%s166 + $0x3c] sm:$0xf]
      %v191 = vld [vmem:[%s166 + $0x40] sm:$0xf]
      %v192 = vld [vmem:[%s166 + $0x44] sm:$0xf]
      %v193 = vld [vmem:[%s166 + $0x48] sm:$0xf]
      %v194 = vld [vmem:[%s166 + $0x4c] sm:$0xf]
      %v195 = vld [vmem:[%s166 + $0x50] sm:$0xf]
      %v196 = vld [vmem:[%s166 + $0x54] sm:$0xf]
      %v197 = vld [vmem:[%s166 + $0x58] sm:$0xf]
      %v198 = vld [vmem:[%s166 + $0x5c] sm:$0xf]
      %v199 = vld [vmem:[%s166 + $0x60] sm:$0xf]
      %v200 = vld [vmem:[%s166 + $0x64] sm:$0xf]
      %v201 = vld [vmem:[%s166 + $0x68] sm:$0xf]
      %v202 = vld [vmem:[%s166 + $0x6c] sm:$0xf]
      %v203 = vld [vmem:[%s166 + $0x70] sm:$0xf]
      %v204 = vld [vmem:[%s166 + $0x74] sm:$0xf]
      %v205 = vld [vmem:[%s166 + $0x78] sm:$0xf]
      %v206 = vld [vmem:[%s166 + $0x7c] sm:$0xf]
      %v207 = vld [vmem:[%s1] sm:$0x3]
      %v208 = vld [vmem:[%s2] sm:$0x1]
      %v210 = vlaneseq
      %v211 = vshrl.u32 %v210, 7
      %v212 = vsub.s32 0, %v211
      %v213 = vrot.slane %v208, %v212
      %v247 = vunpack.c.l.b16 %v175
      %v248 = vunpack.c.l.b16 %v176
      %v249 = vunpack.c.l.b16 %v177
      %v250 = vunpack.c.l.b16 %v178
      %v251 = vunpack.c.l.b16 %v179
      %v252 = vunpack.c.l.b16 %v180
      %v253 = vunpack.c.l.b16 %v181
      %v254 = vunpack.c.l.b16 %v182
      %v255 = vunpack.c.l.b16 %v183
      %v256 = vunpack.c.l.b16 %v184
      %v257 = vunpack.c.l.b16 %v185
      %v258 = vunpack.c.l.b16 %v186
      %v259 = vunpack.c.l.b16 %v187
      %v260 = vunpack.c.l.b16 %v188
      %v261 = vunpack.c.l.b16 %v189
      %v262 = vunpack.c.l.b16 %v190
      %v263 = vunpack.c.l.b16 %v191
      %v264 = vunpack.c.l.b16 %v192
      %v265 = vunpack.c.l.b16 %v193
      %v266 = vunpack.c.l.b16 %v194
      %v267 = vunpack.c.l.b16 %v195
      %v268 = vunpack.c.l.b16 %v196
      %v269 = vunpack.c.l.b16 %v197
      %v270 = vunpack.c.l.b16 %v198
      %v271 = vunpack.c.l.b16 %v199
      %v272 = vunpack.c.l.b16 %v200
      %v273 = vunpack.c.l.b16 %v201
      %v274 = vunpack.c.l.b16 %v202
      %v275 = vunpack.c.l.b16 %v203
      %v276 = vunpack.c.l.b16 %v204
      %v277 = vunpack.c.l.b16 %v205
      %v278 = vunpack.c.l.b16 %v206
      %v279 = vpack.c.b16 %v248, %v247
      %v280 = vpack.c.b16 %v250, %v249
      %v281 = vpack.c.b16 %v252, %v251
      %v282 = vpack.c.b16 %v254, %v253
      %v283 = vpack.c.b16 %v256, %v255
      %v284 = vpack.c.b16 %v258, %v257
      %v285 = vpack.c.b16 %v260, %v259
      %v286 = vpack.c.b16 %v262, %v261
      %v287 = vpack.c.b16 %v264, %v263
      %v288 = vpack.c.b16 %v266, %v265
      %v289 = vpack.c.b16 %v268, %v267
      %v290 = vpack.c.b16 %v270, %v269
      %v291 = vpack.c.b16 %v272, %v271
      %v292 = vpack.c.b16 %v274, %v273
      %v293 = vpack.c.b16 %v276, %v275
      %v294 = vpack.c.b16 %v278, %v277
      %vm295 = vcmask 31744
      %v297 = vsel %vm295, %v279, 0
      %v300 = vsel %vm295, %v280, 0
      %v303 = vsel %vm295, %v281, 0
      %v306 = vsel %vm295, %v282, 0
      %v309 = vsel %vm295, %v283, 0
      %v312 = vsel %vm295, %v284, 0
      %v315 = vsel %vm295, %v285, 0
      %v318 = vsel %vm295, %v286, 0
      %v321 = vsel %vm295, %v287, 0
      %v324 = vsel %vm295, %v288, 0
      %v327 = vsel %vm295, %v289, 0
      %v330 = vsel %vm295, %v290, 0
      %v333 = vsel %vm295, %v291, 0
      %v336 = vsel %vm295, %v292, 0
      %v339 = vsel %vm295, %v293, 0
      %v342 = vsel %vm295, %v294, 0
      %vm344 = vcmask 1041408
      %v346 = vsel %vm344, %v207, 0
      %348 = vmatprep.subr.bf16.mxu0 0
      %349 = vmatpush1.bf16.msra.mxu0 %v346
      %350 = vmatprep.subr.bf16.mxu0 0
      %351 = vmatpush1.bf16.msra.mxu0 0
      %352 = vmatprep.subr.bf16.mxu0 0
      %353 = vmatpush1.bf16.msra.mxu0 0
      %354 = vmatprep.subr.bf16.mxu0 0
      %355 = vmatpush1.bf16.msra.mxu0 0
      %356 = vmatprep.subr.bf16.mxu0 0
      %357 = vmatpush1.bf16.msra.mxu0 0
      %358 = vmatprep.subr.bf16.mxu0 0
      %359 = vmatpush1.bf16.msra.mxu0 0
      %360 = vmatprep.subr.bf16.mxu0 0
      %361 = vmatpush1.bf16.msra.mxu0 0
      %362 = vmatprep.subr.bf16.mxu0 0
      %363 = vmatpush1.bf16.msra.mxu0 0
      %364 = vmatprep.subr.bf16.mxu0 0
      %365 = vmatpush1.bf16.msra.mxu0 0
      %366 = vmatprep.subr.bf16.mxu0 0
      %367 = vmatpush1.bf16.msra.mxu0 0
      %368 = vmatprep.subr.bf16.mxu0 0
      %369 = vmatpush1.bf16.msra.mxu0 0
      %370 = vmatprep.subr.bf16.mxu0 0
      %371 = vmatpush1.bf16.msra.mxu0 0
      %372 = vmatprep.subr.bf16.mxu0 0
      %373 = vmatpush1.bf16.msra.mxu0 0
      %374 = vmatprep.subr.bf16.mxu0 0
      %375 = vmatpush1.bf16.msra.mxu0 0
      %376 = vmatprep.subr.bf16.mxu0 0
      %377 = vmatpush1.bf16.msra.mxu0 0
      %378 = vmatprep.subr.bf16.mxu0 0
      %379 = vmatpush1.bf16.msra.mxu0 0
      %380 = vmatprep.mubr.bf16.mxu0 0
      %381 = vmatmul.mubr.bf16.gmra.mrb[0].mxu0 %v297
      %v382 = vpop.f32.mrb[0].mxu0
      %v383 = vadd.f32 %v213, %v382
      %v384 = vpop.f32.mrb[0].mxu0
      %v385 = vpop.f32.mrb[0].mxu0
      %v386 = vadd.f32 %v213, %v385
      %v387 = vpop.f32.mrb[0].mxu0
      %388 = vmatprep.mubr.bf16.mxu0 0
      %389 = vmatmul.mubr.bf16.gmra.mrb[0].mxu0 %v300
      %v390 = vpop.f32.mrb[0].mxu0
      %v391 = vadd.f32 %v213, %v390
      %v392 = vpop.f32.mrb[0].mxu0
      %v393 = vpop.f32.mrb[0].mxu0
      %v394 = vadd.f32 %v213, %v393
      %v395 = vpop.f32.mrb[0].mxu0
      %396 = vmatprep.mubr.bf16.mxu0 0
      %397 = vmatmul.mubr.bf16.gmra.mrb[0].mxu0 %v303
      %v398 = vpop.f32.mrb[0].mxu0
      %v399 = vadd.f32 %v213, %v398
      %v400 = vpop.f32.mrb[0].mxu0
      %v401 = vpop.f32.mrb[0].mxu0
      %v402 = vadd.f32 %v213, %v401
      %v403 = vpop.f32.mrb[0].mxu0
      %404 = vmatprep.mubr.bf16.mxu0 0
      %405 = vmatmul.mubr.bf16.gmra.mrb[0].mxu0 %v306
      %v406 = vpop.f32.mrb[0].mxu0
      %v407 = vadd.f32 %v213, %v406
      %v408 = vpop.f32.mrb[0].mxu0
      %v409 = vpop.f32.mrb[0].mxu0
      %v410 = vadd.f32 %v213, %v409
      %v411 = vpop.f32.mrb[0].mxu0
      %412 = vmatprep.mubr.bf16.mxu0 0
      %413 = vmatmul.mubr.bf16.gmra.mrb[0].mxu0 %v309
      %v414 = vpop.f32.mrb[0].mxu0
      %v415 = vadd.f32 %v213, %v414
      %v416 = vpop.f32.mrb[0].mxu0
      %v417 = vpop.f32.mrb[0].mxu0
      %v418 = vadd.f32 %v213, %v417
      %v419 = vpop.f32.mrb[0].mxu0
      %420 = vmatprep.mubr.bf16.mxu0 0
      %421 = vmatmul.mubr.bf16.gmra.mrb[0].mxu0 %v312
      %v422 = vpop.f32.mrb[0].mxu0
      %v423 = vadd.f32 %v213, %v422
      %v424 = vpop.f32.mrb[0].mxu0
      %v425 = vpop.f32.mrb[0].mxu0
      %v426 = vadd.f32 %v213, %v425
      %v427 = vpop.f32.mrb[0].mxu0
      %428 = vmatprep.mubr.bf16.mxu0 0
      %429 = vmatmul.mubr.bf16.gmra.mrb[0].mxu0 %v315
      %v430 = vpop.f32.mrb[0].mxu0
      %v431 = vadd.f32 %v213, %v430
      %v432 = vpop.f32.mrb[0].mxu0
      %v433 = vpop.f32.mrb[0].mxu0
      %v434 = vadd.f32 %v213, %v433
      %v435 = vpop.f32.mrb[0].mxu0
      %436 = vmatprep.mubr.bf16.mxu0 0
      %437 = vmatmul.mubr.bf16.gmra.mrb[0].mxu0 %v318
      %v438 = vpop.f32.mrb[0].mxu0
      %v439 = vadd.f32 %v213, %v438
      %v440 = vpop.f32.mrb[0].mxu0
      %v441 = vpop.f32.mrb[0].mxu0
      %v442 = vadd.f32 %v213, %v441
      %v443 = vpop.f32.mrb[0].mxu0
      %444 = vmatprep.mubr.bf16.mxu0 0
      %445 = vmatmul.mubr.bf16.gmra.mrb[0].mxu0 %v321
      %v446 = vpop.f32.mrb[0].mxu0
      %v447 = vadd.f32 %v213, %v446
      %v448 = vpop.f32.mrb[0].mxu0
      %v449 = vpop.f32.mrb[0].mxu0
      %v450 = vadd.f32 %v213, %v449
      %v451 = vpop.f32.mrb[0].mxu0
      %452 = vmatprep.mubr.bf16.mxu0 0
      %453 = vmatmul.mubr.bf16.gmra.mrb[0].mxu0 %v324
      %v454 = vpop.f32.mrb[0].mxu0
      %v455 = vadd.f32 %v213, %v454
      %v456 = vpop.f32.mrb[0].mxu0
      %v457 = vpop.f32.mrb[0].mxu0
      %v458 = vadd.f32 %v213, %v457
      %v459 = vpop.f32.mrb[0].mxu0
      %460 = vmatprep.mubr.bf16.mxu0 0
      %461 = vmatmul.mubr.bf16.gmra.mrb[0].mxu0 %v327
      %v462 = vpop.f32.mrb[0].mxu0
      %v463 = vadd.f32 %v213, %v462
      %v464 = vpop.f32.mrb[0].mxu0
      %v465 = vpop.f32.mrb[0].mxu0
      %v466 = vadd.f32 %v213, %v465
      %v467 = vpop.f32.mrb[0].mxu0
      %468 = vmatprep.mubr.bf16.mxu0 0
      %469 = vmatmul.mubr.bf16.gmra.mrb[0].mxu0 %v330
      %v470 = vpop.f32.mrb[0].mxu0
      %v471 = vadd.f32 %v213, %v470
      %v472 = vpop.f32.mrb[0].mxu0
      %v473 = vpop.f32.mrb[0].mxu0
      %v474 = vadd.f32 %v213, %v473
      %v475 = vpop.f32.mrb[0].mxu0
      %476 = vmatprep.mubr.bf16.mxu0 0
      %477 = vmatmul.mubr.bf16.gmra.mrb[0].mxu0 %v333
      %v478 = vpop.f32.mrb[0].mxu0
      %v479 = vadd.f32 %v213, %v478
      %v480 = vpop.f32.mrb[0].mxu0
      %v481 = vpop.f32.mrb[0].mxu0
      %v482 = vadd.f32 %v213, %v481
      %v483 = vpop.f32.mrb[0].mxu0
      %484 = vmatprep.mubr.bf16.mxu0 0
      %485 = vmatmul.mubr.bf16.gmra.mrb[0].mxu0 %v336
      %v486 = vpop.f32.mrb[0].mxu0
      %v487 = vadd.f32 %v213, %v486
      %v488 = vpop.f32.mrb[0].mxu0
      %v489 = vpop.f32.mrb[0].mxu0
      %v490 = vadd.f32 %v213, %v489
      %v491 = vpop.f32.mrb[0].mxu0
      %492 = vmatprep.mubr.bf16.mxu0 0
      %493 = vmatmul.mubr.bf16.gmra.mrb[0].mxu0 %v339
      %v494 = vpop.f32.mrb[0].mxu0
      %v495 = vadd.f32 %v213, %v494
      %v496 = vpop.f32.mrb[0].mxu0
      %v497 = vpop.f32.mrb[0].mxu0
      %v498 = vadd.f32 %v213, %v497
      %v499 = vpop.f32.mrb[0].mxu0
      %500 = vmatprep.mubr.bf16.mxu0 0
      %501 = vmatmul.mubr.bf16.gmra.mrb[0].mxu0 %v342
      %v502 = vpop.f32.mrb[0].mxu0
      %v503 = vadd.f32 %v213, %v502
      %v504 = vpop.f32.mrb[0].mxu0
      %v505 = vpop.f32.mrb[0].mxu0
      %v506 = vadd.f32 %v213, %v505
      %v507 = vpop.f32.mrb[0].mxu0
      %508 = vdwg.mxu0
      %v509 = vmax.f32 %v383, 0.0
      %v510 = vmax.f32 %v386, 0.0
      %v511 = vmax.f32 %v391, 0.0
      %v512 = vmax.f32 %v394, 0.0
      %v513 = vmax.f32 %v399, 0.0
      %v514 = vmax.f32 %v402, 0.0
      %v515 = vmax.f32 %v407, 0.0
      %v516 = vmax.f32 %v410, 0.0
      %v517 = vmax.f32 %v415, 0.0
      %v518 = vmax.f32 %v418, 0.0
      %v519 = vmax.f32 %v423, 0.0
      %v520 = vmax.f32 %v426, 0.0
      %v521 = vmax.f32 %v431, 0.0
      %v522 = vmax.f32 %v434, 0.0
      %v523 = vmax.f32 %v439, 0.0
      %v524 = vmax.f32 %v442, 0.0
      %v525 = vmax.f32 %v447, 0.0
      %v526 = vmax.f32 %v450, 0.0
      %v527 = vmax.f32 %v455, 0.0
      %v528 = vmax.f32 %v458, 0.0
      %v529 = vmax.f32 %v463, 0.0
      %v530 = vmax.f32 %v466, 0.0
      %v531 = vmax.f32 %v471, 0.0
      %v532 = vmax.f32 %v474, 0.0
      %v533 = vmax.f32 %v479, 0.0
      %v534 = vmax.f32 %v482, 0.0
      %v535 = vmax.f32 %v487, 0.0
      %v536 = vmax.f32 %v490, 0.0
      %v537 = vmax.f32 %v495, 0.0
      %v538 = vmax.f32 %v498, 0.0
      %v539 = vmax.f32 %v503, 0.0
      %v540 = vmax.f32 %v506, 0.0
      %v541 = vpack.c.bf16 %v510, %v509
      %v542 = vpack.c.bf16 %v512, %v511
      %v543 = vpack.c.bf16 %v514, %v513
      %v544 = vpack.c.bf16 %v516, %v515
      %v545 = vpack.c.bf16 %v518, %v517
      %v546 = vpack.c.bf16 %v520, %v519
      %v547 = vpack.c.bf16 %v522, %v521
      %v548 = vpack.c.bf16 %v524, %v523
      %v549 = vpack.c.bf16 %v526, %v525
      %v550 = vpack.c.bf16 %v528, %v527
      %v551 = vpack.c.bf16 %v530, %v529
      %v552 = vpack.c.bf16 %v532, %v531
      %v553 = vpack.c.bf16 %v534, %v533
      %v554 = vpack.c.bf16 %v536, %v535
      %v555 = vpack.c.bf16 %v538, %v537
      %v556 = vpack.c.bf16 %v540, %v539
      %v573 = vunpack.c.l.b16 %v541
      %v574 = vunpack.c.h.b16 %v541
      %v575 = vunpack.c.l.b16 %v542
      %v576 = vunpack.c.h.b16 %v542
      %v577 = vunpack.c.l.b16 %v543
      %v578 = vunpack.c.h.b16 %v543
      %v579 = vunpack.c.l.b16 %v544
      %v580 = vunpack.c.h.b16 %v544
      %v581 = vunpack.c.l.b16 %v545
      %v582 = vunpack.c.h.b16 %v545
      %v583 = vunpack.c.l.b16 %v546
      %v584 = vunpack.c.h.b16 %v546
      %v585 = vunpack.c.l.b16 %v547
      %v586 = vunpack.c.h.b16 %v547
      %v587 = vunpack.c.l.b16 %v548
      %v588 = vunpack.c.h.b16 %v548
      %v589 = vunpack.c.l.b16 %v549
      %v590 = vunpack.c.h.b16 %v549
      %v591 = vunpack.c.l.b16 %v550
      %v592 = vunpack.c.h.b16 %v550
      %v593 = vunpack.c.l.b16 %v551
      %v594 = vunpack.c.h.b16 %v551
      %v595 = vunpack.c.l.b16 %v552
      %v596 = vunpack.c.h.b16 %v552
      %v597 = vunpack.c.l.b16 %v553
      %v598 = vunpack.c.h.b16 %v553
      %v599 = vunpack.c.l.b16 %v554
      %v600 = vunpack.c.h.b16 %v554
      %v601 = vunpack.c.l.b16 %v555
      %v602 = vunpack.c.h.b16 %v555
      %v603 = vunpack.c.l.b16 %v556
      %v604 = vunpack.c.h.b16 %v556
      %v605 = vpack.c.b16 %v573, %v573
      %v606 = vpack.c.b16 %v574, %v574
      %v607 = vpack.c.b16 %v575, %v575
      %v608 = vpack.c.b16 %v576, %v576
      %v609 = vpack.c.b16 %v577, %v577
      %v610 = vpack.c.b16 %v578, %v578
      %v611 = vpack.c.b16 %v579, %v579
      %v612 = vpack.c.b16 %v580, %v580
      %v613 = vpack.c.b16 %v581, %v581
      %v614 = vpack.c.b16 %v582, %v582
      %v615 = vpack.c.b16 %v583, %v583
      %v616 = vpack.c.b16 %v584, %v584
      %v617 = vpack.c.b16 %v585, %v585
      %v618 = vpack.c.b16 %v586, %v586
      %v619 = vpack.c.b16 %v587, %v587
      %v620 = vpack.c.b16 %v588, %v588
      %v621 = vpack.c.b16 %v589, %v589
      %v622 = vpack.c.b16 %v590, %v590
      %v623 = vpack.c.b16 %v591, %v591
      %v624 = vpack.c.b16 %v592, %v592
      %v625 = vpack.c.b16 %v593, %v593
      %v626 = vpack.c.b16 %v594, %v594
      %v627 = vpack.c.b16 %v595, %v595
      %v628 = vpack.c.b16 %v596, %v596
      %v629 = vpack.c.b16 %v597, %v597
      %v630 = vpack.c.b16 %v598, %v598
      %v631 = vpack.c.b16 %v599, %v599
      %v632 = vpack.c.b16 %v600, %v600
      %v633 = vpack.c.b16 %v601, %v601
      %v634 = vpack.c.b16 %v602, %v602
      %v635 = vpack.c.b16 %v603, %v603
      %v636 = vpack.c.b16 %v604, %v604
      %669 = vst [vmem:[%s172] sm:$0xf] %v605
      %670 = vst [vmem:[%s172 + $0x4] sm:$0xf] %v606
      %671 = vst [vmem:[%s172 + $0x8] sm:$0xf] %v607
      %672 = vst [vmem:[%s172 + $0xc] sm:$0xf] %v608
      %673 = vst [vmem:[%s172 + $0x10] sm:$0xf] %v609
      %674 = vst [vmem:[%s172 + $0x14] sm:$0xf] %v610
      %675 = vst [vmem:[%s172 + $0x18] sm:$0xf] %v611
      %676 = vst [vmem:[%s172 + $0x1c] sm:$0xf] %v612
      %677 = vst [vmem:[%s172 + $0x20] sm:$0xf] %v613
      %678 = vst [vmem:[%s172 + $0x24] sm:$0xf] %v614
      %679 = vst [vmem:[%s172 + $0x28] sm:$0xf] %v615
      %680 = vst [vmem:[%s172 + $0x2c] sm:$0xf] %v616
      %681 = vst [vmem:[%s172 + $0x30] sm:$0xf] %v617
      %682 = vst [vmem:[%s172 + $0x34] sm:$0xf] %v618
      %683 = vst [vmem:[%s172 + $0x38] sm:$0xf] %v619
      %684 = vst [vmem:[%s172 + $0x3c] sm:$0xf] %v620
      %685 = vst [vmem:[%s172 + $0x40] sm:$0xf] %v621
      %686 = vst [vmem:[%s172 + $0x44] sm:$0xf] %v622
      %687 = vst [vmem:[%s172 + $0x48] sm:$0xf] %v623
      %688 = vst [vmem:[%s172 + $0x4c] sm:$0xf] %v624
      %689 = vst [vmem:[%s172 + $0x50] sm:$0xf] %v625
      %690 = vst [vmem:[%s172 + $0x54] sm:$0xf] %v626
      %691 = vst [vmem:[%s172 + $0x58] sm:$0xf] %v627
      %692 = vst [vmem:[%s172 + $0x5c] sm:$0xf] %v628
      %693 = vst [vmem:[%s172 + $0x60] sm:$0xf] %v629
      %694 = vst [vmem:[%s172 + $0x64] sm:$0xf] %v630
      %695 = vst [vmem:[%s172 + $0x68] sm:$0xf] %v631
      %696 = vst [vmem:[%s172 + $0x6c] sm:$0xf] %v632
      %697 = vst [vmem:[%s172 + $0x70] sm:$0xf] %v633
      %698 = vst [vmem:[%s172 + $0x74] sm:$0xf] %v634
      %699 = vst [vmem:[%s172 + $0x78] sm:$0xf] %v635
      %700 = vst [vmem:[%s172 + $0x7c] sm:$0xf] %v636
      %s701 = smul.u32 32, %s14
      %p702 = scmp.lt.s32.totalorder %s701, 63
      %s703 = scalar_select %p702, %s701, 63
      %s704 = smul.addr %s703, 4
      %s705 = scalar_lea.vmem %s3, %s704
      // Predicated region
      $region33: #{bottleneck_forward.2} parent=31 // pred_check
        %p706 = pneg %p100
      $region34: #{bottleneck_forward.2} parent=31 // pred_check_branch
        %708 = sbr.rel (%p706) target = $region36
      $region35: #{bottleneck_forward.2} parent=31 // pred_region
        %s709 = smul.u32 32, %s14
      $region36: #{bottleneck_forward.2} parent=31 // pred_fallthru
        _
    $region32: #{bottleneck_forward.2} parent=5 // pred_fallthru
      _
    %p710 = scmp.le.s32.totalorder 2, %s9
    // Predicated region
    $region37: #{bottleneck_forward.2} parent=5 // pred_check
      %p711 = pneg %p710
    $region38: #{bottleneck_forward.2} parent=5 // pred_check_branch
      %713 = sbr.rel (%p711) target = $region40
    $region39: #{bottleneck_forward.2} parent=5 // pred_region
      %s714 = ssub.s32 %s9, 2
      // Predicated region
      $region41: #{bottleneck_forward.2} parent=39 // pred_check
        %p715 = pneg %p106
      $region42: #{bottleneck_forward.2} parent=39 // pred_check_branch
        %717 = sbr.rel (%p715) target = $region44
      $region43: #{bottleneck_forward.2} parent=39 // pred_region
        %s718 = smul.u32 32, %s15
        %p719 = scmp.lt.s32.totalorder %s718, 63
        %s720 = scalar_select %p719, %s718, 63
        %s721 = smul.addr %s720, 4
        %s722 = scalar_lea.vmem %s3, %s721
      $region44: #{bottleneck_forward.2} parent=39 // pred_fallthru
        _
    $region40: #{bottleneck_forward.2} parent=5 // pred_fallthru
      _
  $region6: #{bottleneck_forward.2} parent=0 // loop_footer
    %s13 = sadd.s32 1, %s9
  $region7: #{bottleneck_forward.2} parent=0 // loop_footer_branch
    %8 = sbr.rel target = $region3
  $region8: #{bottleneck_forward.2} parent=0 // loop_exit
    _

// kernel: bottleneck_forward.3
$region0: #{bottleneck_forward.3}
  #allocation0 [shape = 'u32[]', space=smem, size = 0x4, offset = 0x4, fixed_abs, tag = 'smem constant byte address 0x4 - core index']
  #allocation1 [shape = 'u32[144,128]{1,0:T(1,128)}', space=vmem, size = 0x12000, scoped, tag = 'internal scratch']
  %s0 = inlined_call_operand.vmem [shape: bf16[4,2,9,9,128], index: 0, kind: input, shape index: {}]
  %s1 = inlined_call_operand.vmem [shape: bf16[3,384,128], index: 1, kind: input, shape index: {}]
  %s2 = inlined_call_operand.vmem [shape: f32[1,128], index: 2, kind: input, shape index: {}]
  %s3 = inlined_call_operand.vmem [shape: bf16[128,128], index: 3, kind: input, shape index: {}]
  %s4 = inlined_call_operand.vmem [shape: f32[1,128], index: 4, kind: input, shape index: {}]
  %s5 = inlined_call_operand.vmem [shape: bf16[2,8,8,4], index: 5, kind: input, shape index: {}]
  %s6 = inlined_call_operand.vmem [shape: bf16[4,128], index: 6, kind: input, shape index: {}]
  %s7 = inlined_call_operand.vmem [shape: f32[1,128], index: 7, kind: input, shape index: {}]
  %s8 = inlined_call_operand.vmem [shape: f32[2,8,8,128], index: 8, kind: output, shape index: {}]
  %s9 = sld [smem:[#allocation0]]
  $region106: #{bottleneck_forward.3} parent=0
    _
  %s11 = ssub.s32 1, %s9
  %s12 = scalar_select 0, %s11, %s9
  $region1: #{bottleneck_forward.3} parent=0
    #allocation2 [shape = 'u8[294912]{0}', space=vmem, size = 0x48000, scoped, tag = 'input window, operand 0']
    loop: start=0, step=1, limit=4
    $region2: #{bottleneck_forward.3} parent=1 // loop_pre_header
      _
    $region3: #{bottleneck_forward.3} parent=1 // loop_header
      %s14 = sphi 0, %s18
      %p15 = scmp.ge.s32.totalorder %s14, 4
      %s21 = sphi 0, %s33
      %s22 = sphi 0, %s29
      %s23 = sphi 0, %s21
      %s24 = sphi 0, %s22
      %s25 = sphi 0, %s23
      %s26 = sphi 0, %s24
      %s36 = sphi 0, %s38
      %s39 = sphi 0, %s36
      %s40 = sphi 0, %s39
      %s56 = sphi 0, %s40
      %s60 = sphi 0, %s60
      %s62 = sphi 0, %s60
      %s63 = sphi 0, %s62
      %s77 = sphi 0, %s63
      %s81 = sphi 0, %s81
      %s83 = sphi 0, %s81
      %s84 = sphi 0, %s83
      %s98 = sphi 0, %s84
      %s102 = sphi 0, %s102
      %s104 = sphi 0, %s102
      %s105 = sphi 0, %s104
      %s119 = sphi 0, %s105
      %s123 = sphi 0, %s123
      %s125 = sphi 0, %s123
      %s126 = sphi 0, %s125
      %s140 = sphi 0, %s126
      %s148 = sphi 0, %s150
      %s151 = sphi 0, %s148
      %s152 = sphi 0, %s151
      %s168 = sphi 0, %s152
      %s172 = sphi 0, %s172
      %s174 = sphi 0, %s172
      %s175 = sphi 0, %s174
      %s189 = sphi 0, %s175
      %s193 = sphi 0, %s193
      %s195 = sphi 0, %s193
      %s196 = sphi 0, %s195
      %s210 = sphi 0, %s196
      %s218 = sphi 0, %s220
      %s221 = sphi 0, %s218
      %s222 = sphi 0, %s221
      %s238 = sphi 0, %s222
    $region4: #{bottleneck_forward.3} parent=1 // loop_header_branch
      %17 = sbr.rel (%p15) target = $region8
    $region5: #{bottleneck_forward.3} parent=1 // loop_body
      %s19 = ssub.s32 %s14, 1
      %s20 = ssub.s32 %s14, 2
      %s27 = sadd.s32 1, %s22
      %p28 = scmp.ge.s32.totalorder %s27, 1
      %s29 = scalar_select %p28, 0, %s27
      %s30 = sadd.s32 1, %s21
      %s31 = scalar_select %p28, %s30, %s21
      %p32 = scmp.ge.s32.totalorder %s31, 2
      %s33 = scalar_select %p32, 0, %s31
      %s34 = ssub.s32 %s21, %s33
      %p35 = scmp.eq.s32.totalorder %s34, 0
      %s37 = sadd.s32 %s36, 1
      %s38 = scalar_select %p35, %s36, %s37
      %p41 = pneg %p35
      %p42 = scmp.eq.s32.totalorder %s14, 1
      %p43 = por %p41, %p42
      %p44 = scmp.ne.s32.totalorder %s36, %s39
      %p45 = scmp.eq.s32.totalorder %s14, 0
      %p46 = por %p44, %p45
      %p47 = scmp.ne.s32.totalorder %s36, %s39
      %p48 = scmp.eq.s32.totalorder %s19, 1
      %p49 = por %p47, %p48
      %p50 = scmp.ne.s32.totalorder %s39, %s40
      %p51 = scmp.eq.s32.totalorder %s19, 0
      %p52 = por %p50, %p51
      %p53 = scmp.ne.s32.totalorder %s39, %s40
      %p54 = scmp.eq.s32.totalorder %s20, 1
      %p55 = por %p53, %p54
      %p57 = scmp.ne.s32.totalorder %s40, %s56
      %p58 = scmp.eq.s32.totalorder %s20, 0
      %p59 = por %p57, %p58
      %s61 = sadd.s32 %s60, 1
      %p64 = scmp.eq.s32.totalorder %s14, 1
      %p65 = scmp.ne.s32.totalorder %s60, %s62
      %p66 = scmp.eq.s32.totalorder %s14, 0
      %p67 = por %p65, %p66
      %p68 = scmp.ne.s32.totalorder %s60, %s62
      %p69 = scmp.eq.s32.totalorder %s19, 1
      %p70 = por %p68, %p69
      %p71 = scmp.ne.s32.totalorder %s62, %s63
      %p72 = scmp.eq.s32.totalorder %s19, 0
      %p73 = por %p71, %p72
      %p74 = scmp.ne.s32.totalorder %s62, %s63
      %p75 = scmp.eq.s32.totalorder %s20, 1
      %p76 = por %p74, %p75
      %p78 = scmp.ne.s32.totalorder %s63, %s77
      %p79 = scmp.eq.s32.totalorder %s20, 0
      %p80 = por %p78, %p79
      %s82 = sadd.s32 %s81, 1
      %p85 = scmp.eq.s32.totalorder %s14, 1
      %p86 = scmp.ne.s32.totalorder %s81, %s83
      %p87 = scmp.eq.s32.totalorder %s14, 0
      %p88 = por %p86, %p87
      %p89 = scmp.ne.s32.totalorder %s81, %s83
      %p90 = scmp.eq.s32.totalorder %s19, 1
      %p91 = por %p89, %p90
      %p92 = scmp.ne.s32.totalorder %s83, %s84
      %p93 = scmp.eq.s32.totalorder %s19, 0
      %p94 = por %p92, %p93
      %p95 = scmp.ne.s32.totalorder %s83, %s84
      %p96 = scmp.eq.s32.totalorder %s20, 1
      %p97 = por %p95, %p96
      %p99 = scmp.ne.s32.totalorder %s84, %s98
      %p100 = scmp.eq.s32.totalorder %s20, 0
      %p101 = por %p99, %p100
      %s103 = sadd.s32 %s102, 1
      %p106 = scmp.eq.s32.totalorder %s14, 1
      %p107 = scmp.ne.s32.totalorder %s102, %s104
      %p108 = scmp.eq.s32.totalorder %s14, 0
      %p109 = por %p107, %p108
      %p110 = scmp.ne.s32.totalorder %s102, %s104
      %p111 = scmp.eq.s32.totalorder %s19, 1
      %p112 = por %p110, %p111
      %p113 = scmp.ne.s32.totalorder %s104, %s105
      %p114 = scmp.eq.s32.totalorder %s19, 0
      %p115 = por %p113, %p114
      %p116 = scmp.ne.s32.totalorder %s104, %s105
      %p117 = scmp.eq.s32.totalorder %s20, 1
      %p118 = por %p116, %p117
      %p120 = scmp.ne.s32.totalorder %s105, %s119
      %p121 = scmp.eq.s32.totalorder %s20, 0
      %p122 = por %p120, %p121
      %s124 = sadd.s32 %s123, 1
      %p127 = scmp.eq.s32.totalorder %s14, 1
      %p128 = scmp.ne.s32.totalorder %s123, %s125
      %p129 = scmp.eq.s32.totalorder %s14, 0
      %p130 = por %p128, %p129
      %p131 = scmp.ne.s32.totalorder %s123, %s125
      %p132 = scmp.eq.s32.totalorder %s19, 1
      %p133 = por %p131, %p132
      %p134 = scmp.ne.s32.totalorder %s125, %s126
      %p135 = scmp.eq.s32.totalorder %s19, 0
      %p136 = por %p134, %p135
      %p137 = scmp.ne.s32.totalorder %s125, %s126
      %p138 = scmp.eq.s32.totalorder %s20, 1
      %p139 = por %p137, %p138
      %p141 = scmp.ne.s32.totalorder %s126, %s140
      %p142 = scmp.eq.s32.totalorder %s20, 0
      %p143 = por %p141, %p142
      %s144 = ssub.s32 %s21, %s33
      %s145 = ssub.s32 %s22, %s29
      %s146 = sor.u32 %s144, %s145
      %p147 = scmp.eq.s32.totalorder %s146, 0
      %s149 = sadd.s32 %s148, 1
      %s150 = scalar_select %p147, %s148, %s149
      %p153 = pneg %p147
      %p154 = scmp.eq.s32.totalorder %s14, 1
      %p155 = por %p153, %p154
      %p156 = scmp.ne.s32.totalorder %s148, %s151
      %p157 = scmp.eq.s32.totalorder %s14, 0
      %p158 = por %p156, %p157
      %p159 = scmp.ne.s32.totalorder %s148, %s151
      %p160 = scmp.eq.s32.totalorder %s19, 1
      %p161 = por %p159, %p160
      %p162 = scmp.ne.s32.totalorder %s151, %s152
      %p163 = scmp.eq.s32.totalorder %s19, 0
      %p164 = por %p162, %p163
      %p165 = scmp.ne.s32.totalorder %s151, %s152
      %p166 = scmp.eq.s32.totalorder %s20, 1
      %p167 = por %p165, %p166
      %p169 = scmp.ne.s32.totalorder %s152, %s168
      %p170 = scmp.eq.s32.totalorder %s20, 0
      %p171 = por %p169, %p170
      %s173 = sadd.s32 %s172, 1
      %p176 = scmp.eq.s32.totalorder %s14, 1
      %p177 = scmp.ne.s32.totalorder %s172, %s174
      %p178 = scmp.eq.s32.totalorder %s14, 0
      %p179 = por %p177, %p178
      %p180 = scmp.ne.s32.totalorder %s172, %s174
      %p181 = scmp.eq.s32.totalorder %s19, 1
      %p182 = por %p180, %p181
      %p183 = scmp.ne.s32.totalorder %s174, %s175
      %p184 = scmp.eq.s32.totalorder %s19, 0
      %p185 = por %p183, %p184
      %p186 = scmp.ne.s32.totalorder %s174, %s175
      %p187 = scmp.eq.s32.totalorder %s20, 1
      %p188 = por %p186, %p187
      %p190 = scmp.ne.s32.totalorder %s175, %s189
      %p191 = scmp.eq.s32.totalorder %s20, 0
      %p192 = por %p190, %p191
      %s194 = sadd.s32 %s193, 1
      %p197 = scmp.eq.s32.totalorder %s14, 1
      %p198 = scmp.ne.s32.totalorder %s193, %s195
      %p199 = scmp.eq.s32.totalorder %s14, 0
      %p200 = por %p198, %p199
      %p201 = scmp.ne.s32.totalorder %s193, %s195
      %p202 = scmp.eq.s32.totalorder %s19, 1
      %p203 = por %p201, %p202
      %p204 = scmp.ne.s32.totalorder %s195, %s196
      %p205 = scmp.eq.s32.totalorder %s19, 0
      %p206 = por %p204, %p205
      %p207 = scmp.ne.s32.totalorder %s195, %s196
      %p208 = scmp.eq.s32.totalorder %s20, 1
      %p209 = por %p207, %p208
      %p211 = scmp.ne.s32.totalorder %s196, %s210
      %p212 = scmp.eq.s32.totalorder %s20, 0
      %p213 = por %p211, %p212
      %s214 = ssub.s32 %s21, %s33
      %s215 = ssub.s32 %s22, %s29
      %s216 = sor.u32 %s214, %s215
      %p217 = scmp.eq.s32.totalorder %s216, 0
      %s219 = sadd.s32 %s218, 1
      %s220 = scalar_select %p217, %s218, %s219
      %p223 = pneg %p217
      %p224 = scmp.eq.s32.totalorder %s14, 1
      %p225 = por %p223, %p224
      %p226 = scmp.ne.s32.totalorder %s218, %s221
      %p227 = scmp.eq.s32.totalorder %s14, 0
      %p228 = por %p226, %p227
      %p229 = scmp.ne.s32.totalorder %s218, %s221
      %p230 = scmp.eq.s32.totalorder %s19, 1
      %p231 = por %p229, %p230
      %p232 = scmp.ne.s32.totalorder %s221, %s222
      %p233 = scmp.eq.s32.totalorder %s19, 0
      %p234 = por %p232, %p233
      %p235 = scmp.ne.s32.totalorder %s221, %s222
      %p236 = scmp.eq.s32.totalorder %s20, 1
      %p237 = por %p235, %p236
      %p239 = scmp.ne.s32.totalorder %s222, %s238
      %p240 = scmp.eq.s32.totalorder %s20, 0
      %p241 = por %p239, %p240
      %p242 = scmp.le.s32.totalorder 1, %s14
      %p243 = scmp.lt.s32.totalorder %s14, 3
      %p244 = pnand %p242, %p243
      %p245 = pneg %p244
      // Predicated region
      $region9: #{bottleneck_forward.3} parent=5 // pred_check
        _
      $region10: #{bottleneck_forward.3} parent=5 // pred_check_branch
        %247 = sbr.rel (%p244) target = $region12
      $region11: #{bottleneck_forward.3} parent=5 // pred_region
        %s248 = ssub.s32 %s14, 1
        // Predicated region
        $region13: #{bottleneck_forward.3} parent=11 // pred_check
          %p249 = pneg %p73
        $region14: #{bottleneck_forward.3} parent=11 // pred_check_branch
          %251 = sbr.rel (%p249) target = $region16
        $region15: #{bottleneck_forward.3} parent=11 // pred_region
          _
        $region16: #{bottleneck_forward.3} parent=11 // pred_fallthru
          _
        // Predicated region
        $region17: #{bottleneck_forward.3} parent=11 // pred_check
          %p252 = pneg %p94
        $region18: #{bottleneck_forward.3} parent=11 // pred_check_branch
          %254 = sbr.rel (%p252) target = $region20
        $region19: #{bottleneck_forward.3} parent=11 // pred_region
          _
        $region20: #{bottleneck_forward.3} parent=11 // pred_fallthru
          _
        // Predicated region
        $region21: #{bottleneck_forward.3} parent=11 // pred_check
          %p255 = pneg %p115
        $region22: #{bottleneck_forward.3} parent=11 // pred_check_branch
          %257 = sbr.rel (%p255) target = $region24
        $region23: #{bottleneck_forward.3} parent=11 // pred_region
          _
        $region24: #{bottleneck_forward.3} parent=11 // pred_fallthru
          _
        // Predicated region
        $region25: #{bottleneck_forward.3} parent=11 // pred_check
          %p258 = pneg %p136
        $region26: #{bottleneck_forward.3} parent=11 // pred_check_branch
          %260 = sbr.rel (%p258) target = $region28
        $region27: #{bottleneck_forward.3} parent=11 // pred_region
          _
        $region28: #{bottleneck_forward.3} parent=11 // pred_fallthru
          _
        // Predicated region
        $region29: #{bottleneck_forward.3} parent=11 // pred_check
          %p261 = pneg %p185
        $region30: #{bottleneck_forward.3} parent=11 // pred_check_branch
          %263 = sbr.rel (%p261) target = $region32
        $region31: #{bottleneck_forward.3} parent=11 // pred_region
          _
        $region32: #{bottleneck_forward.3} parent=11 // pred_fallthru
          _
        // Predicated region
        $region33: #{bottleneck_forward.3} parent=11 // pred_check
          %p264 = pneg %p206
        $region34: #{bottleneck_forward.3} parent=11 // pred_check_branch
          %266 = sbr.rel (%p264) target = $region36
        $region35: #{bottleneck_forward.3} parent=11 // pred_region
          _
        $region36: #{bottleneck_forward.3} parent=11 // pred_fallthru
          _
      $region12: #{bottleneck_forward.3} parent=5 // pred_fallthru
        _
      %p267 = scmp.lt.s32.totalorder %s14, 2
      // Predicated region
      $region37: #{bottleneck_forward.3} parent=5 // pred_check
        %p268 = pneg %p267
      $region38: #{bottleneck_forward.3} parent=5 // pred_check_branch
        %270 = sbr.rel (%p268) target = $region40
      $region39: #{bottleneck_forward.3} parent=5 // pred_region
        // Predicated region
        $region41: #{bottleneck_forward.3} parent=39 // pred_check
          %p271 = pneg %p46
        $region42: #{bottleneck_forward.3} parent=39 // pred_check_branch
          %273 = sbr.rel (%p271) target = $region44
        $region43: #{bottleneck_forward.3} parent=39 // pred_region
          %s274 = sand.u32 %s36, 1
          %s275 = sand.u32 %s36, 1
          %s276 = smul.addr %s275, 288
          %s277 = scalar_lea.vmem [#allocation2], %s276
          %s278 = smul.addr %s21, 18
          %s279 = smul.addr %s278, 4
          %s280 = scalar_lea.vmem %s0, %s279
          // Predicated region
          $region45: #{bottleneck_forward.3} parent=43 // pred_check
            _
          $region46: #{bottleneck_forward.3} parent=43 // pred_check_branch
            %282 = sbr.rel (0) target = $region48
          $region47: #{bottleneck_forward.3} parent=43 // pred_region
            // Predicated region
            $region49: #{bottleneck_forward.3} parent=47 // pred_check
              _
            $region50: #{bottleneck_forward.3} parent=47 // pred_check_branch
              %284 = sbr.rel target = $region52
            $region51: #{bottleneck_forward.3} parent=47 // pred_region
              // Predicated region
              $region64: #{bottleneck_forward.3} parent=51 // pred_check
                _
              $region65: #{bottleneck_forward.3} parent=51 // pred_check_branch
                %441 = sbr.rel (0) target = $region67
              $region66: #{bottleneck_forward.3} parent=51 // pred_region
                loop: start=0, step=1, limit=1
                $region68: #{bottleneck_forward.3} parent=66 // loop_pre_header
                  _
                $region69: #{bottleneck_forward.3} parent=66 // loop_header
                  %s443 = sphi 0, %s447
                  %p444 = scmp.ge.s32.totalorder %s443, 1
                  %s448 = sphi %s280, %s280
                  %s449 = sphi %s277, %s277
                $region70: #{bottleneck_forward.3} parent=66 // loop_header_branch
                  %446 = sbr.rel (%p444) target = $region74
                $region71: #{bottleneck_forward.3} parent=66 // loop_body
                  _
                $region72: #{bottleneck_forward.3} parent=66 // loop_footer
                  %s447 = sadd.s32 1, %s443
                $region73: #{bottleneck_forward.3} parent=66 // loop_footer_branch
                  %442 = sbr.rel target = $region69
                $region74: #{bottleneck_forward.3} parent=66 // loop_exit
                  _
                loop: start=0, step=1, limit=1
                $region75: #{bottleneck_forward.3} parent=66 // loop_pre_header
                  _
                $region76: #{bottleneck_forward.3} parent=66 // loop_header
                  %s452 = sphi 0, %s456
                  %p453 = scmp.ge.s32.totalorder %s452, 1
                  %s457 = sphi %s280, %s280
                  %s458 = sphi %s277, %s277
                $region77: #{bottleneck_forward.3} parent=66 // loop_header_branch
                  %455 = sbr.rel (%p453) target = $region81
                $region78: #{bottleneck_forward.3} parent=66 // loop_body
                  %v459 = vld [vmem:[%s457] sm:$0xf]
                  %460 = vst [vmem:[%s458] sm:$0xf] %v459
                  %v461 = vld [vmem:[%s457 + $0x4] sm:$0xf]
                  %462 = vst [vmem:[%s458 + $0x4] sm:$0xf] %v461
                  %v463 = vld [vmem:[%s457 + $0x8] sm:$0xf]
                  %464 = vst [vmem:[%s458 + $0x8] sm:$0xf] %v463
                  %v465 = vld [vmem:[%s457 + $0xc] sm:$0xf]
                  %466 = vst [vmem:[%s458 + $0xc] sm:$0xf] %v465
                  %v467 = vld [vmem:[%s457 + $0x10] sm:$0xf]
                  %468 = vst [vmem:[%s458 + $0x10] sm:$0xf] %v467
                  %v469 = vld [vmem:[%s457 + $0x14] sm:$0xf]
                  %470 = vst [vmem:[%s458 + $0x14] sm:$0xf] %v469
                  %v471 = vld [vmem:[%s457 + $0x18] sm:$0xf]
                  %472 = vst [vmem:[%s458 + $0x18] sm:$0xf] %v471
                  %v473 = vld [vmem:[%s457 + $0x1c] sm:$0xf]
                  %474 = vst [vmem:[%s458 + $0x1c] sm:$0xf] %v473
                  %v475 = vld [vmem:[%s457 + $0x20] sm:$0xf]
                  %476 = vst [vmem:[%s458 + $0x20] sm:$0xf] %v475
                  %v477 = vld [vmem:[%s457 + $0x24] sm:$0xf]
                  %478 = vst [vmem:[%s458 + $0x24] sm:$0xf] %v477
                  %v479 = vld [vmem:[%s457 + $0x28] sm:$0xf]
                  %480 = vst [vmem:[%s458 + $0x28] sm:$0xf] %v479
                  %v481 = vld [vmem:[%s457 + $0x2c] sm:$0xf]
                  %482 = vst [vmem:[%s458 + $0x2c] sm:$0xf] %v481
                  %v483 = vld [vmem:[%s457 + $0x30] sm:$0xf]
                  %484 = vst [vmem:[%s458 + $0x30] sm:$0xf] %v483
                  %v485 = vld [vmem:[%s457 + $0x34] sm:$0xf]
                  %486 = vst [vmem:[%s458 + $0x34] sm:$0xf] %v485
                  %v487 = vld [vmem:[%s457 + $0x38] sm:$0xf]
                  %488 = vst [vmem:[%s458 + $0x38] sm:$0xf] %v487
                  %v489 = vld [vmem:[%s457 + $0x3c] sm:$0xf]
                  %490 = vst [vmem:[%s458 + $0x3c] sm:$0xf] %v489
                  %v491 = vld [vmem:[%s457 + $0x40] sm:$0xf]
                  %492 = vst [vmem:[%s458 + $0x40] sm:$0xf] %v491
                  %v493 = vld [vmem:[%s457 + $0x44] sm:$0xf]
                  %494 = vst [vmem:[%s458 + $0x44] sm:$0xf] %v493
                  %v495 = vld [vmem:[%s457 + $0x90] sm:$0xf]
                  %496 = vst [vmem:[%s458 + $0x48] sm:$0xf] %v495
                  %v497 = vld [vmem:[%s457 + $0x94] sm:$0xf]
                  %498 = vst [vmem:[%s458 + $0x4c] sm:$0xf] %v497
                  %v499 = vld [vmem:[%s457 + $0x98] sm:$0xf]
                  %500 = vst [vmem:[%s458 + $0x50] sm:$0xf] %v499
                  %v501 = vld [vmem:[%s457 + $0x9c] sm:$0xf]
                  %502 = vst [vmem:[%s458 + $0x54] sm:$0xf] %v501
                  %v503 = vld [vmem:[%s457 + $0xa0] sm:$0xf]
                  %504 = vst [vmem:[%s458 + $0x58] sm:$0xf] %v503
                  %v505 = vld [vmem:[%s457 + $0xa4] sm:$0xf]
                  %506 = vst [vmem:[%s458 + $0x5c] sm:$0xf] %v505
                  %v507 = vld [vmem:[%s457 + $0xa8] sm:$0xf]
                  %508 = vst [vmem:[%s458 + $0x60] sm:$0xf] %v507
                  %v509 = vld [vmem:[%s457 + $0xac] sm:$0xf]
                  %510 = vst [vmem:[%s458 + $0x64] sm:$0xf] %v509
                  %v511 = vld [vmem:[%s457 + $0xb0] sm:$0xf]
                  %512 = vst [vmem:[%s458 + $0x68] sm:$0xf] %v511
                  %v513 = vld [vmem:[%s457 + $0xb4] sm:$0xf]
                  %514 = vst [vmem:[%s458 + $0x6c] sm:$0xf] %v513
                  %v515 = vld [vmem:[%s457 + $0xb8] sm:$0xf]
                  %516 = vst [vmem:[%s458 + $0x70] sm:$0xf] %v515
                  %v517 = vld [vmem:[%s457 + $0xbc] sm:$0xf]
                  %518 = vst [vmem:[%s458 + $0x74] sm:$0xf] %v517
                  %v519 = vld [vmem:[%s457 + $0xc0] sm:$0xf]
                  %520 = vst [vmem:[%s458 + $0x78] sm:$0xf] %v519
                  %v521 = vld [vmem:[%s457 + $0xc4] sm:$0xf]
                  %522 = vst [vmem:[%s458 + $0x7c] sm:$0xf] %v521
                  %v523 = vld [vmem:[%s457 + $0xc8] sm:$0xf]
                  %524 = vst [vmem:[%s458 + $0x80] sm:$0xf] %v523
                  %v525 = vld [vmem:[%s457 + $0xcc] sm:$0xf]
                  %526 = vst [vmem:[%s458 + $0x84] sm:$0xf] %v525
                  %v527 = vld [vmem:[%s457 + $0xd0] sm:$0xf]
                  %528 = vst [vmem:[%s458 + $0x88] sm:$0xf] %v527
                  %v529 = vld [vmem:[%s457 + $0xd4] sm:$0xf]
                  %530 = vst [vmem:[%s458 + $0x8c] sm:$0xf] %v529
                  %v531 = vld [vmem:[%s457 + $0x120] sm:$0xf]
                  %532 = vst [vmem:[%s458 + $0x90] sm:$0xf] %v531
                  %v533 = vld [vmem:[%s457 + $0x124] sm:$0xf]
                  %534 = vst [vmem:[%s458 + $0x94] sm:$0xf] %v533
                  %v535 = vld [vmem:[%s457 + $0x128] sm:$0xf]
                  %536 = vst [vmem:[%s458 + $0x98] sm:$0xf] %v535
                  %v537 = vld [vmem:[%s457 + $0x12c] sm:$0xf]
                  %538 = vst [vmem:[%s458 + $0x9c] sm:$0xf] %v537
                  %v539 = vld [vmem:[%s457 + $0x130] sm:$0xf]
                  %540 = vst [vmem:[%s458 + $0xa0] sm:$0xf] %v539
                  %v541 = vld [vmem:[%s457 + $0x134] sm:$0xf]
                  %542 = vst [vmem:[%s458 + $0xa4] sm:$0xf] %v541
                  %v543 = vld [vmem:[%s457 + $0x138] sm:$0xf]
                  %544 = vst [vmem:[%s458 + $0xa8] sm:$0xf] %v543
                  %v545 = vld [vmem:[%s457 + $0x13c] sm:$0xf]
                  %546 = vst [vmem:[%s458 + $0xac] sm:$0xf] %v545
                  %v547 = vld [vmem:[%s457 + $0x140] sm:$0xf]
                  %548 = vst [vmem:[%s458 + $0xb0] sm:$0xf] %v547
                  %v549 = vld [vmem:[%s457 + $0x144] sm:$0xf]
                  %550 = vst [vmem:[%s458 + $0xb4] sm:$0xf] %v549
                  %v551 = vld [vmem:[%s457 + $0x148] sm:$0xf]
                  %552 = vst [vmem:[%s458 + $0xb8] sm:$0xf] %v551
                  %v553 = vld [vmem:[%s457 + $0x14c] sm:$0xf]
                  %554 = vst [vmem:[%s458 + $0xbc] sm:$0xf] %v553
                  %v555 = vld [vmem:[%s457 + $0x150] sm:$0xf]
                  %556 = vst [vmem:[%s458 + $0xc0] sm:$0xf] %v555
                  %v557 = vld [vmem:[%s457 + $0x154] sm:$0xf]
                  %558 = vst [vmem:[%s458 + $0xc4] sm:$0xf] %v557
                  %v559 = vld [vmem:[%s457 + $0x158] sm:$0xf]
                  %560 = vst [vmem:[%s458 + $0xc8] sm:$0xf] %v559
                  %v561 = vld [vmem:[%s457 + $0x15c] sm:$0xf]
                  %562 = vst [vmem:[%s458 + $0xcc] sm:$0xf] %v561
                  %v563 = vld [vmem:[%s457 + $0x160] sm:$0xf]
                  %564 = vst [vmem:[%s458 + $0xd0] sm:$0xf] %v563
                  %v565 = vld [vmem:[%s457 + $0x164] sm:$0xf]
                  %566 = vst [vmem:[%s458 + $0xd4] sm:$0xf] %v565
                  %v567 = vld [vmem:[%s457 + $0x1b0] sm:$0xf]
                  %568 = vst [vmem:[%s458 + $0xd8] sm:$0xf] %v567
                  %v569 = vld [vmem:[%s457 + $0x1b4] sm:$0xf]
                  %570 = vst [vmem:[%s458 + $0xdc] sm:$0xf] %v569
                  %v571 = vld [vmem:[%s457 + $0x1b8] sm:$0xf]
                  %572 = vst [vmem:[%s458 + $0xe0] sm:$0xf] %v571
                  %v573 = vld [vmem:[%s457 + $0x1bc] sm:$0xf]
                  %574 = vst [vmem:[%s458 + $0xe4] sm:$0xf] %v573
                  %v575 = vld [vmem:[%s457 + $0x1c0] sm:$0xf]
                  %576 = vst [vmem:[%s458 + $0xe8] sm:$0xf] %v575
                  %v577 = vld [vmem:[%s457 + $0x1c4] sm:$0xf]
                  %578 = vst [vmem:[%s458 + $0xec] sm:$0xf] %v577
                  %v579 = vld [vmem:[%s457 + $0x1c8] sm:$0xf]
                  %580 = vst [vmem:[%s458 + $0xf0] sm:$0xf] %v579
                  %v581 = vld [vmem:[%s457 + $0x1cc] sm:$0xf]
                  %582 = vst [vmem:[%s458 + $0xf4] sm:$0xf] %v581
                  %v583 = vld [vmem:[%s457 + $0x1d0] sm:$0xf]
                  %584 = vst [vmem:[%s458 + $0xf8] sm:$0xf] %v583
                  %v585 = vld [vmem:[%s457 + $0x1d4] sm:$0xf]
                  %586 = vst [vmem:[%s458 + $0xfc] sm:$0xf] %v585
                  %v587 = vld [vmem:[%s457 + $0x1d8] sm:$0xf]
                  %588 = vst [vmem:[%s458 + $0x100] sm:$0xf] %v587
                  %v589 = vld [vmem:[%s457 + $0x1dc] sm:$0xf]
                  %590 = vst [vmem:[%s458 + $0x104] sm:$0xf] %v589
                  %v591 = vld [vmem:[%s457 + $0x1e0] sm:$0xf]
                  %592 = vst [vmem:[%s458 + $0x108] sm:$0xf] %v591
                  %v593 = vld [vmem:[%s457 + $0x1e4] sm:$0xf]
                  %594 = vst [vmem:[%s458 + $0x10c] sm:$0xf] %v593
                  %v595 = vld [vmem:[%s457 + $0x1e8] sm:$0xf]
                  %596 = vst [vmem:[%s458 + $0x110] sm:$0xf] %v595
                  %v597 = vld [vmem:[%s457 + $0x1ec] sm:$0xf]
                  %598 = vst [vmem:[%s458 + $0x114] sm:$0xf] %v597
                  %v599 = vld [vmem:[%s457 + $0x1f0] sm:$0xf]
                  %600 = vst [vmem:[%s458 + $0x118] sm:$0xf] %v599
                  %v601 = vld [vmem:[%s457 + $0x1f4] sm:$0xf]
                  %602 = vst [vmem:[%s458 + $0x11c] sm:$0xf] %v601
                $region79: #{bottleneck_forward.3} parent=66 // loop_footer
                  %s456 = sadd.s32 1, %s452
                $region80: #{bottleneck_forward.3} parent=66 // loop_footer_branch
                  %451 = sbr.rel target = $region76
                $region81: #{bottleneck_forward.3} parent=66 // loop_exit
                  _
              $region67: #{bottleneck_forward.3} parent=51 // pred_fallthru
                _
            $region52: #{bottleneck_forward.3} parent=47 // pred_fallthru
              _
            // Predicated region
            $region53: #{bottleneck_forward.3} parent=47 // pred_check
              _
            $region54: #{bottleneck_forward.3} parent=47 // pred_check_branch
              %286 = sbr.rel (0) target = $region56
            $region55: #{bottleneck_forward.3} parent=47 // pred_region
              loop: start=0, step=1, limit=1
              $region57: #{bottleneck_forward.3} parent=55 // loop_pre_header
                _
              $region58: #{bottleneck_forward.3} parent=55 // loop_header
                %s289 = sphi 0, %s293
                %p290 = scmp.ge.s32.totalorder %s289, 1
                %s294 = sphi %s280, %s280
                %s295 = sphi %s277, %s277
              $region59: #{bottleneck_forward.3} parent=55 // loop_header_branch
                %292 = sbr.rel (%p290) target = $region63
              $region60: #{bottleneck_forward.3} parent=55 // loop_body
                %v296 = vld [vmem:[%s294] sm:$0xf]
                %297 = vst [vmem:[%s295] sm:$0xf] %v296
                %v298 = vld [vmem:[%s294 + $0x4] sm:$0xf]
                %299 = vst [vmem:[%s295 + $0x4] sm:$0xf] %v298
                %v300 = vld [vmem:[%s294 + $0x8] sm:$0xf]
                %301 = vst [vmem:[%s295 + $0x8] sm:$0xf] %v300
                %v302 = vld [vmem:[%s294 + $0xc] sm:$0xf]
                %303 = vst [vmem:[%s295 + $0xc] sm:$0xf] %v302
                %v304 = vld [vmem:[%s294 + $0x10] sm:$0xf]
                %305 = vst [vmem:[%s295 + $0x10] sm:$0xf] %v304
                %v306 = vld [vmem:[%s294 + $0x14] sm:$0xf]
                %307 = vst [vmem:[%s295 + $0x14] sm:$0xf] %v306
                %v308 = vld [vmem:[%s294 + $0x18] sm:$0xf]
                %309 = vst [vmem:[%s295 + $0x18] sm:$0xf] %v308
                %v310 = vld [vmem:[%s294 + $0x1c] sm:$0xf]
                %311 = vst [vmem:[%s295 + $0x1c] sm:$0xf] %v310
                %v312 = vld [vmem:[%s294 + $0x20] sm:$0xf]
                %313 = vst [vmem:[%s295 + $0x20] sm:$0xf] %v312
                %v314 = vld [vmem:[%s294 + $0x24] sm:$0xf]
                %315 = vst [vmem:[%s295 + $0x24] sm:$0xf] %v314
                %v316 = vld [vmem:[%s294 + $0x28] sm:$0xf]
                %317 = vst [vmem:[%s295 + $0x28] sm:$0xf] %v316
                %v318 = vld [vmem:[%s294 + $0x2c] sm:$0xf]
                %319 = vst [vmem:[%s295 + $0x2c] sm:$0xf] %v318
                %v320 = vld [vmem:[%s294 + $0x30] sm:$0xf]
                %321 = vst [vmem:[%s295 + $0x30] sm:$0xf] %v320
                %v322 = vld [vmem:[%s294 + $0x34] sm:$0xf]
                %323 = vst [vmem:[%s295 + $0x34] sm:$0xf] %v322
                %v324 = vld [vmem:[%s294 + $0x38] sm:$0xf]
                %325 = vst [vmem:[%s295 + $0x38] sm:$0xf] %v324
                %v326 = vld [vmem:[%s294 + $0x3c] sm:$0xf]
                %327 = vst [vmem:[%s295 + $0x3c] sm:$0xf] %v326
                %v328 = vld [vmem:[%s294 + $0x40] sm:$0xf]
                %329 = vst [vmem:[%s295 + $0x40] sm:$0xf] %v328
                %v330 = vld [vmem:[%s294 + $0x44] sm:$0xf]
                %331 = vst [vmem:[%s295 + $0x44] sm:$0xf] %v330
                %v332 = vld [vmem:[%s294 + $0x90] sm:$0xf]
                %333 = vst [vmem:[%s295 + $0x48] sm:$0xf] %v332
                %v334 = vld [vmem:[%s294 + $0x94] sm:$0xf]
                %335 = vst [vmem:[%s295 + $0x4c] sm:$0xf] %v334
                %v336 = vld [vmem:[%s294 + $0x98] sm:$0xf]
                %337 = vst [vmem:[%s295 + $0x50] sm:$0xf] %v336
                %v338 = vld [vmem:[%s294 + $0x9c] sm:$0xf]
                %339 = vst [vmem:[%s295 + $0x54] sm:$0xf] %v338
                %v340 = vld [vmem:[%s294 + $0xa0] sm:$0xf]
                %341 = vst [vmem:[%s295 + $0x58] sm:$0xf] %v340
                %v342 = vld [vmem:[%s294 + $0xa4] sm:$0xf]
                %343 = vst [vmem:[%s295 + $0x5c] sm:$0xf] %v342
                %v344 = vld [vmem:[%s294 + $0xa8] sm:$0xf]
                %345 = vst [vmem:[%s295 + $0x60] sm:$0xf] %v344
                %v346 = vld [vmem:[%s294 + $0xac] sm:$0xf]
                %347 = vst [vmem:[%s295 + $0x64] sm:$0xf] %v346
                %v348 = vld [vmem:[%s294 + $0xb0] sm:$0xf]
                %349 = vst [vmem:[%s295 + $0x68] sm:$0xf] %v348
                %v350 = vld [vmem:[%s294 + $0xb4] sm:$0xf]
                %351 = vst [vmem:[%s295 + $0x6c] sm:$0xf] %v350
                %v352 = vld [vmem:[%s294 + $0xb8] sm:$0xf]
                %353 = vst [vmem:[%s295 + $0x70] sm:$0xf] %v352
                %v354 = vld [vmem:[%s294 + $0xbc] sm:$0xf]
                %355 = vst [vmem:[%s295 + $0x74] sm:$0xf] %v354
                %v356 = vld [vmem:[%s294 + $0xc0] sm:$0xf]
                %357 = vst [vmem:[%s295 + $0x78] sm:$0xf] %v356
                %v358 = vld [vmem:[%s294 + $0xc4] sm:$0xf]
                %359 = vst [vmem:[%s295 + $0x7c] sm:$0xf] %v358
                %v360 = vld [vmem:[%s294 + $0xc8] sm:$0xf]
                %361 = vst [vmem:[%s295 + $0x80] sm:$0xf] %v360
                %v362 = vld [vmem:[%s294 + $0xcc] sm:$0xf]
                %363 = vst [vmem:[%s295 + $0x84] sm:$0xf] %v362
                %v364 = vld [vmem:[%s294 + $0xd0] sm:$0xf]
                %365 = vst [vmem:[%s295 + $0x88] sm:$0xf] %v364
                %v366 = vld [vmem:[%s294 + $0xd4] sm:$0xf]
                %367 = vst [vmem:[%s295 + $0x8c] sm:$0xf] %v366
                %v368 = vld [vmem:[%s294 + $0x120] sm:$0xf]
                %369 = vst [vmem:[%s295 + $0x90] sm:$0xf] %v368
                %v370 = vld [vmem:[%s294 + $0x124] sm:$0xf]
                %371 = vst [vmem:[%s295 + $0x94] sm:$0xf] %v370
                %v372 = vld [vmem:[%s294 + $0x128] sm:$0xf]
                %373 = vst [vmem:[%s295 + $0x98] sm:$0xf] %v372
                %v374 = vld [vmem:[%s294 + $0x12c] sm:$0xf]
                %375 = vst [vmem:[%s295 + $0x9c] sm:$0xf] %v374
                %v376 = vld [vmem:[%s294 + $0x130] sm:$0xf]
                %377 = vst [vmem:[%s295 + $0xa0] sm:$0xf] %v376
                %v378 = vld [vmem:[%s294 + $0x134] sm:$0xf]
                %379 = vst [vmem:[%s295 + $0xa4] sm:$0xf] %v378
                %v380 = vld [vmem:[%s294 + $0x138] sm:$0xf]
                %381 = vst [vmem:[%s295 + $0xa8] sm:$0xf] %v380
                %v382 = vld [vmem:[%s294 + $0x13c] sm:$0xf]
                %383 = vst [vmem:[%s295 + $0xac] sm:$0xf] %v382
                %v384 = vld [vmem:[%s294 + $0x140] sm:$0xf]
                %385 = vst [vmem:[%s295 + $0xb0] sm:$0xf] %v384
                %v386 = vld [vmem:[%s294 + $0x144] sm:$0xf]
                %387 = vst [vmem:[%s295 + $0xb4] sm:$0xf] %v386
                %v388 = vld [vmem:[%s294 + $0x148] sm:$0xf]
                %389 = vst [vmem:[%s295 + $0xb8] sm:$0xf] %v388
                %v390 = vld [vmem:[%s294 + $0x14c] sm:$0xf]
                %391 = vst [vmem:[%s295 + $0xbc] sm:$0xf] %v390
                %v392 = vld [vmem:[%s294 + $0x150] sm:$0xf]
                %393 = vst [vmem:[%s295 + $0xc0] sm:$0xf] %v392
                %v394 = vld [vmem:[%s294 + $0x154] sm:$0xf]
                %395 = vst [vmem:[%s295 + $0xc4] sm:$0xf] %v394
                %v396 = vld [vmem:[%s294 + $0x158] sm:$0xf]
                %397 = vst [vmem:[%s295 + $0xc8] sm:$0xf] %v396
                %v398 = vld [vmem:[%s294 + $0x15c] sm:$0xf]
                %399 = vst [vmem:[%s295 + $0xcc] sm:$0xf] %v398
                %v400 = vld [vmem:[%s294 + $0x160] sm:$0xf]
                %401 = vst [vmem:[%s295 + $0xd0] sm:$0xf] %v400
                %v402 = vld [vmem:[%s294 + $0x164] sm:$0xf]
                %403 = vst [vmem:[%s295 + $0xd4] sm:$0xf] %v402
                %v404 = vld [vmem:[%s294 + $0x1b0] sm:$0xf]
                %405 = vst [vmem:[%s295 + $0xd8] sm:$0xf] %v404
                %v406 = vld [vmem:[%s294 + $0x1b4] sm:$0xf]
                %407 = vst [vmem:[%s295 + $0xdc] sm:$0xf] %v406
                %v408 = vld [vmem:[%s294 + $0x1b8] sm:$0xf]
                %409 = vst [vmem:[%s295 + $0xe0] sm:$0xf] %v408
                %v410 = vld [vmem:[%s294 + $0x1bc] sm:$0xf]
                %411 = vst [vmem:[%s295 + $0xe4] sm:$0xf] %v410
                %v412 = vld [vmem:[%s294 + $0x1c0] sm:$0xf]
                %413 = vst [vmem:[%s295 + $0xe8] sm:$0xf] %v412
                %v414 = vld [vmem:[%s294 + $0x1c4] sm:$0xf]
                %415 = vst [vmem:[%s295 + $0xec] sm:$0xf] %v414
                %v416 = vld [vmem:[%s294 + $0x1c8] sm:$0xf]
                %417 = vst [vmem:[%s295 + $0xf0] sm:$0xf] %v416
                %v418 = vld [vmem:[%s294 + $0x1cc] sm:$0xf]
                %419 = vst [vmem:[%s295 + $0xf4] sm:$0xf] %v418
                %v420 = vld [vmem:[%s294 + $0x1d0] sm:$0xf]
                %421 = vst [vmem:[%s295 + $0xf8] sm:$0xf] %v420
                %v422 = vld [vmem:[%s294 + $0x1d4] sm:$0xf]
                %423 = vst [vmem:[%s295 + $0xfc] sm:$0xf] %v422
                %v424 = vld [vmem:[%s294 + $0x1d8] sm:$0xf]
                %425 = vst [vmem:[%s295 + $0x100] sm:$0xf] %v424
                %v426 = vld [vmem:[%s294 + $0x1dc] sm:$0xf]
                %427 = vst [vmem:[%s295 + $0x104] sm:$0xf] %v426
                %v428 = vld [vmem:[%s294 + $0x1e0] sm:$0xf]
                %429 = vst [vmem:[%s295 + $0x108] sm:$0xf] %v428
                %v430 = vld [vmem:[%s294 + $0x1e4] sm:$0xf]
                %431 = vst [vmem:[%s295 + $0x10c] sm:$0xf] %v430
                %v432 = vld [vmem:[%s294 + $0x1e8] sm:$0xf]
                %433 = vst [vmem:[%s295 + $0x110] sm:$0xf] %v432
                %v434 = vld [vmem:[%s294 + $0x1ec] sm:$0xf]
                %435 = vst [vmem:[%s295 + $0x114] sm:$0xf] %v434
                %v436 = vld [vmem:[%s294 + $0x1f0] sm:$0xf]
                %437 = vst [vmem:[%s295 + $0x118] sm:$0xf] %v436
                %v438 = vld [vmem:[%s294 + $0x1f4] sm:$0xf]
                %439 = vst [vmem:[%s295 + $0x11c] sm:$0xf] %v438
              $region61: #{bottleneck_forward.3} parent=55 // loop_footer
                %s293 = sadd.s32 1, %s289
              $region62: #{bottleneck_forward.3} parent=55 // loop_footer_branch
                %288 = sbr.rel target = $region58
              $region63: #{bottleneck_forward.3} parent=55 // loop_exit
                _
            $region56: #{bottleneck_forward.3} parent=47 // pred_fallthru
              _
          $region48: #{bottleneck_forward.3} parent=43 // pred_fallthru
            _
          %603 = vnop
        $region44: #{bottleneck_forward.3} parent=39 // pred_fallthru
          _
        // Predicated region
        $region82: #{bottleneck_forward.3} parent=39 // pred_check
          %p604 = pneg %p158
        $region83: #{bottleneck_forward.3} parent=39 // pred_check_branch
          %606 = sbr.rel (%p604) target = $region85
        $region84: #{bottleneck_forward.3} parent=39 // pred_region
          %s607 = smul.u32 8, %s22
          %p608 = scmp.lt.s32.totalorder %s21, 1
          %s609 = scalar_select %p608, %s21, 1
          %p610 = scmp.lt.s32.totalorder %s607, 7
          %s611 = scalar_select %p610, %s607, 7
          %s612 = smul.addr %s609, 8
          %s613 = sadd.s32 %s611, %s612
          %s614 = smul.addr %s613, 4
          %s615 = scalar_lea.vmem %s5, %s614
          %s616 = smul.u32 8, %s22
        $region85: #{bottleneck_forward.3} parent=39 // pred_fallthru
          _
      $region40: #{bottleneck_forward.3} parent=5 // pred_fallthru
        _
      %p617 = scmp.le.s32.totalorder 1, %s14
      %p618 = scmp.lt.s32.totalorder %s14, 3
      %p619 = pnand %p617, %p618
      %p620 = pneg %p619
      // Predicated region
      $region86: #{bottleneck_forward.3} parent=5 // pred_check
        _
      $region87: #{bottleneck_forward.3} parent=5 // pred_check_branch
        %622 = sbr.rel (%p619) target = $region89
      $region88: #{bottleneck_forward.3} parent=5 // pred_region
        %s623 = ssub.s32 %s14, 1
        %s624 = sand.u32 %s39, 1
        %s625 = sand.u32 %s39, 1
        %s626 = smul.addr %s625, 288
        %s627 = scalar_lea.vmem [#allocation2], %s626
        // Predicated region
        $region90: #{bottleneck_forward.3} parent=88 // pred_check
          %p628 = pneg %p52
        $region91: #{bottleneck_forward.3} parent=88 // pred_check_branch
          %630 = sbr.rel (%p628) target = $region93
        $region92: #{bottleneck_forward.3} parent=88 // pred_region
          _
        $region93: #{bottleneck_forward.3} parent=88 // pred_fallthru
          _
        %s631 = sand.u32 %s39, 1
        %s632 = sand.u32 %s39, 1
        %s633 = smul.addr %s632, 288
        %s634 = scalar_lea.vmem [#allocation2], %s633
        %p635 = pneg %p52
        %p636 = pneg %p49
        %p637 = pneg %p73
        %p638 = pneg %p70
        %p639 = pneg %p94
        %p640 = pneg %p91
        %p641 = pneg %p115
        %p642 = pneg %p112
        %p643 = pneg %p136
        %p644 = pneg %p133
        %s645 = smul.u32 8, %s24
        %p646 = scmp.lt.s32.totalorder %s23, 1
        %s647 = scalar_select %p646, %s23, 1
        %p648 = scmp.lt.s32.totalorder %s645, 7
        %s649 = scalar_select %p648, %s645, 7
        %s650 = smul.addr %s647, 8
        %s651 = sadd.s32 %s649, %s650
        %s652 = smul.addr %s651, 4
        %s653 = scalar_lea.vmem %s5, %s652
        %p654 = pneg %p164
        %p655 = pneg %p161
        %p656 = pneg %p185
        %p657 = pneg %p182
        %p658 = pneg %p206
        %p659 = pneg %p203
        %p660 = pneg %p234
        %p661 = pneg %p231
        %s662 = smul.u32 8, %s24
        %p663 = scmp.lt.s32.totalorder %s23, 1
        %s664 = scalar_select %p663, %s23, 1
        %p665 = scmp.lt.s32.totalorder %s662, 7
        %s666 = scalar_select %p665, %s662, 7
        %s667 = smul.addr %s664, 8
        %s668 = sadd.s32 %s666, %s667
        %s669 = smul.addr %s668, 8
        %s670 = scalar_lea.vmem %s8, %s669
        %s671 = smul.u32 8, %s24
        %p672 = scmp.lt.s32.totalorder %s23, 1
        %s673 = scalar_select %p672, %s23, 1
        %p674 = scmp.lt.s32.totalorder %s671, 7
        %s675 = scalar_select %p674, %s671, 7
        %s676 = smul.addr %s673, 8
        %s677 = sadd.s32 %s675, %s676
        %s678 = smul.addr %s677, 4
        %s679 = scalar_lea.vmem %s5, %s678
        %s680 = smul.u32 8, %s24
        %s681 = smul.u32 8, %s24
        %p682 = scmp.lt.s32.totalorder %s23, 1
        %s683 = scalar_select %p682, %s23, 1
        %p684 = scmp.lt.s32.totalorder %s681, 7
        %s685 = scalar_select %p684, %s681, 7
        %s686 = smul.addr %s683, 8
        %s687 = sadd.s32 %s685, %s686
        %s688 = smul.addr %s687, 8
        %s689 = scalar_lea.vmem %s8, %s688
        %s690 = smul.u32 8, %s24
        %s692 = smul.u32 %s24, 8
        %s693 = smul.u32 %s692, 2
        %s694 = smul.addr %s693, 4
        %s695 = scalar_lea.vmem %s627, %s694 [#allocation2]
        %v696 = vld [vmem:[%s695] sm:$0xf]
        %v697 = vld [vmem:[%s695 + $0x8] sm:$0xf]
        %v698 = vld [vmem:[%s695 + $0x10] sm:$0xf]
        %v699 = vld [vmem:[%s695 + $0x18] sm:$0xf]
        %v700 = vld [vmem:[%s695 + $0x20] sm:$0xf]
        %v701 = vld [vmem:[%s695 + $0x28] sm:$0xf]
        %v702 = vld [vmem:[%s695 + $0x30] sm:$0xf]
        %v703 = vld [vmem:[%s695 + $0x38] sm:$0xf]
        %v704 = vld [vmem:[%s695 + $0x40] sm:$0xf]
        %s705 = sadd.s32 %s693, 36
        %s706 = smul.addr %s705, 4
        %s707 = scalar_lea.vmem %s627, %s706 [#allocation2]
        %v708 = vld [vmem:[%s707] sm:$0xf]
        %v709 = vld [vmem:[%s707 + $0x8] sm:$0xf]
        %v710 = vld [vmem:[%s707 + $0x10] sm:$0xf]
        %v711 = vld [vmem:[%s707 + $0x18] sm:$0xf]
        %v712 = vld [vmem:[%s707 + $0x20] sm:$0xf]
        %v713 = vld [vmem:[%s707 + $0x28] sm:$0xf]
        %v714 = vld [vmem:[%s707 + $0x30] sm:$0xf]
        %v715 = vld [vmem:[%s707 + $0x38] sm:$0xf]
        %v733 = vunpack.c.l.b16 %v696
        %v734 = vunpack.c.l.b16 %v708
        %v735 = vunpack.c.l.b16 %v697
        %v736 = vunpack.c.l.b16 %v709
        %v737 = vunpack.c.l.b16 %v698
        %v738 = vunpack.c.l.b16 %v710
        %v739 = vunpack.c.l.b16 %v699
        %v740 = vunpack.c.l.b16 %v711
        %v741 = vunpack.c.l.b16 %v700
        %v742 = vunpack.c.l.b16 %v712
        %v743 = vunpack.c.l.b16 %v701
        %v744 = vunpack.c.l.b16 %v713
        %v745 = vunpack.c.l.b16 %v702
        %v746 = vunpack.c.l.b16 %v714
        %v747 = vunpack.c.l.b16 %v703
        %v748 = vunpack.c.l.b16 %v715
        %v749 = vunpack.c.l.b16 %v704
        %v750 = vld [vmem:[%s1] sm:$0xf]
        %v751 = vld [vmem:[%s1 + $0x4] sm:$0xf]
        %v752 = vld [vmem:[%s1 + $0x8] sm:$0xf]
        %v753 = vld [vmem:[%s1 + $0xc] sm:$0xf]
        %v754 = vld [vmem:[%s1 + $0x10] sm:$0xf]
        %v755 = vld [vmem:[%s1 + $0x14] sm:$0xf]
        %v756 = vld [vmem:[%s1 + $0x18] sm:$0xf]
        %v757 = vld [vmem:[%s1 + $0x1c] sm:$0xf]
        %v758 = vld [vmem:[%s1 + $0x20] sm:$0xf]
        %v759 = vld [vmem:[%s1 + $0x24] sm:$0xf]
        %v760 = vld [vmem:[%s1 + $0x28] sm:$0xf]
        %v761 = vld [vmem:[%s1 + $0x2c] sm:$0xf]
        %v762 = vld [vmem:[%s1 + $0x30] sm:$0xf]
        %v763 = vld [vmem:[%s1 + $0x34] sm:$0xf]
        %v764 = vld [vmem:[%s1 + $0x38] sm:$0xf]
        %v765 = vld [vmem:[%s1 + $0x3c] sm:$0xf]
        %v766 = vld [vmem:[%s1 + $0x40] sm:$0xf]
        %v767 = vld [vmem:[%s1 + $0x44] sm:$0xf]
        %v768 = vld [vmem:[%s1 + $0x48] sm:$0xf]
        %v769 = vld [vmem:[%s1 + $0x4c] sm:$0xf]
        %v770 = vld [vmem:[%s1 + $0x50] sm:$0xf]
        %v771 = vld [vmem:[%s1 + $0x54] sm:$0xf]
        %v772 = vld [vmem:[%s1 + $0x58] sm:$0xf]
        %v773 = vld [vmem:[%s1 + $0x5c] sm:$0xf]
        %v774 = vld [vmem:[%s1 + $0x60] sm:$0xf]
        %v775 = vld [vmem:[%s1 + $0x64] sm:$0xf]
        %v776 = vld [vmem:[%s1 + $0x68] sm:$0xf]
        %v777 = vld [vmem:[%s1 + $0x6c] sm:$0xf]
        %v778 = vld [vmem:[%s1 + $0x70] sm:$0xf]
        %v779 = vld [vmem:[%s1 + $0x74] sm:$0xf]
        %v780 = vld [vmem:[%s1 + $0x78] sm:$0xf]
        %v781 = vld [vmem:[%s1 + $0x7c] sm:$0xf]
        %v782 = vld [vmem:[%s1 + $0x80] sm:$0xf]
        %v783 = vld [vmem:[%s1 + $0x84] sm:$0xf]
        %v784 = vld [vmem:[%s1 + $0x88] sm:$0xf]
        %v785 = vld [vmem:[%s1 + $0x8c] sm:$0xf]
        %v786 = vld [vmem:[%s1 + $0x90] sm:$0xf]
        %v787 = vld [vmem:[%s1 + $0x94] sm:$0xf]
        %v788 = vld [vmem:[%s1 + $0x98] sm:$0xf]
        %v789 = vld [vmem:[%s1 + $0x9c] sm:$0xf]
        %v790 = vld [vmem:[%s1 + $0xa0] sm:$0xf]
        %v791 = vld [vmem:[%s1 + $0xa4] sm:$0xf]
        %v792 = vld [vmem:[%s1 + $0xa8] sm:$0xf]
        %v793 = vld [vmem:[%s1 + $0xac] sm:$0xf]
        %v794 = vld [vmem:[%s1 + $0xb0] sm:$0xf]
        %v795 = vld [vmem:[%s1 + $0xb4] sm:$0xf]
        %v796 = vld [vmem:[%s1 + $0xb8] sm:$0xf]
        %v797 = vld [vmem:[%s1 + $0xbc] sm:$0xf]
        %s798 = sadd.s32 %s693, 18
        %s799 = smul.addr %s798, 4
        %s800 = scalar_lea.vmem %s627, %s799 [#allocation2]
        %v801 = vld [vmem:[%s800] sm:$0xf]
        %v802 = vld [vmem:[%s800 + $0x8] sm:$0xf]
        %v803 = vld [vmem:[%s800 + $0x10] sm:$0xf]
        %v804 = vld [vmem:[%s800 + $0x18] sm:$0xf]
        %v805 = vld [vmem:[%s800 + $0x20] sm:$0xf]
        %v806 = vld [vmem:[%s800 + $0x28] sm:$0xf]
        %v807 = vld [vmem:[%s800 + $0x30] sm:$0xf]
        %v808 = vld [vmem:[%s800 + $0x38] sm:$0xf]
        %v809 = vld [vmem:[%s800 + $0x40] sm:$0xf]
        %s810 = sadd.s32 %s693, 54
        %s811 = smul.addr %s810, 4
        %s812 = scalar_lea.vmem %s627, %s811 [#allocation2]
        %v813 = vld [vmem:[%s812] sm:$0xf]
        %v814 = vld [vmem:[%s812 + $0x8] sm:$0xf]
        %v815 = vld [vmem:[%s812 + $0x10] sm:$0xf]
        %v816 = vld [vmem:[%s812 + $0x18] sm:$0xf]
        %v817 = vld [vmem:[%s812 + $0x20] sm:$0xf]
        %v818 = vld [vmem:[%s812 + $0x28] sm:$0xf]
        %v819 = vld [vmem:[%s812 + $0x30] sm:$0xf]
        %v820 = vld [vmem:[%s812 + $0x38] sm:$0xf]
        %v838 = vunpack.c.l.b16 %v801
        %v839 = vunpack.c.l.b16 %v813
        %v840 = vunpack.c.l.b16 %v802
        %v841 = vunpack.c.l.b16 %v814
        %v842 = vunpack.c.l.b16 %v803
        %v843 = vunpack.c.l.b16 %v815
        %v844 = vunpack.c.l.b16 %v804
        %v845 = vunpack.c.l.b16 %v816
        %v846 = vunpack.c.l.b16 %v805
        %v847 = vunpack.c.l.b16 %v817
        %v848 = vunpack.c.l.b16 %v806
        %v849 = vunpack.c.l.b16 %v818
        %v850 = vunpack.c.l.b16 %v807
        %v851 = vunpack.c.l.b16 %v819
        %v852 = vunpack.c.l.b16 %v808
        %v853 = vunpack.c.l.b16 %v820
        %v854 = vunpack.c.l.b16 %v809
        %s855 = scalar_lea.vmem %s1, 192
        %v856 = vld [vmem:[%s855] sm:$0xf]
        %v857 = vld [vmem:[%s855 + $0x4] sm:$0xf]
        %v858 = vld [vmem:[%s855 + $0x8] sm:$0xf]
        %v859 = vld [vmem:[%s855 + $0xc] sm:$0xf]
        %v860 = vld [vmem:[%s855 + $0x10] sm:$0xf]
        %v861 = vld [vmem:[%s855 + $0x14] sm:$0xf]
        %v862 = vld [vmem:[%s855 + $0x18] sm:$0xf]
        %v863 = vld [vmem:[%s855 + $0x1c] sm:$0xf]
        %v864 = vld [vmem:[%s855 + $0x20] sm:$0xf]
        %v865 = vld [vmem:[%s855 + $0x24] sm:$0xf]
        %v866 = vld [vmem:[%s855 + $0x28] sm:$0xf]
        %v867 = vld [vmem:[%s855 + $0x2c] sm:$0xf]
        %v868 = vld [vmem:[%s855 + $0x30] sm:$0xf]
        %v869 = vld [vmem:[%s855 + $0x34] sm:$0xf]
        %v870 = vld [vmem:[%s855 + $0x38] sm:$0xf]
        %v871 = vld [vmem:[%s855 + $0x3c] sm:$0xf]
        %v872 = vld [vmem:[%s855 + $0x40] sm:$0xf]
        %v873 = vld [vmem:[%s855 + $0x44] sm:$0xf]
        %v874 = vld [vmem:[%s855 + $0x48] sm:$0xf]
        %v875 = vld [vmem:[%s855 + $0x4c] sm:$0xf]
        %v876 = vld [vmem:[%s855 + $0x50] sm:$0xf]
        %v877 = vld [vmem:[%s855 + $0x54] sm:$0xf]
        %v878 = vld [vmem:[%s855 + $0x58] sm:$0xf]
        %v879 = vld [vmem:[%s855 + $0x5c] sm:$0xf]
        %v880 = vld [vmem:[%s855 + $0x60] sm:$0xf]
        %v881 = vld [vmem:[%s855 + $0x64] sm:$0xf]
        %v882 = vld [vmem:[%s855 + $0x68] sm:$0xf]
        %v883 = vld [vmem:[%s855 + $0x6c] sm:$0xf]
        %v884 = vld [vmem:[%s855 + $0x70] sm:$0xf]
        %v885 = vld [vmem:[%s855 + $0x74] sm:$0xf]
        %v886 = vld [vmem:[%s855 + $0x78] sm:$0xf]
        %v887 = vld [vmem:[%s855 + $0x7c] sm:$0xf]
        %v888 = vld [vmem:[%s855 + $0x80] sm:$0xf]
        %v889 = vld [vmem:[%s855 + $0x84] sm:$0xf]
        %v890 = vld [vmem:[%s855 + $0x88] sm:$0xf]
        %v891 = vld [vmem:[%s855 + $0x8c] sm:$0xf]
        %v892 = vld [vmem:[%s855 + $0x90] sm:$0xf]
        %v893 = vld [vmem:[%s855 + $0x94] sm:$0xf]
        %v894 = vld [vmem:[%s855 + $0x98] sm:$0xf]
        %v895 = vld [vmem:[%s855 + $0x9c] sm:$0xf]
        %v896 = vld [vmem:[%s855 + $0xa0] sm:$0xf]
        %v897 = vld [vmem:[%s855 + $0xa4] sm:$0xf]
        %v898 = vld [vmem:[%s855 + $0xa8] sm:$0xf]
        %v899 = vld [vmem:[%s855 + $0xac] sm:$0xf]
        %v900 = vld [vmem:[%s855 + $0xb0] sm:$0xf]
        %v901 = vld [vmem:[%s855 + $0xb4] sm:$0xf]
        %v902 = vld [vmem:[%s855 + $0xb8] sm:$0xf]
        %v903 = vld [vmem:[%s855 + $0xbc] sm:$0xf]
        %v904 = vpack.c.b16 %v840, %v838
        %v905 = vpack.c.b16 %v841, %v839
        %v906 = vpack.c.b16 %v842, %v840
        %v907 = vpack.c.b16 %v844, %v842
        %v908 = vpack.c.b16 %v845, %v843
        %v909 = vpack.c.b16 %v846, %v844
        %v910 = vpack.c.b16 %v848, %v846
        %v911 = vpack.c.b16 %v849, %v847
        %v912 = vpack.c.b16 %v850, %v848
        %v913 = vpack.c.b16 %v852, %v850
        %v914 = vpack.c.b16 %v853, %v851
        %v915 = vpack.c.b16 %v854, %v852
        %v976 = vunpack.c.l.b16 %v856
        %v977 = vunpack.c.l.b16 %v857
        %v978 = vunpack.c.l.b16 %v858
        %v979 = vunpack.c.l.b16 %v859
        %v980 = vunpack.c.l.b16 %v860
        %v981 = vunpack.c.l.b16 %v861
        %v982 = vunpack.c.l.b16 %v862
        %v983 = vunpack.c.l.b16 %v863
        %v984 = vunpack.c.l.b16 %v864
        %v985 = vunpack.c.l.b16 %v865
        %v986 = vunpack.c.l.b16 %v866
        %v987 = vunpack.c.l.b16 %v867
        %v988 = vunpack.c.l.b16 %v868
        %v989 = vunpack.c.l.b16 %v869
        %v990 = vunpack.c.l.b16 %v870
        %v991 = vunpack.c.l.b16 %v871
        %v992 = vunpack.c.l.b16 %v872
        %v993 = vunpack.c.l.b16 %v873
        %v994 = vunpack.c.l.b16 %v874
        %v995 = vunpack.c.l.b16 %v875
        %v996 = vunpack.c.l.b16 %v876
        %v997 = vunpack.c.l.b16 %v877
        %v998 = vunpack.c.l.b16 %v878
        %v999 = vunpack.c.l.b16 %v879
        %v1000 = vunpack.c.l.b16 %v880
        %v1001 = vunpack.c.l.b16 %v881
        %v1002 = vunpack.c.l.b16 %v882
        %v1003 = vunpack.c.l.b16 %v883
        %v1004 = vunpack.c.l.b16 %v884
        %v1005 = vunpack.c.l.b16 %v885
        %v1006 = vunpack.c.l.b16 %v886
        %v1007 = vunpack.c.l.b16 %v887
        %v1008 = vunpack.c.l.b16 %v888
        %v1009 = vunpack.c.l.b16 %v889
        %v1010 = vunpack.c.l.b16 %v890
        %v1011 = vunpack.c.l.b16 %v891
        %v1012 = vunpack.c.l.b16 %v892
        %v1013 = vunpack.c.l.b16 %v893
        %v1014 = vunpack.c.l.b16 %v894
        %v1015 = vunpack.c.l.b16 %v895
        %v1016 = vunpack.c.l.b16 %v896
        %v1017 = vunpack.c.l.b16 %v897
        %v1018 = vunpack.c.l.b16 %v898
        %v1019 = vunpack.c.l.b16 %v899
        %v1020 = vunpack.c.l.b16 %v900
        %v1021 = vunpack.c.l.b16 %v901
        %v1022 = vunpack.c.l.b16 %v902
        %v1023 = vunpack.c.l.b16 %v903
        %v1024 = vpack.c.b16 %v977, %v976
        %v1025 = vpack.c.b16 %v979, %v978
        %v1026 = vpack.c.b16 %v981, %v980
        %v1027 = vpack.c.b16 %v983, %v982
        %v1028 = vpack.c.b16 %v985, %v984
        %v1029 = vpack.c.b16 %v987, %v986
        %v1030 = vpack.c.b16 %v989, %v988
        %v1031 = vpack.c.b16 %v991, %v990
        %v1032 = vpack.c.b16 %v993, %v992
        %v1033 = vpack.c.b16 %v995, %v994
        %v1034 = vpack.c.b16 %v997, %v996
        %v1035 = vpack.c.b16 %v999, %v998
        %v1036 = vpack.c.b16 %v1001, %v1000
        %v1037 = vpack.c.b16 %v1003, %v1002
        %v1038 = vpack.c.b16 %v1005, %v1004
        %v1039 = vpack.c.b16 %v1007, %v1006
        %v1040 = vpack.c.b16 %v1009, %v1008
        %v1041 = vpack.c.b16 %v1011, %v1010
        %v1042 = vpack.c.b16 %v1013, %v1012
        %v1043 = vpack.c.b16 %v1015, %v1014
        %v1044 = vpack.c.b16 %v1017, %v1016
        %v1045 = vpack.c.b16 %v1019, %v1018
        %v1046 = vpack.c.b16 %v1021, %v1020
        %v1047 = vpack.c.b16 %v1023, %v1022
        %1072 = vmatprep.subr.bf16.mxu0 0
        %1073 = vmatpush1.bf16.msra.mxu0 %v1024
        %1074 = vmatprep.subr.bf16.mxu0 0
        %1075 = vmatpush1.bf16.msra.mxu0 %v1025
        %1076 = vmatprep.subr.bf16.mxu0 0
        %1077 = vmatpush1.bf16.msra.mxu0 %v1026
        %1078 = vmatprep.subr.bf16.mxu0 0
        %1079 = vmatpush1.bf16.msra.mxu0 %v1027
        %1080 = vmatprep.subr.bf16.mxu0 0
        %1081 = vmatpush1.bf16.msra.mxu0 %v1028
        %1082 = vmatprep.subr.bf16.mxu0 0
        %1083 = vmatpush1.bf16.msra.mxu0 %v1029
        %1084 = vmatprep.subr.bf16.mxu0 0
        %1085 = vmatpush1.bf16.msra.mxu0 %v1030
        %1086 = vmatprep.subr.bf16.mxu0 0
        %1087 = vmatpush1.bf16.msra.mxu0 %v1031
        %1088 = vmatprep.subr.bf16.mxu0 0
        %1089 = vmatpush1.bf16.msra.mxu0 %v1032
        %1090 = vmatprep.subr.bf16.mxu0 0
        %1091 = vmatpush1.bf16.msra.mxu0 %v1033
        %1092 = vmatprep.subr.bf16.mxu0 0
        %1093 = vmatpush1.bf16.msra.mxu0 %v1034
        %1094 = vmatprep.subr.bf16.mxu0 0
        %1095 = vmatpush1.bf16.msra.mxu0 %v1035
        %1096 = vmatprep.subr.bf16.mxu0 0
        %1097 = vmatpush1.bf16.msra.mxu0 %v1036
        %1098 = vmatprep.subr.bf16.mxu0 0
        %1099 = vmatpush1.bf16.msra.mxu0 %v1037
        %1100 = vmatprep.subr.bf16.mxu0 0
        %1101 = vmatpush1.bf16.msra.mxu0 %v1038
        %1102 = vmatprep.subr.bf16.mxu0 0
        %1103 = vmatpush1.bf16.msra.mxu0 %v1039
        %1104 = vmatprep.mubr.bf16.mxu0 %v905
        %1105 = vmatmul.mubr.bf16.gmra.mrb[0].mxu0 %v904
        %v1106 = vpop.f32.mrb[0].mxu0
        %v1107 = vadd.f32 0.0, %v1106
        %v1108 = vpop.f32.mrb[0].mxu0
        %v1109 = vpop.f32.mrb[0].mxu0
        %v1110 = vadd.f32 0.0, %v1109
        %v1111 = vpop.f32.mrb[0].mxu0
        %1112 = vmatprep.mubr.bf16.mxu0 %v908
        %1113 = vmatmul.mubr.bf16.gmra.mrb[0].mxu0 %v907
        %v1114 = vpop.f32.mrb[0].mxu0
        %v1115 = vadd.f32 0.0, %v1114
        %v1116 = vpop.f32.mrb[0].mxu0
        %v1117 = vpop.f32.mrb[0].mxu0
        %v1118 = vadd.f32 0.0, %v1117
        %v1119 = vpop.f32.mrb[0].mxu0
        %1120 = vmatprep.mubr.bf16.mxu0 %v911
        %1121 = vmatmul.mubr.bf16.gmra.mrb[0].mxu0 %v910
        %v1122 = vpop.f32.mrb[0].mxu0
        %v1123 = vadd.f32 0.0, %v1122
        %v1124 = vpop.f32.mrb[0].mxu0
        %v1125 = vpop.f32.mrb[0].mxu0
        %v1126 = vadd.f32 0.0, %v1125
        %v1127 = vpop.f32.mrb[0].mxu0
        %1128 = vmatprep.mubr.bf16.mxu0 %v914
        %1129 = vmatmul.mubr.bf16.gmra.mrb[0].mxu0 %v913
        %v1130 = vpop.f32.mrb[0].mxu0
        %v1131 = vadd.f32 0.0, %v1130
        %v1132 = vpop.f32.mrb[0].mxu0
        %v1133 = vpop.f32.mrb[0].mxu0
        %v1134 = vadd.f32 0.0, %v1133
        %v1135 = vpop.f32.mrb[0].mxu0
        %1136 = vdwg.mxu0
        %1137 = vmatprep.subr.bf16.mxu0 0
        %1138 = vmatpush1.bf16.msra.mxu0 %v1040
        %1139 = vmatprep.subr.bf16.mxu0 0
        %1140 = vmatpush1.bf16.msra.mxu0 %v1041
        %1141 = vmatprep.subr.bf16.mxu0 0
        %1142 = vmatpush1.bf16.msra.mxu0 %v1042
        %1143 = vmatprep.subr.bf16.mxu0 0
        %1144 = vmatpush1.bf16.msra.mxu0 %v1043
        %1145 = vmatprep.subr.bf16.mxu0 0
        %1146 = vmatpush1.bf16.msra.mxu0 %v1044
        %1147 = vmatprep.subr.bf16.mxu0 0
        %1148 = vmatpush1.bf16.msra.mxu0 %v1045
        %1149 = vmatprep.subr.bf16.mxu0 0
        %1150 = vmatpush1.bf16.msra.mxu0 %v1046
        %1151 = vmatprep.subr.bf16.mxu0 0
        %1152 = vmatpush1.bf16.msra.mxu0 %v1047
        %1153 = vmatprep.subr.bf16.mxu0 0
        %1154 = vmatpush1.bf16.msra.mxu0 0
        %1155 = vmatprep.subr.bf16.mxu0 0
        %1156 = vmatpush1.bf16.msra.mxu0 0
        %1157 = vmatprep.subr.bf16.mxu0 0
        %1158 = vmatpush1.bf16.msra.mxu0 0
        %1159 = vmatprep.subr.bf16.mxu0 0
        %1160 = vmatpush1.bf16.msra.mxu0 0
        %1161 = vmatprep.subr.bf16.mxu0 0
        %1162 = vmatpush1.bf16.msra.mxu0 0
        %1163 = vmatprep.subr.bf16.mxu0 0
        %1164 = vmatpush1.bf16.msra.mxu0 0
        %1165 = vmatprep.subr.bf16.mxu0 0
        %1166 = vmatpush1.bf16.msra.mxu0 0
        %1167 = vmatprep.subr.bf16.mxu0 0
        %1168 = vmatpush1.bf16.msra.mxu0 0
        %1169 = vmatprep.mubr.bf16.mxu0 0
        %1170 = vmatmul.mubr.bf16.gmra.mrb[0].mxu0 %v906
        %v1171 = vpop.f32.mrb[0].mxu0
        %v1172 = vadd.f32 %v1107, %v1171
        %v1173 = vpop.f32.mrb[0].mxu0
        %v1174 = vpop.f32.mrb[0].mxu0
        %v1175 = vadd.f32 %v1110, %v1174
        %v1176 = vpop.f32.mrb[0].mxu0
        %1177 = vmatprep.mubr.bf16.mxu0 0
        %1178 = vmatmul.mubr.bf16.gmra.mrb[0].mxu0 %v909
        %v1179 = vpop.f32.mrb[0].mxu0
        %v1180 = vadd.f32 %v1115, %v1179
        %v1181 = vpop.f32.mrb[0].mxu0
        %v1182 = vpop.f32.mrb[0].mxu0
        %v1183 = vadd.f32 %v1118, %v1182
        %v1184 = vpop.f32.mrb[0].mxu0
        %1185 = vmatprep.mubr.bf16.mxu0 0
        %1186 = vmatmul.mubr.bf16.gmra.mrb[0].mxu0 %v912
        %v1187 = vpop.f32.mrb[0].mxu0
        %v1188 = vadd.f32 %v1123, %v1187
        %v1189 = vpop.f32.mrb[0].mxu0
        %v1190 = vpop.f32.mrb[0].mxu0
        %v1191 = vadd.f32 %v1126, %v1190
        %v1192 = vpop.f32.mrb[0].mxu0
        %1193 = vmatprep.mubr.bf16.mxu0 0
        %1194 = vmatmul.mubr.bf16.gmra.mrb[0].mxu0 %v915
        %v1195 = vpop.f32.mrb[0].mxu0
        %v1196 = vadd.f32 %v1131, %v1195
        %v1197 = vpop.f32.mrb[0].mxu0
        %v1198 = vpop.f32.mrb[0].mxu0
        %v1199 = vadd.f32 %v1134, %v1198
        %v1200 = vpop.f32.mrb[0].mxu0
        %1201 = vdwg.mxu0
        %v1202 = vpack.c.b16 %v735, %v733
        %v1203 = vpack.c.b16 %v736, %v734
        %v1204 = vpack.c.b16 %v737, %v735
        %v1205 = vpack.c.b16 %v739, %v737
        %v1206 = vpack.c.b16 %v740, %v738
        %v1207 = vpack.c.b16 %v741, %v739
        %v1208 = vpack.c.b16 %v743, %v741
        %v1209 = vpack.c.b16 %v744, %v742
        %v1210 = vpack.c.b16 %v745, %v743
        %v1211 = vpack.c.b16 %v747, %v745
        %v1212 = vpack.c.b16 %v748, %v746
        %v1213 = vpack.c.b16 %v749, %v747
        %v1274 = vunpack.c.l.b16 %v750
        %v1275 = vunpack.c.l.b16 %v751
        %v1276 = vunpack.c.l.b16 %v752
        %v1277 = vunpack.c.l.b16 %v753
        %v1278 = vunpack.c.l.b16 %v754
        %v1279 = vunpack.c.l.b16 %v755
        %v1280 = vunpack.c.l.b16 %v756
        %v1281 = vunpack.c.l.b16 %v757
        %v1282 = vunpack.c.l.b16 %v758
        %v1283 = vunpack.c.l.b16 %v759
        %v1284 = vunpack.c.l.b16 %v760
        %v1285 = vunpack.c.l.b16 %v761
        %v1286 = vunpack.c.l.b16 %v762
        %v1287 = vunpack.c.l.b16 %v763
        %v1288 = vunpack.c.l.b16 %v764
        %v1289 = vunpack.c.l.b16 %v765
        %v1290 = vunpack.c.l.b16 %v766
        %v1291 = vunpack.c.l.b16 %v767
        %v1292 = vunpack.c.l.b16 %v768
        %v1293 = vunpack.c.l.b16 %v769
        %v1294 = vunpack.c.l.b16 %v770
        %v1295 = vunpack.c.l.b16 %v771
        %v1296 = vunpack.c.l.b16 %v772
        %v1297 = vunpack.c.l.b16 %v773
        %v1298 = vunpack.c.l.b16 %v774
        %v1299 = vunpack.c.l.b16 %v775
        %v1300 = vunpack.c.l.b16 %v776
        %v1301 = vunpack.c.l.b16 %v777
        %v1302 = vunpack.c.l.b16 %v778
        %v1303 = vunpack.c.l.b16 %v779
        %v1304 = vunpack.c.l.b16 %v780
        %v1305 = vunpack.c.l.b16 %v781
        %v1306 = vunpack.c.l.b16 %v782
        %v1307 = vunpack.c.l.b16 %v783
        %v1308 = vunpack.c.l.b16 %v784
        %v1309 = vunpack.c.l.b16 %v785
        %v1310 = vunpack.c.l.b16 %v786
        %v1311 = vunpack.c.l.b16 %v787
        %v1312 = vunpack.c.l.b16 %v788
        %v1313 = vunpack.c.l.b16 %v789
        %v1314 = vunpack.c.l.b16 %v790
        %v1315 = vunpack.c.l.b16 %v791
        %v1316 = vunpack.c.l.b16 %v792
        %v1317 = vunpack.c.l.b16 %v793
        %v1318 = vunpack.c.l.b16 %v794
        %v1319 = vunpack.c.l.b16 %v795
        %v1320 = vunpack.c.l.b16 %v796
        %v1321 = vunpack.c.l.b16 %v797
        %v1322 = vpack.c.b16 %v1275, %v1274
        %v1323 = vpack.c.b16 %v1277, %v1276
        %v1324 = vpack.c.b16 %v1279, %v1278
        %v1325 = vpack.c.b16 %v1281, %v1280
        %v1326 = vpack.c.b16 %v1283, %v1282
        %v1327 = vpack.c.b16 %v1285, %v1284
        %v1328 = vpack.c.b16 %v1287, %v1286
        %v1329 = vpack.c.b16 %v1289, %v1288
        %v1330 = vpack.c.b16 %v1291, %v1290
        %v1331 = vpack.c.b16 %v1293, %v1292
        %v1332 = vpack.c.b16 %v1295, %v1294
        %v1333 = vpack.c.b16 %v1297, %v1296
        %v1334 = vpack.c.b16 %v1299, %v1298
        %v1335 = vpack.c.b16 %v1301, %v1300
        %v1336 = vpack.c.b16 %v1303, %v1302
        %v1337 = vpack.c.b16 %v1305, %v1304
        %v1338 = vpack.c.b16 %v1307, %v1306
        %v1339 = vpack.c.b16 %v1309, %v1308
        %v1340 = vpack.c.b16 %v1311, %v1310
        %v1341 = vpack.c.b16 %v1313, %v1312
        %v1342 = vpack.c.b16 %v1315, %v1314
        %v1343 = vpack.c.b16 %v1317, %v1316
        %v1344 = vpack.c.b16 %v1319, %v1318
        %v1345 = vpack.c.b16 %v1321, %v1320
        %1370 = vmatprep.subr.bf16.mxu0 0
        %1371 = vmatpush1.bf16.msra.mxu0 %v1322
        %1372 = vmatprep.subr.bf16.mxu0 0
        %1373 = vmatpush1.bf16.msra.mxu0 %v1323
        %1374 = vmatprep.subr.bf16.mxu0 0
        %1375 = vmatpush1.bf16.msra.mxu0 %v1324
        %1376 = vmatprep.subr.bf16.mxu0 0
        %1377 = vmatpush1.bf16.msra.mxu0 %v1325
        %1378 = vmatprep.subr.bf16.mxu0 0
        %1379 = vmatpush1.bf16.msra.mxu0 %v1326
        %1380 = vmatprep.subr.bf16.mxu0 0
        %1381 = vmatpush1.bf16.msra.mxu0 %v1327
        %1382 = vmatprep.subr.bf16.mxu0 0
        %1383 = vmatpush1.bf16.msra.mxu0 %v1328
        %1384 = vmatprep.subr.bf16.mxu0 0
        %1385 = vmatpush1.bf16.msra.mxu0 %v1329
        %1386 = vmatprep.subr.bf16.mxu0 0
        %1387 = vmatpush1.bf16.msra.mxu0 %v1330
        %1388 = vmatprep.subr.bf16.mxu0 0
        %1389 = vmatpush1.bf16.msra.mxu0 %v1331
        %1390 = vmatprep.subr.bf16.mxu0 0
        %1391 = vmatpush1.bf16.msra.mxu0 %v1332
        %1392 = vmatprep.subr.bf16.mxu0 0
        %1393 = vmatpush1.bf16.msra.mxu0 %v1333
        %1394 = vmatprep.subr.bf16.mxu0 0
        %1395 = vmatpush1.bf16.msra.mxu0 %v1334
        %1396 = vmatprep.subr.bf16.mxu0 0
        %1397 = vmatpush1.bf16.msra.mxu0 %v1335
        %1398 = vmatprep.subr.bf16.mxu0 0
        %1399 = vmatpush1.bf16.msra.mxu0 %v1336
        %1400 = vmatprep.subr.bf16.mxu0 0
        %1401 = vmatpush1.bf16.msra.mxu0 %v1337
        %1402 = vmatprep.mubr.bf16.mxu0 %v1203
        %1403 = vmatmul.mubr.bf16.gmra.mrb[0].mxu0 %v1202
        %v1404 = vpop.f32.mrb[0].mxu0
        %v1405 = vadd.f32 %v1172, %v1404
        %v1406 = vpop.f32.mrb[0].mxu0
        %v1407 = vpop.f32.mrb[0].mxu0
        %v1408 = vadd.f32 %v1175, %v1407
        %v1409 = vpop.f32.mrb[0].mxu0
        %1410 = vmatprep.mubr.bf16.mxu0 %v1206
        %1411 = vmatmul.mubr.bf16.gmra.mrb[0].mxu0 %v1205
        %v1412 = vpop.f32.mrb[0].mxu0
        %v1413 = vadd.f32 %v1180, %v1412
        %v1414 = vpop.f32.mrb[0].mxu0
        %v1415 = vpop.f32.mrb[0].mxu0
        %v1416 = vadd.f32 %v1183, %v1415
        %v1417 = vpop.f32.mrb[0].mxu0
        %1418 = vmatprep.mubr.bf16.mxu0 %v1209
        %1419 = vmatmul.mubr.bf16.gmra.mrb[0].mxu0 %v1208
        %v1420 = vpop.f32.mrb[0].mxu0
        %v1421 = vadd.f32 %v1188, %v1420
        %v1422 = vpop.f32.mrb[0].mxu0
        %v1423 = vpop.f32.mrb[0].mxu0
        %v1424 = vadd.f32 %v1191, %v1423
        %v1425 = vpop.f32.mrb[0].mxu0
        %1426 = vmatprep.mubr.bf16.mxu0 %v1212
        %1427 = vmatmul.mubr.bf16.gmra.mrb[0].mxu0 %v1211
        %v1428 = vpop.f32.mrb[0].mxu0
        %v1429 = vadd.f32 %v1196, %v1428
        %v1430 = vpop.f32.mrb[0].mxu0
        %v1431 = vpop.f32.mrb[0].mxu0
        %v1432 = vadd.f32 %v1199, %v1431
        %v1433 = vpop.f32.mrb[0].mxu0
        %1434 = vdwg.mxu0
        %1435 = vmatprep.subr.bf16.mxu0 0
        %1436 = vmatpush1.bf16.msra.mxu0 %v1338
        %1437 = vmatprep.subr.bf16.mxu0 0
        %1438 = vmatpush1.bf16.msra.mxu0 %v1339
        %1439 = vmatprep.subr.bf16.mxu0 0
        %1440 = vmatpush1.bf16.msra.mxu0 %v1340
        %1441 = vmatprep.subr.bf16.mxu0 0
        %1442 = vmatpush1.bf16.msra.mxu0 %v1341
        %1443 = vmatprep.subr.bf16.mxu0 0
        %1444 = vmatpush1.bf16.msra.mxu0 %v1342
        %1445 = vmatprep.subr.bf16.mxu0 0
        %1446 = vmatpush1.bf16.msra.mxu0 %v1343
        %1447 = vmatprep.subr.bf16.mxu0 0
        %1448 = vmatpush1.bf16.msra.mxu0 %v1344
        %1449 = vmatprep.subr.bf16.mxu0 0
        %1450 = vmatpush1.bf16.msra.mxu0 %v1345
        %1451 = vmatprep.subr.bf16.mxu0 0
        %1452 = vmatpush1.bf16.msra.mxu0 0
        %1453 = vmatprep.subr.bf16.mxu0 0
        %1454 = vmatpush1.bf16.msra.mxu0 0
        %1455 = vmatprep.subr.bf16.mxu0 0
        %1456 = vmatpush1.bf16.msra.mxu0 0
        %1457 = vmatprep.subr.bf16.mxu0 0
        %1458 = vmatpush1.bf16.msra.mxu0 0
        %1459 = vmatprep.subr.bf16.mxu0 0
        %1460 = vmatpush1.bf16.msra.mxu0 0
        %1461 = vmatprep.subr.bf16.mxu0 0
        %1462 = vmatpush1.bf16.msra.mxu0 0
        %1463 = vmatprep.subr.bf16.mxu0 0
        %1464 = vmatpush1.bf16.msra.mxu0 0
        %1465 = vmatprep.subr.bf16.mxu0 0
        %1466 = vmatpush1.bf16.msra.mxu0 0
        %1467 = vmatprep.mubr.bf16.mxu0 0
        %1468 = vmatmul.mubr.bf16.gmra.mrb[0].mxu0 %v1204
        %v1469 = vpop.f32.mrb[0].mxu0
        %v1470 = vadd.f32 %v1405, %v1469
        %v1471 = vpop.f32.mrb[0].mxu0
        %v1472 = vpop.f32.mrb[0].mxu0
        %v1473 = vadd.f32 %v1408, %v1472
        %v1474 = vpop.f32.mrb[0].mxu0
        %1475 = vmatprep.mubr.bf16.mxu0 0
        %1476 = vmatmul.mubr.bf16.gmra.mrb[0].mxu0 %v1207
        %v1477 = vpop.f32.mrb[0].mxu0
        %v1478 = vadd.f32 %v1413, %v1477
        %v1479 = vpop.f32.mrb[0].mxu0
        %v1480 = vpop.f32.mrb[0].mxu0
        %v1481 = vadd.f32 %v1416, %v1480
        %v1482 = vpop.f32.mrb[0].mxu0
        %1483 = vmatprep.mubr.bf16.mxu0 0
        %1484 = vmatmul.mubr.bf16.gmra.mrb[0].mxu0 %v1210
        %v1485 = vpop.f32.mrb[0].mxu0
        %v1486 = vadd.f32 %v1421, %v1485
        %v1487 = vpop.f32.mrb[0].mxu0
        %v1488 = vpop.f32.mrb[0].mxu0
        %v1489 = vadd.f32 %v1424, %v1488
        %v1490 = vpop.f32.mrb[0].mxu0
        %1491 = vmatprep.mubr.bf16.mxu0 0
        %1492 = vmatmul.mubr.bf16.gmra.mrb[0].mxu0 %v1213
        %v1493 = vpop.f32.mrb[0].mxu0
        %v1494 = vadd.f32 %v1429, %v1493
        %v1495 = vpop.f32.mrb[0].mxu0
        %v1496 = vpop.f32.mrb[0].mxu0
        %v1497 = vadd.f32 %v1432, %v1496
        %v1498 = vpop.f32.mrb[0].mxu0
        %1499 = vdwg.mxu0
        %v1500 = vld [vmem:[%s695] sm:$0xf]
        %v1501 = vld [vmem:[%s695 + $0x4] sm:$0x1]
        %v1502 = vld [vmem:[%s695 + $0x8] sm:$0xf]
        %v1503 = vld [vmem:[%s695 + $0xc] sm:$0x1]
        %v1504 = vld [vmem:[%s695 + $0x10] sm:$0xf]
        %v1505 = vld [vmem:[%s695 + $0x14] sm:$0x1]
        %v1506 = vld [vmem:[%s695 + $0x18] sm:$0xf]
        %v1507 = vld [vmem:[%s695 + $0x1c] sm:$0x1]
        %v1508 = vld [vmem:[%s695 + $0x20] sm:$0xf]
        %v1509 = vld [vmem:[%s695 + $0x24] sm:$0x1]
        %v1510 = vld [vmem:[%s695 + $0x28] sm:$0xf]
        %v1511 = vld [vmem:[%s695 + $0x2c] sm:$0x1]
        %v1512 = vld [vmem:[%s695 + $0x30] sm:$0xf]
        %v1513 = vld [vmem:[%s695 + $0x34] sm:$0x1]
        %v1514 = vld [vmem:[%s695 + $0x38] sm:$0xf]
        %v1515 = vld [vmem:[%s695 + $0x3c] sm:$0x1]
        %v1516 = vld [vmem:[%s695 + $0x40] sm:$0xf]
        %v1517 = vld [vmem:[%s695 + $0x44] sm:$0x1]
        %v1518 = vld [vmem:[%s707] sm:$0xf]
        %v1519 = vld [vmem:[%s707 + $0x4] sm:$0x1]
        %v1520 = vld [vmem:[%s707 + $0x8] sm:$0xf]
        %v1521 = vld [vmem:[%s707 + $0xc] sm:$0x1]
        %v1522 = vld [vmem:[%s707 + $0x10] sm:$0xf]
        %v1523 = vld [vmem:[%s707 + $0x14] sm:$0x1]
        %v1524 = vld [vmem:[%s707 + $0x18] sm:$0xf]
        %v1525 = vld [vmem:[%s707 + $0x1c] sm:$0x1]
        %v1526 = vld [vmem:[%s707 + $0x20] sm:$0xf]
        %v1527 = vld [vmem:[%s707 + $0x24] sm:$0x1]
        %v1528 = vld [vmem:[%s707 + $0x28] sm:$0xf]
        %v1529 = vld [vmem:[%s707 + $0x2c] sm:$0x1]
        %v1530 = vld [vmem:[%s707 + $0x30] sm:$0xf]
        %v1531 = vld [vmem:[%s707 + $0x34] sm:$0x1]
        %v1532 = vld [vmem:[%s707 + $0x38] sm:$0xf]
        %v1533 = vld [vmem:[%s707 + $0x3c] sm:$0x1]
        %v1550 = vunpack.c.l.b16 %v1500
        %v1551 = vunpack.c.l.b16 %v1501
        %v1552 = vunpack.c.l.b16 %v1502
        %v1553 = vunpack.c.l.b16 %v1503
        %v1554 = vunpack.c.l.b16 %v1504
        %v1555 = vunpack.c.l.b16 %v1505
        %v1556 = vunpack.c.l.b16 %v1506
        %v1557 = vunpack.c.l.b16 %v1507
        %v1558 = vunpack.c.l.b16 %v1508
        %v1559 = vunpack.c.l.b16 %v1509
        %v1560 = vunpack.c.l.b16 %v1510
        %v1561 = vunpack.c.l.b16 %v1511
        %v1562 = vunpack.c.l.b16 %v1512
        %v1563 = vunpack.c.l.b16 %v1513
        %v1564 = vunpack.c.l.b16 %v1514
        %v1565 = vunpack.c.l.b16 %v1515
        %v1582 = vunpack.c.l.b16 %v1518
        %v1583 = vunpack.c.l.b16 %v1519
        %v1584 = vunpack.c.l.b16 %v1520
        %v1585 = vunpack.c.l.b16 %v1521
        %v1586 = vunpack.c.l.b16 %v1522
        %v1587 = vunpack.c.l.b16 %v1523
        %v1588 = vunpack.c.l.b16 %v1524
        %v1589 = vunpack.c.l.b16 %v1525
        %v1590 = vunpack.c.l.b16 %v1526
        %v1591 = vunpack.c.l.b16 %v1527
        %v1592 = vunpack.c.l.b16 %v1528
        %v1593 = vunpack.c.l.b16 %v1529
        %v1594 = vunpack.c.l.b16 %v1530
        %v1595 = vunpack.c.l.b16 %v1531
        %v1596 = vunpack.c.l.b16 %v1532
        %v1597 = vunpack.c.l.b16 %v1533
        %v1600 = vunpack.c.l.b16 %v1516
        %v1601 = vunpack.c.l.b16 %v1517
        %v1602 = vpack.c.b16 %v1582, %v1550
        %v1603 = vpack.c.b16 %v1552, %v1552
        %v1604 = vpack.c.b16 %v1583, %v1551
        %v1605 = vpack.c.b16 %v1553, %v1553
        %v1606 = vpack.c.b16 %v1584, %v1552
        %v1607 = vpack.c.b16 %v1554, %v1554
        %v1608 = vpack.c.b16 %v1585, %v1553
        %v1609 = vpack.c.b16 %v1555, %v1555
        %v1610 = vpack.c.b16 %v1586, %v1554
        %v1611 = vpack.c.b16 %v1556, %v1556
        %v1612 = vpack.c.b16 %v1587, %v1555
        %v1613 = vpack.c.b16 %v1557, %v1557
        %v1614 = vpack.c.b16 %v1588, %v1556
        %v1615 = vpack.c.b16 %v1558, %v1558
        %v1616 = vpack.c.b16 %v1589, %v1557
        %v1617 = vpack.c.b16 %v1559, %v1559
        %v1618 = vpack.c.b16 %v1590, %v1558
        %v1619 = vpack.c.b16 %v1560, %v1560
        %v1620 = vpack.c.b16 %v1591, %v1559
        %v1621 = vpack.c.b16 %v1561, %v1561
        %v1622 = vpack.c.b16 %v1592, %v1560
        %v1623 = vpack.c.b16 %v1562, %v1562
        %v1624 = vpack.c.b16 %v1593, %v1561
        %v1625 = vpack.c.b16 %v1563, %v1563
        %v1626 = vpack.c.b16 %v1594, %v1562
        %v1627 = vpack.c.b16 %v1564, %v1564
        %v1628 = vpack.c.b16 %v1595, %v1563
        %v1629 = vpack.c.b16 %v1565, %v1565
        %v1630 = vpack.c.b16 %v1596, %v1564
        %v1631 = vpack.c.b16 %v1600, %v1600
        %v1632 = vpack.c.b16 %v1597, %v1565
        %v1633 = vpack.c.b16 %v1601, %v1601
        %vm1634 = vsmask.f32 3328
        %vm1635 = vsmask.f32 7440
        %vm1636 = vmor %vm1634, %vm1635
        %v1638 = vshrl.u32 %v1602, 16
        %v1640 = vrot.slane %v1638, 4
        %v1641 = vshll.u32 %v1602, 16
        %v1643 = vrot.slane %v1641, 5
        %v1644 = vor.u32 %v1640, %v1643
        %v1645 = vrot.slane %v1644, 4
        %v1647 = vshll.u32 %v1604, 16
        %v1649 = vrot.slane %v1647, 5
        %v1650 = vsel %vm1636, %v1645, %v1649
        %v1652 = vshrl.u32 %v1603, 16
        %v1654 = vrot.slane %v1652, 4
        %v1655 = vshll.u32 %v1603, 16
        %v1657 = vrot.slane %v1655, 5
        %v1658 = vor.u32 %v1654, %v1657
        %v1659 = vrot.slane %v1658, 4
        %v1661 = vshll.u32 %v1605, 16
        %v1663 = vrot.slane %v1661, 5
        %v1664 = vsel %vm1636, %v1659, %v1663
        %v1666 = vshrl.u32 %v1606, 16
        %v1668 = vrot.slane %v1666, 4
        %v1669 = vshll.u32 %v1606, 16
        %v1671 = vrot.slane %v1669, 5
        %v1672 = vor.u32 %v1668, %v1671
        %v1673 = vrot.slane %v1672, 4
        %v1675 = vshll.u32 %v1608, 16
        %v1677 = vrot.slane %v1675, 5
        %v1678 = vsel %vm1636, %v1673, %v1677
        %v1680 = vshrl.u32 %v1607, 16
        %v1682 = vrot.slane %v1680, 4
        %v1683 = vshll.u32 %v1607, 16
        %v1685 = vrot.slane %v1683, 5
        %v1686 = vor.u32 %v1682, %v1685
        %v1687 = vrot.slane %v1686, 4
        %v1689 = vshll.u32 %v1609, 16
        %v1691 = vrot.slane %v1689, 5
        %v1692 = vsel %vm1636, %v1687, %v1691
        %v1694 = vshrl.u32 %v1610, 16
        %v1696 = vrot.slane %v1694, 4
        %v1697 = vshll.u32 %v1610, 16
        %v1699 = vrot.slane %v1697, 5
        %v1700 = vor.u32 %v1696, %v1699
        %v1701 = vrot.slane %v1700, 4
        %v1703 = vshll.u32 %v1612, 16
        %v1705 = vrot.slane %v1703, 5
        %v1706 = vsel %vm1636, %v1701, %v1705
        %v1708 = vshrl.u32 %v1611, 16
        %v1710 = vrot.slane %v1708, 4
        %v1711 = vshll.u32 %v1611, 16
        %v1713 = vrot.slane %v1711, 5
        %v1714 = vor.u32 %v1710, %v1713
        %v1715 = vrot.slane %v1714, 4
        %v1717 = vshll.u32 %v1613, 16
        %v1719 = vrot.slane %v1717, 5
        %v1720 = vsel %vm1636, %v1715, %v1719
        %v1722 = vshrl.u32 %v1614, 16
        %v1724 = vrot.slane %v1722, 4
        %v1725 = vshll.u32 %v1614, 16
        %v1727 = vrot.slane %v1725, 5
        %v1728 = vor.u32 %v1724, %v1727
        %v1729 = vrot.slane %v1728, 4
        %v1731 = vshll.u32 %v1616, 16
        %v1733 = vrot.slane %v1731, 5
        %v1734 = vsel %vm1636, %v1729, %v1733
        %v1736 = vshrl.u32 %v1615, 16
        %v1738 = vrot.slane %v1736, 4
        %v1739 = vshll.u32 %v1615, 16
        %v1741 = vrot.slane %v1739, 5
        %v1742 = vor.u32 %v1738, %v1741
        %v1743 = vrot.slane %v1742, 4
        %v1745 = vshll.u32 %v1617, 16
        %v1747 = vrot.slane %v1745, 5
        %v1748 = vsel %vm1636, %v1743, %v1747
        %v1750 = vshrl.u32 %v1618, 16
        %v1752 = vrot.slane %v1750, 4
        %v1753 = vshll.u32 %v1618, 16
        %v1755 = vrot.slane %v1753, 5
        %v1756 = vor.u32 %v1752, %v1755
        %v1757 = vrot.slane %v1756, 4
        %v1759 = vshll.u32 %v1620, 16
        %v1761 = vrot.slane %v1759, 5
        %v1762 = vsel %vm1636, %v1757, %v1761
        %v1764 = vshrl.u32 %v1619, 16
        %v1766 = vrot.slane %v1764, 4
        %v1767 = vshll.u32 %v1619, 16
        %v1769 = vrot.slane %v1767, 5
        %v1770 = vor.u32 %v1766, %v1769
        %v1771 = vrot.slane %v1770, 4
        %v1773 = vshll.u32 %v1621, 16
        %v1775 = vrot.slane %v1773, 5
        %v1776 = vsel %vm1636, %v1771, %v1775
        %v1778 = vshrl.u32 %v1622, 16
        %v1780 = vrot.slane %v1778, 4
        %v1781 = vshll.u32 %v1622, 16
        %v1783 = vrot.slane %v1781, 5
        %v1784 = vor.u32 %v1780, %v1783
        %v1785 = vrot.slane %v1784, 4
        %v1787 = vshll.u32 %v1624, 16
        %v1789 = vrot.slane %v1787, 5
        %v1790 = vsel %vm1636, %v1785, %v1789
        %v1792 = vshrl.u32 %v1623, 16
        %v1794 = vrot.slane %v1792, 4
        %v1795 = vshll.u32 %v1623, 16
        %v1797 = vrot.slane %v1795, 5
        %v1798 = vor.u32 %v1794, %v1797
        %v1799 = vrot.slane %v1798, 4
        %v1801 = vshll.u32 %v1625, 16
        %v1803 = vrot.slane %v1801, 5
        %v1804 = vsel %vm1636, %v1799, %v1803
        %v1806 = vshrl.u32 %v1626, 16
        %v1808 = vrot.slane %v1806, 4
        %v1809 = vshll.u32 %v1626, 16
        %v1811 = vrot.slane %v1809, 5
        %v1812 = vor.u32 %v1808, %v1811
        %v1813 = vrot.slane %v1812, 4
        %v1815 = vshll.u32 %v1628, 16
        %v1817 = vrot.slane %v1815, 5
        %v1818 = vsel %vm1636, %v1813, %v1817
        %v1820 = vshrl.u32 %v1627, 16
        %v1822 = vrot.slane %v1820, 4
        %v1823 = vshll.u32 %v1627, 16
        %v1825 = vrot.slane %v1823, 5
        %v1826 = vor.u32 %v1822, %v1825
        %v1827 = vrot.slane %v1826, 4
        %v1829 = vshll.u32 %v1629, 16
        %v1831 = vrot.slane %v1829, 5
        %v1832 = vsel %vm1636, %v1827, %v1831
        %v1834 = vshrl.u32 %v1630, 16
        %v1836 = vrot.slane %v1834, 4
        %v1837 = vshll.u32 %v1630, 16
        %v1839 = vrot.slane %v1837, 5
        %v1840 = vor.u32 %v1836, %v1839
        %v1841 = vrot.slane %v1840, 4
        %v1843 = vshll.u32 %v1632, 16
        %v1845 = vrot.slane %v1843, 5
        %v1846 = vsel %vm1636, %v1841, %v1845
        %v1848 = vshrl.u32 %v1631, 16
        %v1850 = vrot.slane %v1848, 4
        %v1851 = vshll.u32 %v1631, 16
        %v1853 = vrot.slane %v1851, 5
        %v1854 = vor.u32 %v1850, %v1853
        %v1855 = vrot.slane %v1854, 4
        %v1857 = vshll.u32 %v1633, 16
        %v1859 = vrot.slane %v1857, 5
        %v1860 = vsel %vm1636, %v1855, %v1859
        %s1861 = scalar_lea.vmem %s1, 384
        %v1862 = vld [vmem:[%s1861] sm:$0xf]
        %v1863 = vld [vmem:[%s1861 + $0x4] sm:$0xf]
        %v1864 = vld [vmem:[%s1861 + $0x8] sm:$0xf]
        %v1865 = vld [vmem:[%s1861 + $0xc] sm:$0xf]
        %v1866 = vld [vmem:[%s1861 + $0x10] sm:$0xf]
        %v1867 = vld [vmem:[%s1861 + $0x14] sm:$0xf]
        %v1868 = vld [vmem:[%s1861 + $0x18] sm:$0xf]
        %v1869 = vld [vmem:[%s1861 + $0x1c] sm:$0xf]
        %v1870 = vld [vmem:[%s1861 + $0x20] sm:$0xf]
        %v1871 = vld [vmem:[%s1861 + $0x24] sm:$0xf]
        %v1872 = vld [vmem:[%s1861 + $0x28] sm:$0xf]
        %v1873 = vld [vmem:[%s1861 + $0x2c] sm:$0xf]
        %v1874 = vld [vmem:[%s1861 + $0x30] sm:$0xf]
        %v1875 = vld [vmem:[%s1861 + $0x34] sm:$0xf]
        %v1876 = vld [vmem:[%s1861 + $0x38] sm:$0xf]
        %v1877 = vld [vmem:[%s1861 + $0x3c] sm:$0xf]
        %v1878 = vld [vmem:[%s1861 + $0x40] sm:$0xf]
        %v1879 = vld [vmem:[%s1861 + $0x44] sm:$0xf]
        %v1880 = vld [vmem:[%s1861 + $0x48] sm:$0xf]
        %v1881 = vld [vmem:[%s1861 + $0x4c] sm:$0xf]
        %v1882 = vld [vmem:[%s1861 + $0x50] sm:$0xf]
        %v1883 = vld [vmem:[%s1861 + $0x54] sm:$0xf]
        %v1884 = vld [vmem:[%s1861 + $0x58] sm:$0xf]
        %v1885 = vld [vmem:[%s1861 + $0x5c] sm:$0xf]
        %v1886 = vld [vmem:[%s1861 + $0x60] sm:$0xf]
        %v1887 = vld [vmem:[%s1861 + $0x64] sm:$0xf]
        %v1888 = vld [vmem:[%s1861 + $0x68] sm:$0xf]
        %v1889 = vld [vmem:[%s1861 + $0x6c] sm:$0xf]
        %v1890 = vld [vmem:[%s1861 + $0x70] sm:$0xf]
        %v1891 = vld [vmem:[%s1861 + $0x74] sm:$0xf]
        %v1892 = vld [vmem:[%s1861 + $0x78] sm:$0xf]
        %v1893 = vld [vmem:[%s1861 + $0x7c] sm:$0xf]
        %v1894 = vld [vmem:[%s1861 + $0x80] sm:$0xf]
        %v1895 = vld [vmem:[%s1861 + $0x84] sm:$0xf]
        %v1896 = vld [vmem:[%s1861 + $0x88] sm:$0xf]
        %v1897 = vld [vmem:[%s1861 + $0x8c] sm:$0xf]
        %v1898 = vld [vmem:[%s1861 + $0x90] sm:$0xf]
        %v1899 = vld [vmem:[%s1861 + $0x94] sm:$0xf]
        %v1900 = vld [vmem:[%s1861 + $0x98] sm:$0xf]
        %v1901 = vld [vmem:[%s1861 + $0x9c] sm:$0xf]
        %v1902 = vld [vmem:[%s1861 + $0xa0] sm:$0xf]
        %v1903 = vld [vmem:[%s1861 + $0xa4] sm:$0xf]
        %v1904 = vld [vmem:[%s1861 + $0xa8] sm:$0xf]
        %v1905 = vld [vmem:[%s1861 + $0xac] sm:$0xf]
        %v1906 = vld [vmem:[%s1861 + $0xb0] sm:$0xf]
        %v1907 = vld [vmem:[%s1861 + $0xb4] sm:$0xf]
        %v1908 = vld [vmem:[%s1861 + $0xb8] sm:$0xf]
        %v1909 = vld [vmem:[%s1861 + $0xbc] sm:$0xf]
        %v1910 = vunpack.c.l.b16 %v1650
        %v1911 = vunpack.c.h.b16 %v1650
        %v1912 = vunpack.c.l.b16 %v1664
        %v1913 = vunpack.c.l.b16 %v1678
        %v1914 = vunpack.c.h.b16 %v1678
        %v1915 = vunpack.c.l.b16 %v1692
        %v1916 = vunpack.c.l.b16 %v1706
        %v1917 = vunpack.c.h.b16 %v1706
        %v1918 = vunpack.c.l.b16 %v1720
        %v1919 = vunpack.c.l.b16 %v1734
        %v1920 = vunpack.c.h.b16 %v1734
        %v1921 = vunpack.c.l.b16 %v1748
        %v1922 = vunpack.c.l.b16 %v1762
        %v1923 = vunpack.c.h.b16 %v1762
        %v1924 = vunpack.c.l.b16 %v1776
        %v1925 = vunpack.c.l.b16 %v1790
        %v1926 = vunpack.c.h.b16 %v1790
        %v1927 = vunpack.c.l.b16 %v1804
        %v1928 = vunpack.c.l.b16 %v1818
        %v1929 = vunpack.c.h.b16 %v1818
        %v1930 = vunpack.c.l.b16 %v1832
        %v1931 = vunpack.c.l.b16 %v1846
        %v1932 = vunpack.c.h.b16 %v1846
        %v1933 = vunpack.c.l.b16 %v1860
        %v1934 = vpack.c.b16 %v1913, %v1910
        %v1935 = vpack.c.b16 %v1914, %v1911
        %v1936 = vpack.c.b16 %v1915, %v1912
        %v1937 = vpack.c.b16 %v1919, %v1916
        %v1938 = vpack.c.b16 %v1920, %v1917
        %v1939 = vpack.c.b16 %v1921, %v1918
        %v1940 = vpack.c.b16 %v1925, %v1922
        %v1941 = vpack.c.b16 %v1926, %v1923
        %v1942 = vpack.c.b16 %v1927, %v1924
        %v1943 = vpack.c.b16 %v1931, %v1928
        %v1944 = vpack.c.b16 %v1932, %v1929
        %v1945 = vpack.c.b16 %v1933, %v1930
        %v2006 = vunpack.c.l.b16 %v1862
        %v2007 = vunpack.c.l.b16 %v1863
        %v2008 = vunpack.c.l.b16 %v1864
        %v2009 = vunpack.c.l.b16 %v1865
        %v2010 = vunpack.c.l.b16 %v1866
        %v2011 = vunpack.c.l.b16 %v1867
        %v2012 = vunpack.c.l.b16 %v1868
        %v2013 = vunpack.c.l.b16 %v1869
        %v2014 = vunpack.c.l.b16 %v1870
        %v2015 = vunpack.c.l.b16 %v1871
        %v2016 = vunpack.c.l.b16 %v1872
        %v2017 = vunpack.c.l.b16 %v1873
        %v2018 = vunpack.c.l.b16 %v1874
        %v2019 = vunpack.c.l.b16 %v1875
        %v2020 = vunpack.c.l.b16 %v1876
        %v2021 = vunpack.c.l.b16 %v1877
        %v2022 = vunpack.c.l.b16 %v1878
        %v2023 = vunpack.c.l.b16 %v1879
        %v2024 = vunpack.c.l.b16 %v1880
        %v2025 = vunpack.c.l.b16 %v1881
        %v2026 = vunpack.c.l.b16 %v1882
        %v2027 = vunpack.c.l.b16 %v1883
        %v2028 = vunpack.c.l.b16 %v1884
        %v2029 = vunpack.c.l.b16 %v1885
        %v2030 = vunpack.c.l.b16 %v1886
        %v2031 = vunpack.c.l.b16 %v1887
        %v2032 = vunpack.c.l.b16 %v1888
        %v2033 = vunpack.c.l.b16 %v1889
        %v2034 = vunpack.c.l.b16 %v1890
        %v2035 = vunpack.c.l.b16 %v1891
        %v2036 = vunpack.c.l.b16 %v1892
        %v2037 = vunpack.c.l.b16 %v1893
        %v2038 = vunpack.c.l.b16 %v1894
        %v2039 = vunpack.c.l.b16 %v1895
        %v2040 = vunpack.c.l.b16 %v1896
        %v2041 = vunpack.c.l.b16 %v1897
        %v2042 = vunpack.c.l.b16 %v1898
        %v2043 = vunpack.c.l.b16 %v1899
        %v2044 = vunpack.c.l.b16 %v1900
        %v2045 = vunpack.c.l.b16 %v1901
        %v2046 = vunpack.c.l.b16 %v1902
        %v2047 = vunpack.c.l.b16 %v1903
        %v2048 = vunpack.c.l.b16 %v1904
        %v2049 = vunpack.c.l.b16 %v1905
        %v2050 = vunpack.c.l.b16 %v1906
        %v2051 = vunpack.c.l.b16 %v1907
        %v2052 = vunpack.c.l.b16 %v1908
        %v2053 = vunpack.c.l.b16 %v1909
        %v2054 = vpack.c.b16 %v2007, %v2006
        %v2055 = vpack.c.b16 %v2009, %v2008
        %v2056 = vpack.c.b16 %v2011, %v2010
        %v2057 = vpack.c.b16 %v2013, %v2012
        %v2058 = vpack.c.b16 %v2015, %v2014
        %v2059 = vpack.c.b16 %v2017, %v2016
        %v2060 = vpack.c.b16 %v2019, %v2018
        %v2061 = vpack.c.b16 %v2021, %v2020
        %v2062 = vpack.c.b16 %v2023, %v2022
        %v2063 = vpack.c.b16 %v2025, %v2024
        %v2064 = vpack.c.b16 %v2027, %v2026
        %v2065 = vpack.c.b16 %v2029, %v2028
        %v2066 = vpack.c.b16 %v2031, %v2030
        %v2067 = vpack.c.b16 %v2033, %v2032
        %v2068 = vpack.c.b16 %v2035, %v2034
        %v2069 = vpack.c.b16 %v2037, %v2036
        %v2070 = vpack.c.b16 %v2039, %v2038
        %v2071 = vpack.c.b16 %v2041, %v2040
        %v2072 = vpack.c.b16 %v2043, %v2042
        %v2073 = vpack.c.b16 %v2045, %v2044
        %v2074 = vpack.c.b16 %v2047, %v2046
        %v2075 = vpack.c.b16 %v2049, %v2048
        %v2076 = vpack.c.b16 %v2051, %v2050
        %v2077 = vpack.c.b16 %v2053, %v2052
        %2102 = vmatprep.subr.bf16.mxu0 0
        %2103 = vmatpush1.bf16.msra.mxu0 %v2054
        %2104 = vmatprep.subr.bf16.mxu0 0
        %2105 = vmatpush1.bf16.msra.mxu0 %v2055
        %2106 = vmatprep.subr.bf16.mxu0 0
        %2107 = vmatpush1.bf16.msra.mxu0 %v2056
        %2108 = vmatprep.subr.bf16.mxu0 0
        %2109 = vmatpush1.bf16.msra.mxu0 %v2057
        %2110 = vmatprep.subr.bf16.mxu0 0
        %2111 = vmatpush1.bf16.msra.mxu0 %v2058
        %2112 = vmatprep.subr.bf16.mxu0 0
        %2113 = vmatpush1.bf16.msra.mxu0 %v2059
        %2114 = vmatprep.subr.bf16.mxu0 0
        %2115 = vmatpush1.bf16.msra.mxu0 %v2060
        %2116 = vmatprep.subr.bf16.mxu0 0
        %2117 = vmatpush1.bf16.msra.mxu0 %v2061
        %2118 = vmatprep.subr.bf16.mxu0 0
        %2119 = vmatpush1.bf16.msra.mxu0 %v2062
        %2120 = vmatprep.subr.bf16.mxu0 0
        %2121 = vmatpush1.bf16.msra.mxu0 %v2063
        %2122 = vmatprep.subr.bf16.mxu0 0
        %2123 = vmatpush1.bf16.msra.mxu0 %v2064
        %2124 = vmatprep.subr.bf16.mxu0 0
        %2125 = vmatpush1.bf16.msra.mxu0 %v2065
        %2126 = vmatprep.subr.bf16.mxu0 0
        %2127 = vmatpush1.bf16.msra.mxu0 %v2066
        %2128 = vmatprep.subr.bf16.mxu0 0
        %2129 = vmatpush1.bf16.msra.mxu0 %v2067
        %2130 = vmatprep.subr.bf16.mxu0 0
        %2131 = vmatpush1.bf16.msra.mxu0 %v2068
        %2132 = vmatprep.subr.bf16.mxu0 0
        %2133 = vmatpush1.bf16.msra.mxu0 %v2069
        %2134 = vmatprep.mubr.bf16.mxu0 %v1935
        %2135 = vmatmul.mubr.bf16.gmra.mrb[0].mxu0 %v1934
        %v2136 = vpop.f32.mrb[0].mxu0
        %v2137 = vadd.f32 0.0, %v2136
        %v2138 = vpop.f32.mrb[0].mxu0
        %v2139 = vpop.f32.mrb[0].mxu0
        %v2140 = vadd.f32 0.0, %v2139
        %v2141 = vpop.f32.mrb[0].mxu0
        %2142 = vmatprep.mubr.bf16.mxu0 %v1938
        %2143 = vmatmul.mubr.bf16.gmra.mrb[0].mxu0 %v1937
        %v2144 = vpop.f32.mrb[0].mxu0
        %v2145 = vadd.f32 0.0, %v2144
        %v2146 = vpop.f32.mrb[0].mxu0
        %v2147 = vpop.f32.mrb[0].mxu0
        %v2148 = vadd.f32 0.0, %v2147
        %v2149 = vpop.f32.mrb[0].mxu0
        %2150 = vmatprep.mubr.bf16.mxu0 %v1941
        %2151 = vmatmul.mubr.bf16.gmra.mrb[0].mxu0 %v1940
        %v2152 = vpop.f32.mrb[0].mxu0
        %v2153 = vadd.f32 0.0, %v2152
        %v2154 = vpop.f32.mrb[0].mxu0
        %v2155 = vpop.f32.mrb[0].mxu0
        %v2156 = vadd.f32 0.0, %v2155
        %v2157 = vpop.f32.mrb[0].mxu0
        %2158 = vmatprep.mubr.bf16.mxu0 %v1944
        %2159 = vmatmul.mubr.bf16.gmra.mrb[0].mxu0 %v1943
        %v2160 = vpop.f32.mrb[0].mxu0
        %v2161 = vadd.f32 0.0, %v2160
        %v2162 = vpop.f32.mrb[0].mxu0
        %v2163 = vpop.f32.mrb[0].mxu0
        %v2164 = vadd.f32 0.0, %v2163
        %v2165 = vpop.f32.mrb[0].mxu0
        %2166 = vdwg.mxu0
        %2167 = vmatprep.subr.bf16.mxu0 0
        %2168 = vmatpush1.bf16.msra.mxu0 %v2070
        %2169 = vmatprep.subr.bf16.mxu0 0
        %2170 = vmatpush1.bf16.msra.mxu0 %v2071
        %2171 = vmatprep.subr.bf16.mxu0 0
        %2172 = vmatpush1.bf16.msra.mxu0 %v2072
        %2173 = vmatprep.subr.bf16.mxu0 0
        %2174 = vmatpush1.bf16.msra.mxu0 %v2073
        %2175 = vmatprep.subr.bf16.mxu0 0
        %2176 = vmatpush1.bf16.msra.mxu0 %v2074
        %2177 = vmatprep.subr.bf16.mxu0 0
        %2178 = vmatpush1.bf16.msra.mxu0 %v2075
        %2179 = vmatprep.subr.bf16.mxu0 0
        %2180 = vmatpush1.bf16.msra.mxu0 %v2076
        %2181 = vmatprep.subr.bf16.mxu0 0
        %2182 = vmatpush1.bf16.msra.mxu0 %v2077
        %2183 = vmatprep.subr.bf16.mxu0 0
        %2184 = vmatpush1.bf16.msra.mxu0 0
        %2185 = vmatprep.subr.bf16.mxu0 0
        %2186 = vmatpush1.bf16.msra.mxu0 0
        %2187 = vmatprep.subr.bf16.mxu0 0
        %2188 = vmatpush1.bf16.msra.mxu0 0
        %2189 = vmatprep.subr.bf16.mxu0 0
        %2190 = vmatpush1.bf16.msra.mxu0 0
        %2191 = vmatprep.subr.bf16.mxu0 0
        %2192 = vmatpush1.bf16.msra.mxu0 0
        %2193 = vmatprep.subr.bf16.mxu0 0
        %2194 = vmatpush1.bf16.msra.mxu0 0
        %2195 = vmatprep.subr.bf16.mxu0 0
        %2196 = vmatpush1.bf16.msra.mxu0 0
        %2197 = vmatprep.subr.bf16.mxu0 0
        %2198 = vmatpush1.bf16.msra.mxu0 0
        %2199 = vmatprep.mubr.bf16.mxu0 0
        %2200 = vmatmul.mubr.bf16.gmra.mrb[0].mxu0 %v1936
        %v2201 = vpop.f32.mrb[0].mxu0
        %v2202 = vadd.f32 %v2137, %v2201
        %v2203 = vpop.f32.mrb[0].mxu0
        %v2204 = vpop.f32.mrb[0].mxu0
        %v2205 = vadd.f32 %v2140, %v2204
        %v2206 = vpop.f32.mrb[0].mxu0
        %2207 = vmatprep.mubr.bf16.mxu0 0
        %2208 = vmatmul.mubr.bf16.gmra.mrb[0].mxu0 %v1939
        %v2209 = vpop.f32.mrb[0].mxu0
        %v2210 = vadd.f32 %v2145, %v2209
        %v2211 = vpop.f32.mrb[0].mxu0
        %v2212 = vpop.f32.mrb[0].mxu0
        %v2213 = vadd.f32 %v2148, %v2212
        %v2214 = vpop.f32.mrb[0].mxu0
        %2215 = vmatprep.mubr.bf16.mxu0 0
        %2216 = vmatmul.mubr.bf16.gmra.mrb[0].mxu0 %v1942
        %v2217 = vpop.f32.mrb[0].mxu0
        %v2218 = vadd.f32 %v2153, %v2217
        %v2219 = vpop.f32.mrb[0].mxu0
        %v2220 = vpop.f32.mrb[0].mxu0
        %v2221 = vadd.f32 %v2156, %v2220
        %v2222 = vpop.f32.mrb[0].mxu0
        %2223 = vmatprep.mubr.bf16.mxu0 0
        %2224 = vmatmul.mubr.bf16.gmra.mrb[0].mxu0 %v1945
        %v2225 = vpop.f32.mrb[0].mxu0
        %v2226 = vadd.f32 %v2161, %v2225
        %v2227 = vpop.f32.mrb[0].mxu0
        %v2228 = vpop.f32.mrb[0].mxu0
        %v2229 = vadd.f32 %v2164, %v2228
        %v2230 = vpop.f32.mrb[0].mxu0
        %2231 = vdwg.mxu0
        %v2232 = vadd.f32 %v1470, %v2202
        %v2233 = vadd.f32 %v1473, %v2205
        %v2234 = vadd.f32 %v1478, %v2210
        %v2235 = vadd.f32 %v1481, %v2213
        %v2236 = vadd.f32 %v1486, %v2218
        %v2237 = vadd.f32 %v1489, %v2221
        %v2238 = vadd.f32 %v1494, %v2226
        %v2239 = vadd.f32 %v1497, %v2229
        %v2240 = vld [vmem:[%s2] sm:$0x1]
        %v2242 = vlaneseq
        %v2243 = vshrl.u32 %v2242, 7
        %v2244 = vsub.s32 0, %v2243
        %v2245 = vrot.slane %v2240, %v2244
        %v2247 = vadd.f32 %v2232, %v2245
        %v2248 = vadd.f32 %v2233, %v2245
        %v2249 = vadd.f32 %v2234, %v2245
        %v2250 = vadd.f32 %v2235, %v2245
        %v2251 = vadd.f32 %v2236, %v2245
        %v2252 = vadd.f32 %v2237, %v2245
        %v2253 = vadd.f32 %v2238, %v2245
        %v2254 = vadd.f32 %v2239, %v2245
        %v2255 = vmax.f32 %v2247, 0.0
        %v2256 = vmax.f32 %v2248, 0.0
        %v2257 = vmax.f32 %v2249, 0.0
        %v2258 = vmax.f32 %v2250, 0.0
        %v2259 = vmax.f32 %v2251, 0.0
        %v2260 = vmax.f32 %v2252, 0.0
        %v2261 = vmax.f32 %v2253, 0.0
        %v2262 = vmax.f32 %v2254, 0.0
        %v2263 = vpack.c.bf16 %v2256, %v2255
        %v2264 = vpack.c.bf16 %v2258, %v2257
        %v2265 = vpack.c.bf16 %v2260, %v2259
        %v2266 = vpack.c.bf16 %v2262, %v2261
        %v2267 = vld [vmem:[%s679] sm:$0xf]
        %v2268 = vld [vmem:[%s679 + $0x4] sm:$0xf]
        %v2269 = vld [vmem:[%s679 + $0x8] sm:$0xf]
        %v2270 = vld [vmem:[%s679 + $0xc] sm:$0xf]
        %v2271 = vld [vmem:[%s679 + $0x10] sm:$0xf]
        %v2272 = vld [vmem:[%s679 + $0x14] sm:$0xf]
        %v2273 = vld [vmem:[%s679 + $0x18] sm:$0xf]
        %v2274 = vld [vmem:[%s679 + $0x1c] sm:$0xf]
        %v2275 = vld [vmem:[%s3] sm:$0xf]
        %v2276 = vld [vmem:[%s3 + $0x4] sm:$0xf]
        %v2277 = vld [vmem:[%s3 + $0x8] sm:$0xf]
        %v2278 = vld [vmem:[%s3 + $0xc] sm:$0xf]
        %v2279 = vld [vmem:[%s3 + $0x10] sm:$0xf]
        %v2280 = vld [vmem:[%s3 + $0x14] sm:$0xf]
        %v2281 = vld [vmem:[%s3 + $0x18] sm:$0xf]
        %v2282 = vld [vmem:[%s3 + $0x1c] sm:$0xf]
        %v2283 = vld [vmem:[%s3 + $0x20] sm:$0xf]
        %v2284 = vld [vmem:[%s3 + $0x24] sm:$0xf]
        %v2285 = vld [vmem:[%s3 + $0x28] sm:$0xf]
        %v2286 = vld [vmem:[%s3 + $0x2c] sm:$0xf]
        %v2287 = vld [vmem:[%s3 + $0x30] sm:$0xf]
        %v2288 = vld [vmem:[%s3 + $0x34] sm:$0xf]
        %v2289 = vld [vmem:[%s3 + $0x38] sm:$0xf]
        %v2290 = vld [vmem:[%s3 + $0x3c] sm:$0xf]
        %v2291 = vld [vmem:[%s4] sm:$0x1]
        %v2293 = vlaneseq
        %v2294 = vshrl.u32 %v2293, 7
        %v2295 = vsub.s32 0, %v2294
        %v2296 = vrot.slane %v2291, %v2295
        %v2314 = vunpack.c.l.b16 %v2275
        %v2315 = vunpack.c.l.b16 %v2276
        %v2316 = vunpack.c.l.b16 %v2277
        %v2317 = vunpack.c.l.b16 %v2278
        %v2318 = vunpack.c.l.b16 %v2279
        %v2319 = vunpack.c.l.b16 %v2280
        %v2320 = vunpack.c.l.b16 %v2281
        %v2321 = vunpack.c.l.b16 %v2282
        %v2322 = vunpack.c.l.b16 %v2283
        %v2323 = vunpack.c.l.b16 %v2284
        %v2324 = vunpack.c.l.b16 %v2285
        %v2325 = vunpack.c.l.b16 %v2286
        %v2326 = vunpack.c.l.b16 %v2287
        %v2327 = vunpack.c.l.b16 %v2288
        %v2328 = vunpack.c.l.b16 %v2289
        %v2329 = vunpack.c.l.b16 %v2290
        %v2330 = vpack.c.b16 %v2315, %v2314
        %v2331 = vpack.c.b16 %v2317, %v2316
        %v2332 = vpack.c.b16 %v2319, %v2318
        %v2333 = vpack.c.b16 %v2321, %v2320
        %v2334 = vpack.c.b16 %v2323, %v2322
        %v2335 = vpack.c.b16 %v2325, %v2324
        %v2336 = vpack.c.b16 %v2327, %v2326
        %v2337 = vpack.c.b16 %v2329, %v2328
        %2346 = vmatprep.subr.bf16.mxu0 0
        %2347 = vmatpush1.bf16.msra.mxu0 %v2330
        %2348 = vmatprep.subr.bf16.mxu0 0
        %2349 = vmatpush1.bf16.msra.mxu0 %v2331
        %2350 = vmatprep.subr.bf16.mxu0 0
        %2351 = vmatpush1.bf16.msra.mxu0 %v2332
        %2352 = vmatprep.subr.bf16.mxu0 0
        %2353 = vmatpush1.bf16.msra.mxu0 %v2333
        %2354 = vmatprep.subr.bf16.mxu0 0
        %2355 = vmatpush1.bf16.msra.mxu0 %v2334
        %2356 = vmatprep.subr.bf16.mxu0 0
        %2357 = vmatpush1.bf16.msra.mxu0 %v2335
        %2358 = vmatprep.subr.bf16.mxu0 0
        %2359 = vmatpush1.bf16.msra.mxu0 %v2336
        %2360 = vmatprep.subr.bf16.mxu0 0
        %2361 = vmatpush1.bf16.msra.mxu0 %v2337
        %2362 = vmatprep.subr.bf16.mxu0 0
        %2363 = vmatpush1.bf16.msra.mxu0 0
        %2364 = vmatprep.subr.bf16.mxu0 0
        %2365 = vmatpush1.bf16.msra.mxu0 0
        %2366 = vmatprep.subr.bf16.mxu0 0
        %2367 = vmatpush1.bf16.msra.mxu0 0
        %2368 = vmatprep.subr.bf16.mxu0 0
        %2369 = vmatpush1.bf16.msra.mxu0 0
        %2370 = vmatprep.subr.bf16.mxu0 0
        %2371 = vmatpush1.bf16.msra.mxu0 0
        %2372 = vmatprep.subr.bf16.mxu0 0
        %2373 = vmatpush1.bf16.msra.mxu0 0
        %2374 = vmatprep.subr.bf16.mxu0 0
        %2375 = vmatpush1.bf16.msra.mxu0 0
        %2376 = vmatprep.subr.bf16.mxu0 0
        %2377 = vmatpush1.bf16.msra.mxu0 0
        %2378 = vmatprep.mubr.bf16.mxu0 0
        %2379 = vmatmul.mubr.bf16.gmra.mrb[0].mxu0 %v2263
        %v2380 = vpop.f32.mrb[0].mxu0
        %v2381 = vadd.f32 %v2296, %v2380
        %v2382 = vpop.f32.mrb[0].mxu0
        %v2383 = vpop.f32.mrb[0].mxu0
        %v2384 = vadd.f32 %v2296, %v2383
        %v2385 = vpop.f32.mrb[0].mxu0
        %2386 = vmatprep.mubr.bf16.mxu0 0
        %2387 = vmatmul.mubr.bf16.gmra.mrb[0].mxu0 %v2264
        %v2388 = vpop.f32.mrb[0].mxu0
        %v2389 = vadd.f32 %v2296, %v2388
        %v2390 = vpop.f32.mrb[0].mxu0
        %v2391 = vpop.f32.mrb[0].mxu0
        %v2392 = vadd.f32 %v2296, %v2391
        %v2393 = vpop.f32.mrb[0].mxu0
        %2394 = vmatprep.mubr.bf16.mxu0 0
        %2395 = vmatmul.mubr.bf16.gmra.mrb[0].mxu0 %v2265
        %v2396 = vpop.f32.mrb[0].mxu0
        %v2397 = vadd.f32 %v2296, %v2396
        %v2398 = vpop.f32.mrb[0].mxu0
        %v2399 = vpop.f32.mrb[0].mxu0
        %v2400 = vadd.f32 %v2296, %v2399
        %v2401 = vpop.f32.mrb[0].mxu0
        %2402 = vmatprep.mubr.bf16.mxu0 0
        %2403 = vmatmul.mubr.bf16.gmra.mrb[0].mxu0 %v2266
        %v2404 = vpop.f32.mrb[0].mxu0
        %v2405 = vadd.f32 %v2296, %v2404
        %v2406 = vpop.f32.mrb[0].mxu0
        %v2407 = vpop.f32.mrb[0].mxu0
        %v2408 = vadd.f32 %v2296, %v2407
        %v2409 = vpop.f32.mrb[0].mxu0
        %2410 = vdwg.mxu0
        %v2411 = vmax.f32 %v2381, 0.0
        %v2412 = vmax.f32 %v2384, 0.0
        %v2413 = vmax.f32 %v2389, 0.0
        %v2414 = vmax.f32 %v2392, 0.0
        %v2415 = vmax.f32 %v2397, 0.0
        %v2416 = vmax.f32 %v2400, 0.0
        %v2417 = vmax.f32 %v2405, 0.0
        %v2418 = vmax.f32 %v2408, 0.0
        %v2419 = vld [vmem:[%s6] sm:$0x3]
        %v2420 = vld [vmem:[%s7] sm:$0x1]
        %v2422 = vlaneseq
        %v2423 = vshrl.u32 %v2422, 7
        %v2424 = vsub.s32 0, %v2423
        %v2425 = vrot.slane %v2420, %v2424
        %v2435 = vunpack.c.l.b16 %v2267
        %v2436 = vunpack.c.l.b16 %v2268
        %v2437 = vunpack.c.l.b16 %v2269
        %v2438 = vunpack.c.l.b16 %v2270
        %v2439 = vunpack.c.l.b16 %v2271
        %v2440 = vunpack.c.l.b16 %v2272
        %v2441 = vunpack.c.l.b16 %v2273
        %v2442 = vunpack.c.l.b16 %v2274
        %v2443 = vpack.c.b16 %v2436, %v2435
        %v2444 = vpack.c.b16 %v2438, %v2437
        %v2445 = vpack.c.b16 %v2440, %v2439
        %v2446 = vpack.c.b16 %v2442, %v2441
        %vm2447 = vcmask 31744
        %v2449 = vsel %vm2447, %v2443, 0
        %v2452 = vsel %vm2447, %v2444, 0
        %v2455 = vsel %vm2447, %v2445, 0
        %v2458 = vsel %vm2447, %v2446, 0
        %vm2460 = vcmask 1041408
        %v2462 = vsel %vm2460, %v2419, 0
        %2464 = vmatprep.subr.bf16.mxu0 0
        %2465 = vmatpush1.bf16.msra.mxu0 %v2462
        %2466 = vmatprep.subr.bf16.mxu0 0
        %2467 = vmatpush1.bf16.msra.mxu0 0
        %2468 = vmatprep.subr.bf16.mxu0 0
        %2469 = vmatpush1.bf16.msra.mxu0 0
        %2470 = vmatprep.subr.bf16.mxu0 0
        %2471 = vmatpush1.bf16.msra.mxu0 0
        %2472 = vmatprep.subr.bf16.mxu0 0
        %2473 = vmatpush1.bf16.msra.mxu0 0
        %2474 = vmatprep.subr.bf16.mxu0 0
        %2475 = vmatpush1.bf16.msra.mxu0 0
        %2476 = vmatprep.subr.bf16.mxu0 0
        %2477 = vmatpush1.bf16.msra.mxu0 0
        %2478 = vmatprep.subr.bf16.mxu0 0
        %2479 = vmatpush1.bf16.msra.mxu0 0
        %2480 = vmatprep.subr.bf16.mxu0 0
        %2481 = vmatpush1.bf16.msra.mxu0 0
        %2482 = vmatprep.subr.bf16.mxu0 0
        %2483 = vmatpush1.bf16.msra.mxu0 0
        %2484 = vmatprep.subr.bf16.mxu0 0
        %2485 = vmatpush1.bf16.msra.mxu0 0
        %2486 = vmatprep.subr.bf16.mxu0 0
        %2487 = vmatpush1.bf16.msra.mxu0 0
        %2488 = vmatprep.subr.bf16.mxu0 0
        %2489 = vmatpush1.bf16.msra.mxu0 0
        %2490 = vmatprep.subr.bf16.mxu0 0
        %2491 = vmatpush1.bf16.msra.mxu0 0
        %2492 = vmatprep.subr.bf16.mxu0 0
        %2493 = vmatpush1.bf16.msra.mxu0 0
        %2494 = vmatprep.subr.bf16.mxu0 0
        %2495 = vmatpush1.bf16.msra.mxu0 0
        %2496 = vmatprep.mubr.bf16.mxu0 0
        %2497 = vmatmul.mubr.bf16.gmra.mrb[0].mxu0 %v2449
        %v2498 = vpop.f32.mrb[0].mxu0
        %v2499 = vadd.f32 %v2425, %v2498
        %v2500 = vpop.f32.mrb[0].mxu0
        %v2501 = vpop.f32.mrb[0].mxu0
        %v2502 = vadd.f32 %v2425, %v2501
        %v2503 = vpop.f32.mrb[0].mxu0
        %2504 = vmatprep.mubr.bf16.mxu0 0
        %2505 = vmatmul.mubr.bf16.gmra.mrb[0].mxu0 %v2452
        %v2506 = vpop.f32.mrb[0].mxu0
        %v2507 = vadd.f32 %v2425, %v2506
        %v2508 = vpop.f32.mrb[0].mxu0
        %v2509 = vpop.f32.mrb[0].mxu0
        %v2510 = vadd.f32 %v2425, %v2509
        %v2511 = vpop.f32.mrb[0].mxu0
        %2512 = vmatprep.mubr.bf16.mxu0 0
        %2513 = vmatmul.mubr.bf16.gmra.mrb[0].mxu0 %v2455
        %v2514 = vpop.f32.mrb[0].mxu0
        %v2515 = vadd.f32 %v2425, %v2514
        %v2516 = vpop.f32.mrb[0].mxu0
        %v2517 = vpop.f32.mrb[0].mxu0
        %v2518 = vadd.f32 %v2425, %v2517
        %v2519 = vpop.f32.mrb[0].mxu0
        %2520 = vmatprep.mubr.bf16.mxu0 0
        %2521 = vmatmul.mubr.bf16.gmra.mrb[0].mxu0 %v2458
        %v2522 = vpop.f32.mrb[0].mxu0
        %v2523 = vadd.f32 %v2425, %v2522
        %v2524 = vpop.f32.mrb[0].mxu0
        %v2525 = vpop.f32.mrb[0].mxu0
        %v2526 = vadd.f32 %v2425, %v2525
        %v2527 = vpop.f32.mrb[0].mxu0
        %2528 = vdwg.mxu0
        %v2529 = vadd.f32 %v2411, %v2499
        %v2530 = vadd.f32 %v2412, %v2502
        %v2531 = vadd.f32 %v2413, %v2507
        %v2532 = vadd.f32 %v2414, %v2510
        %v2533 = vadd.f32 %v2415, %v2515
        %v2534 = vadd.f32 %v2416, %v2518
        %v2535 = vadd.f32 %v2417, %v2523
        %v2536 = vadd.f32 %v2418, %v2526
        %v2537 = vmax.f32 %v2529, 0.0
        %v2538 = vmax.f32 %v2530, 0.0
        %v2539 = vmax.f32 %v2531, 0.0
        %v2540 = vmax.f32 %v2532, 0.0
        %v2541 = vmax.f32 %v2533, 0.0
        %v2542 = vmax.f32 %v2534, 0.0
        %v2543 = vmax.f32 %v2535, 0.0
        %v2544 = vmax.f32 %v2536, 0.0
        %2545 = vst [vmem:[%s689] sm:$0xff] %v2537
        %2546 = vst [vmem:[%s689 + $0x8] sm:$0xff] %v2538
        %2547 = vst [vmem:[%s689 + $0x10] sm:$0xff] %v2539
        %2548 = vst [vmem:[%s689 + $0x18] sm:$0xff] %v2540
        %2549 = vst [vmem:[%s689 + $0x20] sm:$0xff] %v2541
        %2550 = vst [vmem:[%s689 + $0x28] sm:$0xff] %v2542
        %2551 = vst [vmem:[%s689 + $0x30] sm:$0xff] %v2543
        %2552 = vst [vmem:[%s689 + $0x38] sm:$0xff] %v2544
        %s2553 = smul.u32 8, %s24
        %p2554 = scmp.lt.s32.totalorder %s23, 1
        %s2555 = scalar_select %p2554, %s23, 1
        %p2556 = scmp.lt.s32.totalorder %s2553, 7
        %s2557 = scalar_select %p2556, %s2553, 7
        %s2558 = smul.addr %s2555, 8
        %s2559 = sadd.s32 %s2557, %s2558
        %s2560 = smul.addr %s2559, 8
        %s2561 = scalar_lea.vmem %s8, %s2560
        // Predicated region
        $region94: #{bottleneck_forward.3} parent=88 // pred_check
          %p2562 = pneg %p231
        $region95: #{bottleneck_forward.3} parent=88 // pred_check_branch
          %2564 = sbr.rel (%p2562) target = $region97
        $region96: #{bottleneck_forward.3} parent=88 // pred_region
          %s2565 = smul.u32 8, %s24
        $region97: #{bottleneck_forward.3} parent=88 // pred_fallthru
          _
      $region89: #{bottleneck_forward.3} parent=5 // pred_fallthru
        _
      %p2566 = scmp.le.s32.totalorder 2, %s14
      // Predicated region
      $region98: #{bottleneck_forward.3} parent=5 // pred_check
        %p2567 = pneg %p2566
      $region99: #{bottleneck_forward.3} parent=5 // pred_check_branch
        %2569 = sbr.rel (%p2567) target = $region101
      $region100: #{bottleneck_forward.3} parent=5 // pred_region
        %s2570 = ssub.s32 %s14, 2
        // Predicated region
        $region102: #{bottleneck_forward.3} parent=100 // pred_check
          %p2571 = pneg %p237
        $region103: #{bottleneck_forward.3} parent=100 // pred_check_branch
          %2573 = sbr.rel (%p2571) target = $region105
        $region104: #{bottleneck_forward.3} parent=100 // pred_region
          %s2574 = smul.u32 8, %s26
          %p2575 = scmp.lt.s32.totalorder %s25, 1
          %s2576 = scalar_select %p2575, %s25, 1
          %p2577 = scmp.lt.s32.totalorder %s2574, 7
          %s2578 = scalar_select %p2577, %s2574, 7
          %s2579 = smul.addr %s2576, 8
          %s2580 = sadd.s32 %s2578, %s2579
          %s2581 = smul.addr %s2580, 8
          %s2582 = scalar_lea.vmem %s8, %s2581
        $region105: #{bottleneck_forward.3} parent=100 // pred_fallthru
          _
      $region101: #{bottleneck_forward.3} parent=5 // pred_fallthru
        _
    $region6: #{bottleneck_forward.3} parent=1 // loop_footer
      %s18 = sadd.s32 1, %s14
    $region7: #{bottleneck_forward.3} parent=1 // loop_footer_branch
      %13 = sbr.rel target = $region3
    $region8: #{bottleneck_forward.3} parent=1 // loop_exit
      _

</llo_original>
